<compile_context>
chip_gen: v7x
topology: tpu7x:2x2x1
jax: 0.10.0
libtpu: 0.0.40
codegen_flags: <defaults>
</compile_context>

<pallas_src>
import jax
import jax.numpy as jnp
from jax.experimental import pallas as pl
from jax.experimental.pallas import tpu as pltpu


def _round_up(x, m):
    return (x + m - 1) // m * m


def _cdiv(a, b):
    return -(-a // b)


def _vmem_capacity_bytes():
    """Per-core VMEM capacity; conservative (v7x-sized) fallback if unknown."""
    try:
        return int(pltpu.get_tpu_info().vmem_capacity_bytes)
    except Exception:
        return 64 * 1024 * 1024


def _make_conv_kernel(tile_m, off_pad, tap_offsets, c_out):
    """Build the per-tile kernel.

    x_main_ref : (Cin_p, TILE_M)            x2 columns [p0, p0+TILE_M)
    x_tail_ref : (Cin_p, OFF_PAD)           x2 columns [p0+TILE_M, p0+TILE_M+OFF_PAD)
    w_ref      : (T, Cout, Cin_p)           per-tap folded weights (VMEM resident)
    b_ref      : (Cout, 1)                  bias (VMEM resident)
    o_ref      : (Cout, TILE_M)             lane-dense output tile
    win_ref    : (Cin_p, TILE_M + OFF_PAD)  VMEM scratch: contiguous input window
    """

    def kernel(x_main_ref, x_tail_ref, w_ref, b_ref, o_ref, win_ref):
        # Assemble the contiguous window (both stores are lane-aligned since
        # TILE_M and OFF_PAD are multiples of 128).
        win_ref[:, :tile_m] = x_main_ref[...]
        win_ref[:, tile_m:tile_m + off_pad] = x_tail_ref[...]
        # Tap expansion happens here, on-chip: each tap is a static column
        # shift of the resident window — no HBM duplication.
        acc = jnp.zeros((c_out, tile_m), jnp.float32)
        for t, off in enumerate(tap_offsets):
            acc = acc + jnp.dot(
                w_ref[t],
                win_ref[:, off:off + tile_m],
                preferred_element_type=jnp.float32,
            )
        o_ref[...] = (acc + b_ref[...]).astype(o_ref.dtype)

    return kernel


def _pick_tile(m_embed, off_pad, cin_p, c_out, n_taps, itemsize, budget):
    """Pick TILE_M (multiple of OFF_PAD) + grid size under a VMEM budget."""

    def vmem_need(tile):
        return itemsize * (
            2 * cin_p * tile                         # x main tile, double-buffered
            + 2 * cin_p * off_pad                    # x tail tile, double-buffered
            + 2 * c_out * tile                       # output tile, double-buffered
            + 2 * (n_taps * c_out * cin_p + c_out)   # resident weights + bias (2 bufs)
            + cin_p * (tile + off_pad)               # window scratch
        )

    tile = _round_up(min(max(m_embed, off_pad), 64 * 1024), off_pad)
    while tile > off_pad and vmem_need(tile) > budget:
        tile -= off_pad
    # Keep at least two tiles: feeds both v7x TensorCores and gives the
    # BlockSpec pipeline something to prefetch / write back against.
    if m_embed > off_pad:
        tile = min(tile, _round_up(_cdiv(m_embed, 2), off_pad))
    # Balance tiles (cdiv rule) so M padding waste stays below one OFF_PAD block.
    grid_m = _cdiv(m_embed, tile)
    tile = _round_up(_cdiv(m_embed, grid_m), off_pad)
    grid_m = _cdiv(m_embed, tile)
    return tile, grid_m


def dmsr_conv3d(x_ncdhw, weight, bias, style=None):
    """Forward of DMSRConv: a plain valid (no-pad, stride-1) Conv3d.

    x_ncdhw : (N, Cin, D, H, W)
    weight  : (Cout, Cin, Kd, Kh, Kw)   (PyTorch OIDHW layout)
    bias    : (Cout,)
    style   : accepted and ignored (matches DMSRConv semantics)
    returns : (N, Cout, Do, Ho, Wo) with Do = D - Kd + 1, etc.
    """
    del style  # DMSRConv ignores the style argument.

    N, Cin, D, H, W = x_ncdhw.shape
    Cout, Cin_w, Kd, Kh, Kw = weight.shape
    assert Cin == Cin_w
    Do, Ho, Wo = D - Kd + 1, H - Kh + 1, W - Kw + 1

    dtype = x_ncdhw.dtype
    itemsize = jnp.dtype(dtype).itemsize
    T = Kd * Kh * Kw
    Cin_p = _round_up(Cin, 8)            # sublane multiple only — not 128

    # Tap offsets in the flattened input-space addressing (see module header).
    HW = H * W
    tap_offsets = [kd * HW + kh * W + kw
                   for kd in range(Kd) for kh in range(Kh) for kw in range(Kw)]
    off_max = tap_offsets[-1]
    off_pad = max(_round_up(off_max, 128), 128)
    m_embed = N * D * H * W              # embedded (input-resolution) output columns

    vmem_cap = _vmem_capacity_bytes()
    tile_m, grid_m = _pick_tile(
        m_embed, off_pad, Cin_p, Cout, T, itemsize,
        budget=int(0.40 * vmem_cap))
    vmem_limit = min(int(0.75 * vmem_cap), 100 * 1024 * 1024)
    ratio = tile_m // off_pad            # exact: TILE_M is a multiple of OFF_PAD

    m_out_pad = grid_m * tile_m
    l_pad = m_out_pad + off_pad          # input columns incl. the overlap tail

    # ---- glue (all ~1x input-sized; no 27x im2col slab in HBM) ----
    x2 = jnp.transpose(x_ncdhw, (1, 0, 2, 3, 4)).reshape(Cin, m_embed)
    x2 = jnp.pad(x2, ((0, Cin_p - Cin), (0, l_pad - m_embed)))
    # weight[co, ci, kd, kh, kw] -> w3[t, co, ci], taps ordered like tap_offsets.
    w3 = jnp.transpose(weight, (2, 3, 4, 0, 1)).reshape(T, Cout, Cin)
    w3 = jnp.pad(w3, ((0, 0), (0, 0), (0, Cin_p - Cin))).astype(dtype)
    b2 = bias.reshape(Cout, 1).astype(jnp.float32)

    kernel = _make_conv_kernel(tile_m, off_pad, tap_offsets, Cout)

    out2d = pl.pallas_call(
        kernel,
        out_shape=jax.ShapeDtypeStruct((Cout, m_out_pad), dtype),
        grid_spec=pltpu.PrefetchScalarGridSpec(
            num_scalar_prefetch=0,
            grid=(grid_m,),
            in_specs=[
                pl.BlockSpec((Cin_p, tile_m), lambda m: (0, m)),
                pl.BlockSpec((Cin_p, off_pad), lambda m: (0, (m + 1) * ratio)),
                pl.BlockSpec((T, Cout, Cin_p), lambda m: (0, 0, 0)),   # resident
                pl.BlockSpec((Cout, 1), lambda m: (0, 0)),             # resident
            ],
            out_specs=pl.BlockSpec((Cout, tile_m), lambda m: (0, m)),
            scratch_shapes=[pltpu.VMEM((Cin_p, tile_m + off_pad), dtype)],
        ),
        compiler_params=pltpu.CompilerParams(
            dimension_semantics=("parallel",),   # split M tiles over v7x's 2 TCs
            vmem_limit_bytes=vmem_limit,
        ),
    )(x2, x2, w3, b2)

    # Gather the valid (Do, Ho, Wo) cube back out of the embedded layout.
    out = out2d[:, :m_embed].reshape(Cout, N, D, H, W)[:, :, :Do, :Ho, :Wo]
    return jnp.transpose(out, (1, 0, 2, 3, 4))


def init_dmsr_conv_params(key, channels_in, channels_out, kernel_size):
    """Deterministic init mimicking nn.Conv3d's default (uniform +- 1/sqrt(fan_in))."""
    kw_key, kb_key = jax.random.split(key)
    fan_in = channels_in * kernel_size ** 3
    bound = 1.0 / (fan_in ** 0.5)
    weight = jax.random.uniform(
        kw_key,
        (channels_out, channels_in, kernel_size, kernel_size, kernel_size),
        dtype=jnp.float32, minval=-bound, maxval=bound,
    )
    bias = jax.random.uniform(
        kb_key, (channels_out,), dtype=jnp.float32, minval=-bound, maxval=bound
    )
    return weight, bias


if __name__ == "__main__":
    key = jax.random.PRNGKey(0)
    k_x, k_p = jax.random.split(key)

    # Small shapes consistent with Conv3d: N=2, Cin=4, Cout=8, K=3, spatial=8.
    N, Cin, Cout, K, S = 2, 4, 8, 3, 8
    x = jax.random.normal(k_x, (N, Cin, S, S, S), dtype=jnp.float32)
    weight, bias = init_dmsr_conv_params(k_p, Cin, Cout, K)

    fwd = jax.jit(dmsr_conv3d)
    y = fwd(x, weight, bias, None)  # style=None, ignored like the PyTorch module
    jax.block_until_ready(y)

    # Cross-check against XLA's conv (same semantics as nn.Conv3d, valid padding).
    y_ref = jax.lax.conv_general_dilated(
        x, weight, window_strides=(1, 1, 1), padding="VALID",
        dimension_numbers=("NCDHW", "OIDHW", "NCDHW"),
    ) + bias.reshape(1, Cout, 1, 1, 1)
    assert y.shape == (N, Cout, S - K + 1, S - K + 1, S - K + 1)
    assert jnp.allclose(y, y_ref, atol=1e-3, rtol=1e-3)

    print("KERNEL_OK")
</pallas_src>

<mosaic_0001>
module attributes {stable_mosaic.version = 11 : i64} {
  func.func @kernel(%arg0: i32, %arg1: memref<8x512xf32, #tpu.memory_space<vmem>>, %arg2: memref<8x256xf32, #tpu.memory_space<vmem>>, %arg3: memref<27x8x8xf32, #tpu.memory_space<vmem>>, %arg4: memref<8x1xf32, #tpu.memory_space<vmem>>, %arg5: memref<8x512xf32, #tpu.memory_space<vmem>>, %arg6: memref<8x768xf32, #tpu.memory_space<vmem>>) attributes {dimension_semantics = [#tpu.dimension_semantics<parallel>], iteration_bounds = array<i64: 2>, scalar_prefetch = 0 : i64, scratch_operands = 1 : i64, tpu.core_type = #tpu.core_type<tc>, window_params = [{transform_indices = @transform_0, window_bounds = array<i64: 8, 512>}, {transform_indices = @transform_1, window_bounds = array<i64: 8, 256>}, {pipeline_mode = #tpu.pipeline_mode<synchronous>, transform_indices = @transform_2, window_bounds = array<i64: 27, 8, 8>}, {pipeline_mode = #tpu.pipeline_mode<synchronous>, transform_indices = @transform_3, window_bounds = array<i64: 8, 1>}, {transform_indices = @transform_4, window_bounds = array<i64: 8, 512>}]} {
    %c0 = arith.constant 0 : index
    %c0_0 = arith.constant 0 : index
    %0 = vector.load %arg1[%c0, %c0_0] : memref<8x512xf32, #tpu.memory_space<vmem>>, vector<8x512xf32>
    %c0_1 = arith.constant 0 : index
    %c0_2 = arith.constant 0 : index
    %1 = vector.load %arg6[%c0_1, %c0_2] : memref<8x768xf32, #tpu.memory_space<vmem>>, vector<8x512xf32>
    tpu.vector_store %arg6[%c0_1, %c0_2], %0 {strides = array<i32>} : memref<8x768xf32, #tpu.memory_space<vmem>>, vector<8x512xf32>,
    %c0_3 = arith.constant 0 : index
    %c0_4 = arith.constant 0 : index
    %2 = vector.load %arg2[%c0_3, %c0_4] : memref<8x256xf32, #tpu.memory_space<vmem>>, vector<8x256xf32>
    %c0_5 = arith.constant 0 : index
    %c512 = arith.constant 512 : index
    %3 = vector.load %arg6[%c0_5, %c512] : memref<8x768xf32, #tpu.memory_space<vmem>>, vector<8x256xf32>
    tpu.vector_store %arg6[%c0_5, %c512], %2 {strides = array<i32>} : memref<8x768xf32, #tpu.memory_space<vmem>>, vector<8x256xf32>,
    %cst = arith.constant 0.000000e+00 : f32
    %4 = vector.broadcast %cst : f32 to vector<8x512xf32>
    %c0_6 = arith.constant 0 : index
    %c0_7 = arith.constant 0 : index
    %c0_8 = arith.constant 0 : index
    %5 = vector.load %arg3[%c0_6, %c0_7, %c0_8] : memref<27x8x8xf32, #tpu.memory_space<vmem>>, vector<1x8x8xf32>
    %6 = vector.shape_cast %5 : vector<1x8x8xf32> to vector<8x8xf32>
    %c0_9 = arith.constant 0 : index
    %c0_10 = arith.constant 0 : index
    %7 = vector.load %arg6[%c0_9, %c0_10] : memref<8x768xf32, #tpu.memory_space<vmem>>, vector<8x512xf32>
    %cst_11 = arith.constant dense<0.000000e+00> : vector<8x512xf32>
    %8 = tpu.matmul %6, %7, %cst_11 {dimension_numbers = #tpu.dot_dimension_numbers<[1], [0], [0], [1], [0, 0, 1, 1], [], []>} : vector<8x8xf32>, vector<8x512xf32>, vector<8x512xf32> -> vector<8x512xf32>
    %9 = arith.addf %4, %8 : vector<8x512xf32>
    %c1 = arith.constant 1 : index
    %c0_12 = arith.constant 0 : index
    %c0_13 = arith.constant 0 : index
    %10 = vector.load %arg3[%c1, %c0_12, %c0_13] : memref<27x8x8xf32, #tpu.memory_space<vmem>>, vector<1x8x8xf32>
    %11 = vector.shape_cast %10 : vector<1x8x8xf32> to vector<8x8xf32>
    %c0_14 = arith.constant 0 : index
    %c1_15 = arith.constant 1 : index
    %12 = vector.load %arg6[%c0_14, %c1_15] : memref<8x768xf32, #tpu.memory_space<vmem>>, vector<8x512xf32>
    %cst_16 = arith.constant dense<0.000000e+00> : vector<8x512xf32>
    %13 = tpu.matmul %11, %12, %cst_16 {dimension_numbers = #tpu.dot_dimension_numbers<[1], [0], [0], [1], [0, 0, 1, 1], [], []>} : vector<8x8xf32>, vector<8x512xf32>, vector<8x512xf32> -> vector<8x512xf32>
    %14 = arith.addf %9, %13 : vector<8x512xf32>
    %c2 = arith.constant 2 : index
    %c0_17 = arith.constant 0 : index
    %c0_18 = arith.constant 0 : index
    %15 = vector.load %arg3[%c2, %c0_17, %c0_18] : memref<27x8x8xf32, #tpu.memory_space<vmem>>, vector<1x8x8xf32>
    %16 = vector.shape_cast %15 : vector<1x8x8xf32> to vector<8x8xf32>
    %c0_19 = arith.constant 0 : index
    %c2_20 = arith.constant 2 : index
    %17 = vector.load %arg6[%c0_19, %c2_20] : memref<8x768xf32, #tpu.memory_space<vmem>>, vector<8x512xf32>
    %cst_21 = arith.constant dense<0.000000e+00> : vector<8x512xf32>
    %18 = tpu.matmul %16, %17, %cst_21 {dimension_numbers = #tpu.dot_dimension_numbers<[1], [0], [0], [1], [0, 0, 1, 1], [], []>} : vector<8x8xf32>, vector<8x512xf32>, vector<8x512xf32> -> vector<8x512xf32>
    %19 = arith.addf %14, %18 : vector<8x512xf32>
    %c3 = arith.constant 3 : index
    %c0_22 = arith.constant 0 : index
    %c0_23 = arith.constant 0 : index
    %20 = vector.load %arg3[%c3, %c0_22, %c0_23] : memref<27x8x8xf32, #tpu.memory_space<vmem>>, vector<1x8x8xf32>
    %21 = vector.shape_cast %20 : vector<1x8x8xf32> to vector<8x8xf32>
    %c0_24 = arith.constant 0 : index
    %c8 = arith.constant 8 : index
    %22 = vector.load %arg6[%c0_24, %c8] : memref<8x768xf32, #tpu.memory_space<vmem>>, vector<8x512xf32>
    %cst_25 = arith.constant dense<0.000000e+00> : vector<8x512xf32>
    %23 = tpu.matmul %21, %22, %cst_25 {dimension_numbers = #tpu.dot_dimension_numbers<[1], [0], [0], [1], [0, 0, 1, 1], [], []>} : vector<8x8xf32>, vector<8x512xf32>, vector<8x512xf32> -> vector<8x512xf32>
    %24 = arith.addf %19, %23 : vector<8x512xf32>
    %c4 = arith.constant 4 : index
    %c0_26 = arith.constant 0 : index
    %c0_27 = arith.constant 0 : index
    %25 = vector.load %arg3[%c4, %c0_26, %c0_27] : memref<27x8x8xf32, #tpu.memory_space<vmem>>, vector<1x8x8xf32>
    %26 = vector.shape_cast %25 : vector<1x8x8xf32> to vector<8x8xf32>
    %c0_28 = arith.constant 0 : index
    %c9 = arith.constant 9 : index
    %27 = vector.load %arg6[%c0_28, %c9] : memref<8x768xf32, #tpu.memory_space<vmem>>, vector<8x512xf32>
    %cst_29 = arith.constant dense<0.000000e+00> : vector<8x512xf32>
    %28 = tpu.matmul %26, %27, %cst_29 {dimension_numbers = #tpu.dot_dimension_numbers<[1], [0], [0], [1], [0, 0, 1, 1], [], []>} : vector<8x8xf32>, vector<8x512xf32>, vector<8x512xf32> -> vector<8x512xf32>
    %29 = arith.addf %24, %28 : vector<8x512xf32>
    %c5 = arith.constant 5 : index
    %c0_30 = arith.constant 0 : index
    %c0_31 = arith.constant 0 : index
    %30 = vector.load %arg3[%c5, %c0_30, %c0_31] : memref<27x8x8xf32, #tpu.memory_space<vmem>>, vector<1x8x8xf32>
    %31 = vector.shape_cast %30 : vector<1x8x8xf32> to vector<8x8xf32>
    %c0_32 = arith.constant 0 : index
    %c10 = arith.constant 10 : index
    %32 = vector.load %arg6[%c0_32, %c10] : memref<8x768xf32, #tpu.memory_space<vmem>>, vector<8x512xf32>
    %cst_33 = arith.constant dense<0.000000e+00> : vector<8x512xf32>
    %33 = tpu.matmul %31, %32, %cst_33 {dimension_numbers = #tpu.dot_dimension_numbers<[1], [0], [0], [1], [0, 0, 1, 1], [], []>} : vector<8x8xf32>, vector<8x512xf32>, vector<8x512xf32> -> vector<8x512xf32>
    %34 = arith.addf %29, %33 : vector<8x512xf32>
    %c6 = arith.constant 6 : index
    %c0_34 = arith.constant 0 : index
    %c0_35 = arith.constant 0 : index
    %35 = vector.load %arg3[%c6, %c0_34, %c0_35] : memref<27x8x8xf32, #tpu.memory_space<vmem>>, vector<1x8x8xf32>
    %36 = vector.shape_cast %35 : vector<1x8x8xf32> to vector<8x8xf32>
    %c0_36 = arith.constant 0 : index
    %c16 = arith.constant 16 : index
    %37 = vector.load %arg6[%c0_36, %c16] : memref<8x768xf32, #tpu.memory_space<vmem>>, vector<8x512xf32>
    %cst_37 = arith.constant dense<0.000000e+00> : vector<8x512xf32>
    %38 = tpu.matmul %36, %37, %cst_37 {dimension_numbers = #tpu.dot_dimension_numbers<[1], [0], [0], [1], [0, 0, 1, 1], [], []>} : vector<8x8xf32>, vector<8x512xf32>, vector<8x512xf32> -> vector<8x512xf32>
    %39 = arith.addf %34, %38 : vector<8x512xf32>
    %c7 = arith.constant 7 : index
    %c0_38 = arith.constant 0 : index
    %c0_39 = arith.constant 0 : index
    %40 = vector.load %arg3[%c7, %c0_38, %c0_39] : memref<27x8x8xf32, #tpu.memory_space<vmem>>, vector<1x8x8xf32>
    %41 = vector.shape_cast %40 : vector<1x8x8xf32> to vector<8x8xf32>
    %c0_40 = arith.constant 0 : index
    %c17 = arith.constant 17 : index
    %42 = vector.load %arg6[%c0_40, %c17] : memref<8x768xf32, #tpu.memory_space<vmem>>, vector<8x512xf32>
    %cst_41 = arith.constant dense<0.000000e+00> : vector<8x512xf32>
    %43 = tpu.matmul %41, %42, %cst_41 {dimension_numbers = #tpu.dot_dimension_numbers<[1], [0], [0], [1], [0, 0, 1, 1], [], []>} : vector<8x8xf32>, vector<8x512xf32>, vector<8x512xf32> -> vector<8x512xf32>
    %44 = arith.addf %39, %43 : vector<8x512xf32>
    %c8_42 = arith.constant 8 : index
    %c0_43 = arith.constant 0 : index
    %c0_44 = arith.constant 0 : index
    %45 = vector.load %arg3[%c8_42, %c0_43, %c0_44] : memref<27x8x8xf32, #tpu.memory_space<vmem>>, vector<1x8x8xf32>
    %46 = vector.shape_cast %45 : vector<1x8x8xf32> to vector<8x8xf32>
    %c0_45 = arith.constant 0 : index
    %c18 = arith.constant 18 : index
    %47 = vector.load %arg6[%c0_45, %c18] : memref<8x768xf32, #tpu.memory_space<vmem>>, vector<8x512xf32>
    %cst_46 = arith.constant dense<0.000000e+00> : vector<8x512xf32>
    %48 = tpu.matmul %46, %47, %cst_46 {dimension_numbers = #tpu.dot_dimension_numbers<[1], [0], [0], [1], [0, 0, 1, 1], [], []>} : vector<8x8xf32>, vector<8x512xf32>, vector<8x512xf32> -> vector<8x512xf32>
    %49 = arith.addf %44, %48 : vector<8x512xf32>
    %c9_47 = arith.constant 9 : index
    %c0_48 = arith.constant 0 : index
    %c0_49 = arith.constant 0 : index
    %50 = vector.load %arg3[%c9_47, %c0_48, %c0_49] : memref<27x8x8xf32, #tpu.memory_space<vmem>>, vector<1x8x8xf32>
    %51 = vector.shape_cast %50 : vector<1x8x8xf32> to vector<8x8xf32>
    %c0_50 = arith.constant 0 : index
    %c64 = arith.constant 64 : index
    %52 = vector.load %arg6[%c0_50, %c64] : memref<8x768xf32, #tpu.memory_space<vmem>>, vector<8x512xf32>
    %cst_51 = arith.constant dense<0.000000e+00> : vector<8x512xf32>
    %53 = tpu.matmul %51, %52, %cst_51 {dimension_numbers = #tpu.dot_dimension_numbers<[1], [0], [0], [1], [0, 0, 1, 1], [], []>} : vector<8x8xf32>, vector<8x512xf32>, vector<8x512xf32> -> vector<8x512xf32>
    %54 = arith.addf %49, %53 : vector<8x512xf32>
    %c10_52 = arith.constant 10 : index
    %c0_53 = arith.constant 0 : index
    %c0_54 = arith.constant 0 : index
    %55 = vector.load %arg3[%c10_52, %c0_53, %c0_54] : memref<27x8x8xf32, #tpu.memory_space<vmem>>, vector<1x8x8xf32>
    %56 = vector.shape_cast %55 : vector<1x8x8xf32> to vector<8x8xf32>
    %c0_55 = arith.constant 0 : index
    %c65 = arith.constant 65 : index
    %57 = vector.load %arg6[%c0_55, %c65] : memref<8x768xf32, #tpu.memory_space<vmem>>, vector<8x512xf32>
    %cst_56 = arith.constant dense<0.000000e+00> : vector<8x512xf32>
    %58 = tpu.matmul %56, %57, %cst_56 {dimension_numbers = #tpu.dot_dimension_numbers<[1], [0], [0], [1], [0, 0, 1, 1], [], []>} : vector<8x8xf32>, vector<8x512xf32>, vector<8x512xf32> -> vector<8x512xf32>
    %59 = arith.addf %54, %58 : vector<8x512xf32>
    %c11 = arith.constant 11 : index
    %c0_57 = arith.constant 0 : index
    %c0_58 = arith.constant 0 : index
    %60 = vector.load %arg3[%c11, %c0_57, %c0_58] : memref<27x8x8xf32, #tpu.memory_space<vmem>>, vector<1x8x8xf32>
    %61 = vector.shape_cast %60 : vector<1x8x8xf32> to vector<8x8xf32>
    %c0_59 = arith.constant 0 : index
    %c66 = arith.constant 66 : index
    %62 = vector.load %arg6[%c0_59, %c66] : memref<8x768xf32, #tpu.memory_space<vmem>>, vector<8x512xf32>
    %cst_60 = arith.constant dense<0.000000e+00> : vector<8x512xf32>
    %63 = tpu.matmul %61, %62, %cst_60 {dimension_numbers = #tpu.dot_dimension_numbers<[1], [0], [0], [1], [0, 0, 1, 1], [], []>} : vector<8x8xf32>, vector<8x512xf32>, vector<8x512xf32> -> vector<8x512xf32>
    %64 = arith.addf %59, %63 : vector<8x512xf32>
    %c12 = arith.constant 12 : index
    %c0_61 = arith.constant 0 : index
    %c0_62 = arith.constant 0 : index
    %65 = vector.load %arg3[%c12, %c0_61, %c0_62] : memref<27x8x8xf32, #tpu.memory_space<vmem>>, vector<1x8x8xf32>
    %66 = vector.shape_cast %65 : vector<1x8x8xf32> to vector<8x8xf32>
    %c0_63 = arith.constant 0 : index
    %c72 = arith.constant 72 : index
    %67 = vector.load %arg6[%c0_63, %c72] : memref<8x768xf32, #tpu.memory_space<vmem>>, vector<8x512xf32>
    %cst_64 = arith.constant dense<0.000000e+00> : vector<8x512xf32>
    %68 = tpu.matmul %66, %67, %cst_64 {dimension_numbers = #tpu.dot_dimension_numbers<[1], [0], [0], [1], [0, 0, 1, 1], [], []>} : vector<8x8xf32>, vector<8x512xf32>, vector<8x512xf32> -> vector<8x512xf32>
    %69 = arith.addf %64, %68 : vector<8x512xf32>
    %c13 = arith.constant 13 : index
    %c0_65 = arith.constant 0 : index
    %c0_66 = arith.constant 0 : index
    %70 = vector.load %arg3[%c13, %c0_65, %c0_66] : memref<27x8x8xf32, #tpu.memory_space<vmem>>, vector<1x8x8xf32>
    %71 = vector.shape_cast %70 : vector<1x8x8xf32> to vector<8x8xf32>
    %c0_67 = arith.constant 0 : index
    %c73 = arith.constant 73 : index
    %72 = vector.load %arg6[%c0_67, %c73] : memref<8x768xf32, #tpu.memory_space<vmem>>, vector<8x512xf32>
    %cst_68 = arith.constant dense<0.000000e+00> : vector<8x512xf32>
    %73 = tpu.matmul %71, %72, %cst_68 {dimension_numbers = #tpu.dot_dimension_numbers<[1], [0], [0], [1], [0, 0, 1, 1], [], []>} : vector<8x8xf32>, vector<8x512xf32>, vector<8x512xf32> -> vector<8x512xf32>
    %74 = arith.addf %69, %73 : vector<8x512xf32>
    %c14 = arith.constant 14 : index
    %c0_69 = arith.constant 0 : index
    %c0_70 = arith.constant 0 : index
    %75 = vector.load %arg3[%c14, %c0_69, %c0_70] : memref<27x8x8xf32, #tpu.memory_space<vmem>>, vector<1x8x8xf32>
    %76 = vector.shape_cast %75 : vector<1x8x8xf32> to vector<8x8xf32>
    %c0_71 = arith.constant 0 : index
    %c74 = arith.constant 74 : index
    %77 = vector.load %arg6[%c0_71, %c74] : memref<8x768xf32, #tpu.memory_space<vmem>>, vector<8x512xf32>
    %cst_72 = arith.constant dense<0.000000e+00> : vector<8x512xf32>
    %78 = tpu.matmul %76, %77, %cst_72 {dimension_numbers = #tpu.dot_dimension_numbers<[1], [0], [0], [1], [0, 0, 1, 1], [], []>} : vector<8x8xf32>, vector<8x512xf32>, vector<8x512xf32> -> vector<8x512xf32>
    %79 = arith.addf %74, %78 : vector<8x512xf32>
    %c15 = arith.constant 15 : index
    %c0_73 = arith.constant 0 : index
    %c0_74 = arith.constant 0 : index
    %80 = vector.load %arg3[%c15, %c0_73, %c0_74] : memref<27x8x8xf32, #tpu.memory_space<vmem>>, vector<1x8x8xf32>
    %81 = vector.shape_cast %80 : vector<1x8x8xf32> to vector<8x8xf32>
    %c0_75 = arith.constant 0 : index
    %c80 = arith.constant 80 : index
    %82 = vector.load %arg6[%c0_75, %c80] : memref<8x768xf32, #tpu.memory_space<vmem>>, vector<8x512xf32>
    %cst_76 = arith.constant dense<0.000000e+00> : vector<8x512xf32>
    %83 = tpu.matmul %81, %82, %cst_76 {dimension_numbers = #tpu.dot_dimension_numbers<[1], [0], [0], [1], [0, 0, 1, 1], [], []>} : vector<8x8xf32>, vector<8x512xf32>, vector<8x512xf32> -> vector<8x512xf32>
    %84 = arith.addf %79, %83 : vector<8x512xf32>
    %c16_77 = arith.constant 16 : index
    %c0_78 = arith.constant 0 : index
    %c0_79 = arith.constant 0 : index
    %85 = vector.load %arg3[%c16_77, %c0_78, %c0_79] : memref<27x8x8xf32, #tpu.memory_space<vmem>>, vector<1x8x8xf32>
    %86 = vector.shape_cast %85 : vector<1x8x8xf32> to vector<8x8xf32>
    %c0_80 = arith.constant 0 : index
    %c81 = arith.constant 81 : index
    %87 = vector.load %arg6[%c0_80, %c81] : memref<8x768xf32, #tpu.memory_space<vmem>>, vector<8x512xf32>
    %cst_81 = arith.constant dense<0.000000e+00> : vector<8x512xf32>
    %88 = tpu.matmul %86, %87, %cst_81 {dimension_numbers = #tpu.dot_dimension_numbers<[1], [0], [0], [1], [0, 0, 1, 1], [], []>} : vector<8x8xf32>, vector<8x512xf32>, vector<8x512xf32> -> vector<8x512xf32>
    %89 = arith.addf %84, %88 : vector<8x512xf32>
    %c17_82 = arith.constant 17 : index
    %c0_83 = arith.constant 0 : index
    %c0_84 = arith.constant 0 : index
    %90 = vector.load %arg3[%c17_82, %c0_83, %c0_84] : memref<27x8x8xf32, #tpu.memory_space<vmem>>, vector<1x8x8xf32>
    %91 = vector.shape_cast %90 : vector<1x8x8xf32> to vector<8x8xf32>
    %c0_85 = arith.constant 0 : index
    %c82 = arith.constant 82 : index
    %92 = vector.load %arg6[%c0_85, %c82] : memref<8x768xf32, #tpu.memory_space<vmem>>, vector<8x512xf32>
    %cst_86 = arith.constant dense<0.000000e+00> : vector<8x512xf32>
    %93 = tpu.matmul %91, %92, %cst_86 {dimension_numbers = #tpu.dot_dimension_numbers<[1], [0], [0], [1], [0, 0, 1, 1], [], []>} : vector<8x8xf32>, vector<8x512xf32>, vector<8x512xf32> -> vector<8x512xf32>
    %94 = arith.addf %89, %93 : vector<8x512xf32>
    %c18_87 = arith.constant 18 : index
    %c0_88 = arith.constant 0 : index
    %c0_89 = arith.constant 0 : index
    %95 = vector.load %arg3[%c18_87, %c0_88, %c0_89] : memref<27x8x8xf32, #tpu.memory_space<vmem>>, vector<1x8x8xf32>
    %96 = vector.shape_cast %95 : vector<1x8x8xf32> to vector<8x8xf32>
    %c0_90 = arith.constant 0 : index
    %c128 = arith.constant 128 : index
    %97 = vector.load %arg6[%c0_90, %c128] : memref<8x768xf32, #tpu.memory_space<vmem>>, vector<8x512xf32>
    %cst_91 = arith.constant dense<0.000000e+00> : vector<8x512xf32>
    %98 = tpu.matmul %96, %97, %cst_91 {dimension_numbers = #tpu.dot_dimension_numbers<[1], [0], [0], [1], [0, 0, 1, 1], [], []>} : vector<8x8xf32>, vector<8x512xf32>, vector<8x512xf32> -> vector<8x512xf32>
    %99 = arith.addf %94, %98 : vector<8x512xf32>
    %c19 = arith.constant 19 : index
    %c0_92 = arith.constant 0 : index
    %c0_93 = arith.constant 0 : index
    %100 = vector.load %arg3[%c19, %c0_92, %c0_93] : memref<27x8x8xf32, #tpu.memory_space<vmem>>, vector<1x8x8xf32>
    %101 = vector.shape_cast %100 : vector<1x8x8xf32> to vector<8x8xf32>
    %c0_94 = arith.constant 0 : index
    %c129 = arith.constant 129 : index
    %102 = vector.load %arg6[%c0_94, %c129] : memref<8x768xf32, #tpu.memory_space<vmem>>, vector<8x512xf32>
    %cst_95 = arith.constant dense<0.000000e+00> : vector<8x512xf32>
    %103 = tpu.matmul %101, %102, %cst_95 {dimension_numbers = #tpu.dot_dimension_numbers<[1], [0], [0], [1], [0, 0, 1, 1], [], []>} : vector<8x8xf32>, vector<8x512xf32>, vector<8x512xf32> -> vector<8x512xf32>
    %104 = arith.addf %99, %103 : vector<8x512xf32>
    %c20 = arith.constant 20 : index
    %c0_96 = arith.constant 0 : index
    %c0_97 = arith.constant 0 : index
    %105 = vector.load %arg3[%c20, %c0_96, %c0_97] : memref<27x8x8xf32, #tpu.memory_space<vmem>>, vector<1x8x8xf32>
    %106 = vector.shape_cast %105 : vector<1x8x8xf32> to vector<8x8xf32>
    %c0_98 = arith.constant 0 : index
    %c130 = arith.constant 130 : index
    %107 = vector.load %arg6[%c0_98, %c130] : memref<8x768xf32, #tpu.memory_space<vmem>>, vector<8x512xf32>
    %cst_99 = arith.constant dense<0.000000e+00> : vector<8x512xf32>
    %108 = tpu.matmul %106, %107, %cst_99 {dimension_numbers = #tpu.dot_dimension_numbers<[1], [0], [0], [1], [0, 0, 1, 1], [], []>} : vector<8x8xf32>, vector<8x512xf32>, vector<8x512xf32> -> vector<8x512xf32>
    %109 = arith.addf %104, %108 : vector<8x512xf32>
    %c21 = arith.constant 21 : index
    %c0_100 = arith.constant 0 : index
    %c0_101 = arith.constant 0 : index
    %110 = vector.load %arg3[%c21, %c0_100, %c0_101] : memref<27x8x8xf32, #tpu.memory_space<vmem>>, vector<1x8x8xf32>
    %111 = vector.shape_cast %110 : vector<1x8x8xf32> to vector<8x8xf32>
    %c0_102 = arith.constant 0 : index
    %c136 = arith.constant 136 : index
    %112 = vector.load %arg6[%c0_102, %c136] : memref<8x768xf32, #tpu.memory_space<vmem>>, vector<8x512xf32>
    %cst_103 = arith.constant dense<0.000000e+00> : vector<8x512xf32>
    %113 = tpu.matmul %111, %112, %cst_103 {dimension_numbers = #tpu.dot_dimension_numbers<[1], [0], [0], [1], [0, 0, 1, 1], [], []>} : vector<8x8xf32>, vector<8x512xf32>, vector<8x512xf32> -> vector<8x512xf32>
    %114 = arith.addf %109, %113 : vector<8x512xf32>
    %c22 = arith.constant 22 : index
    %c0_104 = arith.constant 0 : index
    %c0_105 = arith.constant 0 : index
    %115 = vector.load %arg3[%c22, %c0_104, %c0_105] : memref<27x8x8xf32, #tpu.memory_space<vmem>>, vector<1x8x8xf32>
    %116 = vector.shape_cast %115 : vector<1x8x8xf32> to vector<8x8xf32>
    %c0_106 = arith.constant 0 : index
    %c137 = arith.constant 137 : index
    %117 = vector.load %arg6[%c0_106, %c137] : memref<8x768xf32, #tpu.memory_space<vmem>>, vector<8x512xf32>
    %cst_107 = arith.constant dense<0.000000e+00> : vector<8x512xf32>
    %118 = tpu.matmul %116, %117, %cst_107 {dimension_numbers = #tpu.dot_dimension_numbers<[1], [0], [0], [1], [0, 0, 1, 1], [], []>} : vector<8x8xf32>, vector<8x512xf32>, vector<8x512xf32> -> vector<8x512xf32>
    %119 = arith.addf %114, %118 : vector<8x512xf32>
    %c23 = arith.constant 23 : index
    %c0_108 = arith.constant 0 : index
    %c0_109 = arith.constant 0 : index
    %120 = vector.load %arg3[%c23, %c0_108, %c0_109] : memref<27x8x8xf32, #tpu.memory_space<vmem>>, vector<1x8x8xf32>
    %121 = vector.shape_cast %120 : vector<1x8x8xf32> to vector<8x8xf32>
    %c0_110 = arith.constant 0 : index
    %c138 = arith.constant 138 : index
    %122 = vector.load %arg6[%c0_110, %c138] : memref<8x768xf32, #tpu.memory_space<vmem>>, vector<8x512xf32>
    %cst_111 = arith.constant dense<0.000000e+00> : vector<8x512xf32>
    %123 = tpu.matmul %121, %122, %cst_111 {dimension_numbers = #tpu.dot_dimension_numbers<[1], [0], [0], [1], [0, 0, 1, 1], [], []>} : vector<8x8xf32>, vector<8x512xf32>, vector<8x512xf32> -> vector<8x512xf32>
    %124 = arith.addf %119, %123 : vector<8x512xf32>
    %c24 = arith.constant 24 : index
    %c0_112 = arith.constant 0 : index
    %c0_113 = arith.constant 0 : index
    %125 = vector.load %arg3[%c24, %c0_112, %c0_113] : memref<27x8x8xf32, #tpu.memory_space<vmem>>, vector<1x8x8xf32>
    %126 = vector.shape_cast %125 : vector<1x8x8xf32> to vector<8x8xf32>
    %c0_114 = arith.constant 0 : index
    %c144 = arith.constant 144 : index
    %127 = vector.load %arg6[%c0_114, %c144] : memref<8x768xf32, #tpu.memory_space<vmem>>, vector<8x512xf32>
    %cst_115 = arith.constant dense<0.000000e+00> : vector<8x512xf32>
    %128 = tpu.matmul %126, %127, %cst_115 {dimension_numbers = #tpu.dot_dimension_numbers<[1], [0], [0], [1], [0, 0, 1, 1], [], []>} : vector<8x8xf32>, vector<8x512xf32>, vector<8x512xf32> -> vector<8x512xf32>
    %129 = arith.addf %124, %128 : vector<8x512xf32>
    %c25 = arith.constant 25 : index
    %c0_116 = arith.constant 0 : index
    %c0_117 = arith.constant 0 : index
    %130 = vector.load %arg3[%c25, %c0_116, %c0_117] : memref<27x8x8xf32, #tpu.memory_space<vmem>>, vector<1x8x8xf32>
    %131 = vector.shape_cast %130 : vector<1x8x8xf32> to vector<8x8xf32>
    %c0_118 = arith.constant 0 : index
    %c145 = arith.constant 145 : index
    %132 = vector.load %arg6[%c0_118, %c145] : memref<8x768xf32, #tpu.memory_space<vmem>>, vector<8x512xf32>
    %cst_119 = arith.constant dense<0.000000e+00> : vector<8x512xf32>
    %133 = tpu.matmul %131, %132, %cst_119 {dimension_numbers = #tpu.dot_dimension_numbers<[1], [0], [0], [1], [0, 0, 1, 1], [], []>} : vector<8x8xf32>, vector<8x512xf32>, vector<8x512xf32> -> vector<8x512xf32>
    %134 = arith.addf %129, %133 : vector<8x512xf32>
    %c26 = arith.constant 26 : index
    %c0_120 = arith.constant 0 : index
    %c0_121 = arith.constant 0 : index
    %135 = vector.load %arg3[%c26, %c0_120, %c0_121] : memref<27x8x8xf32, #tpu.memory_space<vmem>>, vector<1x8x8xf32>
    %136 = vector.shape_cast %135 : vector<1x8x8xf32> to vector<8x8xf32>
    %c0_122 = arith.constant 0 : index
    %c146 = arith.constant 146 : index
    %137 = vector.load %arg6[%c0_122, %c146] : memref<8x768xf32, #tpu.memory_space<vmem>>, vector<8x512xf32>
    %cst_123 = arith.constant dense<0.000000e+00> : vector<8x512xf32>
    %138 = tpu.matmul %136, %137, %cst_123 {dimension_numbers = #tpu.dot_dimension_numbers<[1], [0], [0], [1], [0, 0, 1, 1], [], []>} : vector<8x8xf32>, vector<8x512xf32>, vector<8x512xf32> -> vector<8x512xf32>
    %139 = arith.addf %134, %138 : vector<8x512xf32>
    %c0_124 = arith.constant 0 : index
    %c0_125 = arith.constant 0 : index
    %140 = vector.load %arg4[%c0_124, %c0_125] : memref<8x1xf32, #tpu.memory_space<vmem>>, vector<8x1xf32>
    %141 = vector.broadcast %140 : vector<8x1xf32> to vector<8x512xf32>
    %142 = arith.addf %139, %141 : vector<8x512xf32>
    %c0_126 = arith.constant 0 : index
    %c0_127 = arith.constant 0 : index
    %143 = vector.load %arg5[%c0_126, %c0_127] : memref<8x512xf32, #tpu.memory_space<vmem>>, vector<8x512xf32>
    tpu.vector_store %arg5[%c0_126, %c0_127], %142 {strides = array<i32>} : memref<8x512xf32, #tpu.memory_space<vmem>>, vector<8x512xf32>,
    return
  }
  func.func @transform_0(%arg0: i32) -> (i32, i32) {
    %c0_i32 = arith.constant 0 : i32
    %c0_i32_0 = arith.constant 0 : i32
    return %c0_i32, %arg0 : i32, i32
  }
  func.func @transform_1(%arg0: i32) -> (i32, i32) {
    %c1_i32 = arith.constant 1 : i32
    %0 = arith.addi %arg0, %c1_i32 : i32
    %c2_i32 = arith.constant 2 : i32
    %1 = arith.muli %0, %c2_i32 : i32
    %c0_i32 = arith.constant 0 : i32
    %c0_i32_0 = arith.constant 0 : i32
    return %c0_i32, %1 : i32, i32
  }
  func.func @transform_2(%arg0: i32) -> (i32, i32, i32) {
    %c0_i32 = arith.constant 0 : i32
    %c0_i32_0 = arith.constant 0 : i32
    %c0_i32_1 = arith.constant 0 : i32
    %c0_i32_2 = arith.constant 0 : i32
    return %c0_i32, %c0_i32_0, %c0_i32_1 : i32, i32, i32
  }
  func.func @transform_3(%arg0: i32) -> (i32, i32) {
    %c0_i32 = arith.constant 0 : i32
    %c0_i32_0 = arith.constant 0 : i32
    %c0_i32_1 = arith.constant 0 : i32
    return %c0_i32, %c0_i32_0 : i32, i32
  }
  func.func @transform_4(%arg0: i32) -> (i32, i32) {
    %c0_i32 = arith.constant 0 : i32
    %c0_i32_0 = arith.constant 0 : i32
    return %c0_i32, %arg0 : i32, i32
  }
}

</mosaic_0001>

<llo_original>
// kernel: dmsr_conv3d.1
$region0: #{dmsr_conv3d.1}
  #allocation0 [shape = 'u32[]', space=smem, size = 0x4, offset = 0x4, fixed_abs, tag = 'smem constant byte address 0x4 - core index']
  #allocation1 [shape = 'u32[144,128]{1,0:T(1,128)}', space=vmem, size = 0x12000, scoped, tag = 'internal scratch']
  #allocation2 [shape = 'f32[8,768]{1,0:T(8,128)}', space=vmem, size = 0x6000, scoped, tag = 'scratch operand']
  %s0 = inlined_call_operand.vmem [shape: f32[8,1280], index: 0, kind: input, shape index: {}, may-alias: {0,1}]
  %s1 = inlined_call_operand.vmem [shape: f32[8,1280], index: 1, kind: input, shape index: {}, may-alias: {0,1}]
  %s2 = inlined_call_operand.vmem [shape: f32[27,8,8], index: 2, kind: input, shape index: {}]
  %s3 = inlined_call_operand.vmem [shape: f32[8,1], index: 3, kind: input, shape index: {}]
  %s4 = inlined_call_operand.vmem [shape: f32[8,1024], index: 4, kind: output, shape index: {}]
  %s5 = sld [smem:[#allocation0]]
  $region49: #{dmsr_conv3d.1} parent=0
    _
  %s7 = ssub.s32 1, %s5
  %s8 = scalar_select 0, %s7, %s5
  loop: start=0, step=1, limit=4
  $region2: #{dmsr_conv3d.1} parent=0 // loop_pre_header
    _
  $region3: #{dmsr_conv3d.1} parent=0 // loop_header
    %s10 = sphi 0, %s14
    %p11 = scmp.ge.s32.totalorder %s10, 4
    %s20 = sphi 0, %s22
    %s23 = sphi 0, %s20
    %s24 = sphi 0, %s23
    %s40 = sphi 0, %s24
    %s50 = sphi 0, %s52
    %s53 = sphi 0, %s50
    %s54 = sphi 0, %s53
    %s70 = sphi 0, %s54
    %s74 = sphi 0, %s74
    %s76 = sphi 0, %s74
    %s77 = sphi 0, %s76
    %s91 = sphi 0, %s77
    %s95 = sphi 0, %s95
    %s97 = sphi 0, %s95
    %s98 = sphi 0, %s97
    %s112 = sphi 0, %s98
    %s118 = sphi 0, %s120
    %s121 = sphi 0, %s118
    %s122 = sphi 0, %s121
    %s138 = sphi 0, %s122
  $region4: #{dmsr_conv3d.1} parent=0 // loop_header_branch
    %13 = sbr.rel (%p11) target = $region8
  $region5: #{dmsr_conv3d.1} parent=0 // loop_body
    %s15 = ssub.s32 %s10, 1
    %s16 = ssub.s32 %s10, 2
    %s17 = sadd.s32 %s10, 1
    %s18 = ssub.s32 %s10, %s17
    %p19 = scmp.eq.s32.totalorder %s18, 0
    %s21 = sadd.s32 %s20, 1
    %s22 = scalar_select %p19, %s20, %s21
    %p25 = pneg %p19
    %p26 = scmp.eq.s32.totalorder %s10, 1
    %p27 = por %p25, %p26
    %p28 = scmp.ne.s32.totalorder %s20, %s23
    %p29 = scmp.eq.s32.totalorder %s10, 0
    %p30 = por %p28, %p29
    %p31 = scmp.ne.s32.totalorder %s20, %s23
    %p32 = scmp.eq.s32.totalorder %s15, 1
    %p33 = por %p31, %p32
    %p34 = scmp.ne.s32.totalorder %s23, %s24
    %p35 = scmp.eq.s32.totalorder %s15, 0
    %p36 = por %p34, %p35
    %p37 = scmp.ne.s32.totalorder %s23, %s24
    %p38 = scmp.eq.s32.totalorder %s16, 1
    %p39 = por %p37, %p38
    %p41 = scmp.ne.s32.totalorder %s24, %s40
    %p42 = scmp.eq.s32.totalorder %s16, 0
    %p43 = por %p41, %p42
    %s44 = sadd.s32 %s10, 1
    %s45 = smul.u32 %s44, 2
    %s46 = sadd.s32 %s17, 1
    %s47 = smul.u32 %s46, 2
    %s48 = ssub.s32 %s45, %s47
    %p49 = scmp.eq.s32.totalorder %s48, 0
    %s51 = sadd.s32 %s50, 1
    %s52 = scalar_select %p49, %s50, %s51
    %p55 = pneg %p49
    %p56 = scmp.eq.s32.totalorder %s10, 1
    %p57 = por %p55, %p56
    %p58 = scmp.ne.s32.totalorder %s50, %s53
    %p59 = scmp.eq.s32.totalorder %s10, 0
    %p60 = por %p58, %p59
    %p61 = scmp.ne.s32.totalorder %s50, %s53
    %p62 = scmp.eq.s32.totalorder %s15, 1
    %p63 = por %p61, %p62
    %p64 = scmp.ne.s32.totalorder %s53, %s54
    %p65 = scmp.eq.s32.totalorder %s15, 0
    %p66 = por %p64, %p65
    %p67 = scmp.ne.s32.totalorder %s53, %s54
    %p68 = scmp.eq.s32.totalorder %s16, 1
    %p69 = por %p67, %p68
    %p71 = scmp.ne.s32.totalorder %s54, %s70
    %p72 = scmp.eq.s32.totalorder %s16, 0
    %p73 = por %p71, %p72
    %s75 = sadd.s32 %s74, 1
    %p78 = scmp.eq.s32.totalorder %s10, 1
    %p79 = scmp.ne.s32.totalorder %s74, %s76
    %p80 = scmp.eq.s32.totalorder %s10, 0
    %p81 = por %p79, %p80
    %p82 = scmp.ne.s32.totalorder %s74, %s76
    %p83 = scmp.eq.s32.totalorder %s15, 1
    %p84 = por %p82, %p83
    %p85 = scmp.ne.s32.totalorder %s76, %s77
    %p86 = scmp.eq.s32.totalorder %s15, 0
    %p87 = por %p85, %p86
    %p88 = scmp.ne.s32.totalorder %s76, %s77
    %p89 = scmp.eq.s32.totalorder %s16, 1
    %p90 = por %p88, %p89
    %p92 = scmp.ne.s32.totalorder %s77, %s91
    %p93 = scmp.eq.s32.totalorder %s16, 0
    %p94 = por %p92, %p93
    %s96 = sadd.s32 %s95, 1
    %p99 = scmp.eq.s32.totalorder %s10, 1
    %p100 = scmp.ne.s32.totalorder %s95, %s97
    %p101 = scmp.eq.s32.totalorder %s10, 0
    %p102 = por %p100, %p101
    %p103 = scmp.ne.s32.totalorder %s95, %s97
    %p104 = scmp.eq.s32.totalorder %s15, 1
    %p105 = por %p103, %p104
    %p106 = scmp.ne.s32.totalorder %s97, %s98
    %p107 = scmp.eq.s32.totalorder %s15, 0
    %p108 = por %p106, %p107
    %p109 = scmp.ne.s32.totalorder %s97, %s98
    %p110 = scmp.eq.s32.totalorder %s16, 1
    %p111 = por %p109, %p110
    %p113 = scmp.ne.s32.totalorder %s98, %s112
    %p114 = scmp.eq.s32.totalorder %s16, 0
    %p115 = por %p113, %p114
    %s116 = ssub.s32 %s10, %s17
    %p117 = scmp.eq.s32.totalorder %s116, 0
    %s119 = sadd.s32 %s118, 1
    %s120 = scalar_select %p117, %s118, %s119
    %p123 = pneg %p117
    %p124 = scmp.eq.s32.totalorder %s10, 1
    %p125 = por %p123, %p124
    %p126 = scmp.ne.s32.totalorder %s118, %s121
    %p127 = scmp.eq.s32.totalorder %s10, 0
    %p128 = por %p126, %p127
    %p129 = scmp.ne.s32.totalorder %s118, %s121
    %p130 = scmp.eq.s32.totalorder %s15, 1
    %p131 = por %p129, %p130
    %p132 = scmp.ne.s32.totalorder %s121, %s122
    %p133 = scmp.eq.s32.totalorder %s15, 0
    %p134 = por %p132, %p133
    %p135 = scmp.ne.s32.totalorder %s121, %s122
    %p136 = scmp.eq.s32.totalorder %s16, 1
    %p137 = por %p135, %p136
    %p139 = scmp.ne.s32.totalorder %s122, %s138
    %p140 = scmp.eq.s32.totalorder %s16, 0
    %p141 = por %p139, %p140
    %p142 = scmp.le.s32.totalorder 1, %s10
    %p143 = scmp.lt.s32.totalorder %s10, 3
    %p144 = pnand %p142, %p143
    %p145 = pneg %p144
    // Predicated region
    $region9: #{dmsr_conv3d.1} parent=5 // pred_check
      _
    $region10: #{dmsr_conv3d.1} parent=5 // pred_check_branch
      %147 = sbr.rel (%p144) target = $region12
    $region11: #{dmsr_conv3d.1} parent=5 // pred_region
      %s148 = ssub.s32 %s10, 1
      // Predicated region
      $region13: #{dmsr_conv3d.1} parent=11 // pred_check
        %p149 = pneg %p87
      $region14: #{dmsr_conv3d.1} parent=11 // pred_check_branch
        %151 = sbr.rel (%p149) target = $region16
      $region15: #{dmsr_conv3d.1} parent=11 // pred_region
        _
      $region16: #{dmsr_conv3d.1} parent=11 // pred_fallthru
        _
      // Predicated region
      $region17: #{dmsr_conv3d.1} parent=11 // pred_check
        %p152 = pneg %p108
      $region18: #{dmsr_conv3d.1} parent=11 // pred_check_branch
        %154 = sbr.rel (%p152) target = $region20
      $region19: #{dmsr_conv3d.1} parent=11 // pred_region
        _
      $region20: #{dmsr_conv3d.1} parent=11 // pred_fallthru
        _
    $region12: #{dmsr_conv3d.1} parent=5 // pred_fallthru
      _
    %p155 = scmp.lt.s32.totalorder %s10, 2
    // Predicated region
    $region21: #{dmsr_conv3d.1} parent=5 // pred_check
      %p156 = pneg %p155
    $region22: #{dmsr_conv3d.1} parent=5 // pred_check_branch
      %158 = sbr.rel (%p156) target = $region24
    $region23: #{dmsr_conv3d.1} parent=5 // pred_region
      // Predicated region
      $region25: #{dmsr_conv3d.1} parent=23 // pred_check
        %p159 = pneg %p30
      $region26: #{dmsr_conv3d.1} parent=23 // pred_check_branch
        %161 = sbr.rel (%p159) target = $region28
      $region27: #{dmsr_conv3d.1} parent=23 // pred_region
        %s162 = smul.u32 4, %s10
        %s163 = ssub.s32 10, %s162
        %p164 = scmp.lt.s32.totalorder %s163, 4
        %s165 = scalar_select %p164, %s163, 4
        %s166 = smul.u32 128, %s165
        %p167 = scmp.lt.s32.totalorder %s162, 9
        %s168 = scalar_select %p167, %s162, 9
        %s169 = smul.addr %s168, 8
        %s170 = scalar_lea.vmem %s0, %s169
        %s171 = smul.u32 4, %s10
        %s172 = ssub.s32 10, %s171
        %p173 = scmp.lt.s32.totalorder %s172, 4
        %s174 = scalar_select %p173, %s172, 4
        %s175 = smul.u32 128, %s174
      $region28: #{dmsr_conv3d.1} parent=23 // pred_fallthru
        _
      // Predicated region
      $region29: #{dmsr_conv3d.1} parent=23 // pred_check
        %p176 = pneg %p60
      $region30: #{dmsr_conv3d.1} parent=23 // pred_check_branch
        %178 = sbr.rel (%p176) target = $region32
      $region31: #{dmsr_conv3d.1} parent=23 // pred_region
        %s179 = sadd.s32 %s10, 1
        %s180 = smul.u32 %s179, 2
        %s181 = smul.u32 2, %s180
        %p182 = scmp.lt.s32.totalorder %s181, 9
        %s183 = scalar_select %p182, %s181, 9
        %s184 = smul.addr %s183, 8
        %s185 = scalar_lea.vmem %s1, %s184
        %s186 = sadd.s32 %s10, 1
        %s187 = smul.u32 %s186, 2
        %s188 = smul.u32 2, %s187
      $region32: #{dmsr_conv3d.1} parent=23 // pred_fallthru
        _
    $region24: #{dmsr_conv3d.1} parent=5 // pred_fallthru
      _
    %p189 = scmp.le.s32.totalorder 1, %s10
    %p190 = scmp.lt.s32.totalorder %s10, 3
    %p191 = pnand %p189, %p190
    %p192 = pneg %p191
    // Predicated region
    $region33: #{dmsr_conv3d.1} parent=5 // pred_check
      _
    $region34: #{dmsr_conv3d.1} parent=5 // pred_check_branch
      %194 = sbr.rel (%p191) target = $region36
    $region35: #{dmsr_conv3d.1} parent=5 // pred_region
      %s195 = ssub.s32 %s10, 1
      %s196 = smul.u32 4, %s15
      %s197 = ssub.s32 10, %s196
      %p198 = scmp.lt.s32.totalorder %s197, 4
      %s199 = scalar_select %p198, %s197, 4
      %s200 = smul.u32 128, %s199
      %p201 = scmp.lt.s32.totalorder %s196, 9
      %s202 = scalar_select %p201, %s196, 9
      %s203 = smul.addr %s202, 8
      %s204 = scalar_lea.vmem %s0, %s203
      %p205 = pneg %p36
      %p206 = pneg %p33
      %s207 = sadd.s32 %s15, 1
      %s208 = smul.u32 %s207, 2
      %s209 = smul.u32 2, %s208
      %p210 = scmp.lt.s32.totalorder %s209, 9
      %s211 = scalar_select %p210, %s209, 9
      %s212 = smul.addr %s211, 8
      %s213 = scalar_lea.vmem %s1, %s212
      %p214 = pneg %p66
      %p215 = pneg %p63
      %p216 = pneg %p87
      %p217 = pneg %p84
      %p218 = pneg %p108
      %p219 = pneg %p105
      %p220 = pneg %p134
      %p221 = pneg %p131
      %s222 = smul.u32 4, %s15
      %p223 = scmp.lt.s32.totalorder %s222, 7
      %s224 = scalar_select %p223, %s222, 7
      %s225 = smul.addr %s224, 8
      %s226 = scalar_lea.vmem %s4, %s225
      %s227 = smul.u32 4, %s15
      %s228 = ssub.s32 10, %s227
      %p229 = scmp.lt.s32.totalorder %s228, 4
      %s230 = scalar_select %p229, %s228, 4
      %s231 = smul.u32 128, %s230
      %p232 = scmp.lt.s32.totalorder %s227, 9
      %s233 = scalar_select %p232, %s227, 9
      %s234 = smul.addr %s233, 8
      %s235 = scalar_lea.vmem %s0, %s234
      %s236 = smul.u32 4, %s15
      %s237 = ssub.s32 10, %s236
      %p238 = scmp.lt.s32.totalorder %s237, 4
      %s239 = scalar_select %p238, %s237, 4
      %s240 = smul.u32 128, %s239
      %s241 = sadd.s32 %s15, 1
      %s242 = smul.u32 %s241, 2
      %s243 = smul.u32 2, %s242
      %p244 = scmp.lt.s32.totalorder %s243, 9
      %s245 = scalar_select %p244, %s243, 9
      %s246 = smul.addr %s245, 8
      %s247 = scalar_lea.vmem %s1, %s246
      %s248 = sadd.s32 %s15, 1
      %s249 = smul.u32 %s248, 2
      %s250 = smul.u32 2, %s249
      %s251 = smul.u32 4, %s15
      %p252 = scmp.lt.s32.totalorder %s251, 7
      %s253 = scalar_select %p252, %s251, 7
      %s254 = smul.addr %s253, 8
      %s255 = scalar_lea.vmem %s4, %s254
      %s256 = smul.u32 4, %s15
      %v257 = vld [vmem:[%s235] sm:$0xff]
      %v258 = vld [vmem:[%s235 + $0x8] sm:$0xff]
      %v259 = vld [vmem:[%s235 + $0x10] sm:$0xff]
      %v260 = vld [vmem:[%s235 + $0x18] sm:$0xff]
      %261 = vst [vmem:[#allocation2] sm:$0xff] %v257
      %262 = vst [vmem:[#allocation2 + $0x8] sm:$0xff] %v258
      %263 = vst [vmem:[#allocation2 + $0x10] sm:$0xff] %v259
      %264 = vst [vmem:[#allocation2 + $0x18] sm:$0xff] %v260
      %v265 = vld [vmem:[%s247] sm:$0xff]
      %v266 = vld [vmem:[%s247 + $0x8] sm:$0xff]
      %267 = vst [vmem:[#allocation2 + $0x20] sm:$0xff] %v265
      %268 = vst [vmem:[#allocation2 + $0x28] sm:$0xff] %v266
      %v269 = vld [vmem:[%s2] sm:$0xff]
      %v270 = vld [vmem:[#allocation2] sm:$0xff]
      %v271 = vld [vmem:[#allocation2 + $0x8] sm:$0xff]
      %v272 = vld [vmem:[#allocation2 + $0x10] sm:$0xff]
      %v273 = vld [vmem:[#allocation2 + $0x18] sm:$0xff]
      %s274 = scalar_lea.vmem %s2, 8
      %v275 = vld [vmem:[%s274] sm:$0xff]
      %v276 = vld [vmem:[#allocation2 + $0x20] sm:$0xff]
      %282 = vrot.lane.b32.xlu0 %v270, 127
      %v283 = vpop.permute.xlu0 %282
      %284 = vrot.lane.b32.xlu0 %v271, 127
      %v285 = vpop.permute.xlu0 %284
      %286 = vrot.lane.b32.xlu0 %v272, 127
      %v287 = vpop.permute.xlu0 %286
      %288 = vrot.lane.b32.xlu0 %v273, 127
      %v289 = vpop.permute.xlu0 %288
      %290 = vrot.lane.b32.xlu0 %v276, 127
      %v291 = vpop.permute.xlu0 %290
      %vm292 = vcmask 1039360
      %v293 = vsel %vm292, %v283, %v285
      %v294 = vsel %vm292, %v285, %v287
      %v295 = vsel %vm292, %v287, %v289
      %v296 = vsel %vm292, %v289, %v291
      %vm301 = vcmask 64512
      %v303 = vsel %vm301, %v275, 0
      %305 = vmatprep.subr.mxu0 %v294
      %306 = vmatpush1.msra.mxu0 %v293
      %307 = vmatprep.subr.mxu0 0.0
      %308 = vmatpush1.msra.mxu0 0.0
      %309 = vmatprep.subr.mxu0 0.0
      %310 = vmatpush1.msra.mxu0 0.0
      %311 = vmatprep.subr.mxu0 0.0
      %312 = vmatpush1.msra.mxu0 0.0
      %313 = vmatprep.subr.mxu0 0.0
      %314 = vmatpush1.msra.mxu0 0.0
      %315 = vmatprep.subr.mxu0 0.0
      %316 = vmatpush1.msra.mxu0 0.0
      %317 = vmatprep.subr.mxu0 0.0
      %318 = vmatpush1.msra.mxu0 0.0
      %319 = vmatprep.subr.mxu0 0.0
      %320 = vmatpush1.msra.mxu0 0.0
      %321 = vmatprep.subr.mxu0 0.0
      %322 = vmatpush1.msra.mxu0 0.0
      %323 = vmatprep.subr.mxu0 0.0
      %324 = vmatpush1.msra.mxu0 0.0
      %325 = vmatprep.subr.mxu0 0.0
      %326 = vmatpush1.msra.mxu0 0.0
      %327 = vmatprep.subr.mxu0 0.0
      %328 = vmatpush1.msra.mxu0 0.0
      %329 = vmatprep.subr.mxu0 0.0
      %330 = vmatpush1.msra.mxu0 0.0
      %331 = vmatprep.subr.mxu0 0.0
      %332 = vmatpush1.msra.mxu0 0.0
      %333 = vmatprep.subr.mxu0 0.0
      %334 = vmatpush1.msra.mxu0 0.0
      %335 = vmatprep.subr.mxu0 0.0
      %336 = vmatpush1.msra.mxu0 0.0
      %337 = vmatprep.subr.mxu0 0.0
      %338 = vmatpush1.msra.mxu0 0.0
      %339 = vmatprep.subr.mxu0 0.0
      %340 = vmatpush1.msra.mxu0 0.0
      %341 = vmatprep.subr.mxu0 0.0
      %342 = vmatpush1.msra.mxu0 0.0
      %343 = vmatprep.subr.mxu0 0.0
      %344 = vmatpush1.msra.mxu0 0.0
      %345 = vmatprep.subr.mxu0 0.0
      %346 = vmatpush1.msra.mxu0 0.0
      %347 = vmatprep.subr.mxu0 0.0
      %348 = vmatpush1.msra.mxu0 0.0
      %349 = vmatprep.subr.mxu0 0.0
      %350 = vmatpush1.msra.mxu0 0.0
      %351 = vmatprep.subr.mxu0 0.0
      %352 = vmatpush1.msra.mxu0 0.0
      %353 = vmatprep.subr.mxu0 0.0
      %354 = vmatpush1.msra.mxu0 0.0
      %355 = vmatprep.subr.mxu0 0.0
      %356 = vmatpush1.msra.mxu0 0.0
      %357 = vmatprep.subr.mxu0 0.0
      %358 = vmatpush1.msra.mxu0 0.0
      %359 = vmatprep.subr.mxu0 0.0
      %360 = vmatpush1.msra.mxu0 0.0
      %361 = vmatprep.subr.mxu0 0.0
      %362 = vmatpush1.msra.mxu0 0.0
      %363 = vmatprep.subr.mxu0 0.0
      %364 = vmatpush1.msra.mxu0 0.0
      %365 = vmatprep.subr.mxu0 0.0
      %366 = vmatpush1.msra.mxu0 0.0
      %367 = vmatprep.subr.mxu0 0.0
      %368 = vmatpush1.msra.mxu0 0.0
      %369 = vmatprep.mubr.f32.mxu0 0.0
      %370 = vmatmul.mubr.f32.gmra.mrb[0].mxu0 %v303
      %v371 = vpop.f32.mrb[0].mxu0
      %v372 = vadd.f32 0.0, %v371
      %v373 = vpop.f32.mrb[0].mxu0
      %v374 = vadd.f32 0.0, %v373
      %375 = vdwg.mxu0
      %376 = vmatprep.subr.mxu0 %v296
      %377 = vmatpush1.msra.mxu0 %v295
      %378 = vmatprep.subr.mxu0 0.0
      %379 = vmatpush1.msra.mxu0 0.0
      %380 = vmatprep.subr.mxu0 0.0
      %381 = vmatpush1.msra.mxu0 0.0
      %382 = vmatprep.subr.mxu0 0.0
      %383 = vmatpush1.msra.mxu0 0.0
      %384 = vmatprep.subr.mxu0 0.0
      %385 = vmatpush1.msra.mxu0 0.0
      %386 = vmatprep.subr.mxu0 0.0
      %387 = vmatpush1.msra.mxu0 0.0
      %388 = vmatprep.subr.mxu0 0.0
      %389 = vmatpush1.msra.mxu0 0.0
      %390 = vmatprep.subr.mxu0 0.0
      %391 = vmatpush1.msra.mxu0 0.0
      %392 = vmatprep.subr.mxu0 0.0
      %393 = vmatpush1.msra.mxu0 0.0
      %394 = vmatprep.subr.mxu0 0.0
      %395 = vmatpush1.msra.mxu0 0.0
      %396 = vmatprep.subr.mxu0 0.0
      %397 = vmatpush1.msra.mxu0 0.0
      %398 = vmatprep.subr.mxu0 0.0
      %399 = vmatpush1.msra.mxu0 0.0
      %400 = vmatprep.subr.mxu0 0.0
      %401 = vmatpush1.msra.mxu0 0.0
      %402 = vmatprep.subr.mxu0 0.0
      %403 = vmatpush1.msra.mxu0 0.0
      %404 = vmatprep.subr.mxu0 0.0
      %405 = vmatpush1.msra.mxu0 0.0
      %406 = vmatprep.subr.mxu0 0.0
      %407 = vmatpush1.msra.mxu0 0.0
      %408 = vmatprep.subr.mxu0 0.0
      %409 = vmatpush1.msra.mxu0 0.0
      %410 = vmatprep.subr.mxu0 0.0
      %411 = vmatpush1.msra.mxu0 0.0
      %412 = vmatprep.subr.mxu0 0.0
      %413 = vmatpush1.msra.mxu0 0.0
      %414 = vmatprep.subr.mxu0 0.0
      %415 = vmatpush1.msra.mxu0 0.0
      %416 = vmatprep.subr.mxu0 0.0
      %417 = vmatpush1.msra.mxu0 0.0
      %418 = vmatprep.subr.mxu0 0.0
      %419 = vmatpush1.msra.mxu0 0.0
      %420 = vmatprep.subr.mxu0 0.0
      %421 = vmatpush1.msra.mxu0 0.0
      %422 = vmatprep.subr.mxu0 0.0
      %423 = vmatpush1.msra.mxu0 0.0
      %424 = vmatprep.subr.mxu0 0.0
      %425 = vmatpush1.msra.mxu0 0.0
      %426 = vmatprep.subr.mxu0 0.0
      %427 = vmatpush1.msra.mxu0 0.0
      %428 = vmatprep.subr.mxu0 0.0
      %429 = vmatpush1.msra.mxu0 0.0
      %430 = vmatprep.subr.mxu0 0.0
      %431 = vmatpush1.msra.mxu0 0.0
      %432 = vmatprep.subr.mxu0 0.0
      %433 = vmatpush1.msra.mxu0 0.0
      %434 = vmatprep.subr.mxu0 0.0
      %435 = vmatpush1.msra.mxu0 0.0
      %436 = vmatprep.subr.mxu0 0.0
      %437 = vmatpush1.msra.mxu0 0.0
      %438 = vmatprep.subr.mxu0 0.0
      %439 = vmatpush1.msra.mxu0 0.0
      %440 = vmatprep.mubr.f32.mxu0 0.0
      %441 = vmatmul.mubr.f32.gmra.mrb[0].mxu0 %v303
      %v442 = vpop.f32.mrb[0].mxu0
      %v443 = vadd.f32 0.0, %v442
      %v444 = vpop.f32.mrb[0].mxu0
      %v445 = vadd.f32 0.0, %v444
      %446 = vdwg.mxu0
      %v448 = vsel %vm301, %v269, 0
      %450 = vmatprep.subr.mxu0 %v271
      %451 = vmatpush1.msra.mxu0 %v270
      %452 = vmatprep.subr.mxu0 0.0
      %453 = vmatpush1.msra.mxu0 0.0
      %454 = vmatprep.subr.mxu0 0.0
      %455 = vmatpush1.msra.mxu0 0.0
      %456 = vmatprep.subr.mxu0 0.0
      %457 = vmatpush1.msra.mxu0 0.0
      %458 = vmatprep.subr.mxu0 0.0
      %459 = vmatpush1.msra.mxu0 0.0
      %460 = vmatprep.subr.mxu0 0.0
      %461 = vmatpush1.msra.mxu0 0.0
      %462 = vmatprep.subr.mxu0 0.0
      %463 = vmatpush1.msra.mxu0 0.0
      %464 = vmatprep.subr.mxu0 0.0
      %465 = vmatpush1.msra.mxu0 0.0
      %466 = vmatprep.subr.mxu0 0.0
      %467 = vmatpush1.msra.mxu0 0.0
      %468 = vmatprep.subr.mxu0 0.0
      %469 = vmatpush1.msra.mxu0 0.0
      %470 = vmatprep.subr.mxu0 0.0
      %471 = vmatpush1.msra.mxu0 0.0
      %472 = vmatprep.subr.mxu0 0.0
      %473 = vmatpush1.msra.mxu0 0.0
      %474 = vmatprep.subr.mxu0 0.0
      %475 = vmatpush1.msra.mxu0 0.0
      %476 = vmatprep.subr.mxu0 0.0
      %477 = vmatpush1.msra.mxu0 0.0
      %478 = vmatprep.subr.mxu0 0.0
      %479 = vmatpush1.msra.mxu0 0.0
      %480 = vmatprep.subr.mxu0 0.0
      %481 = vmatpush1.msra.mxu0 0.0
      %482 = vmatprep.subr.mxu0 0.0
      %483 = vmatpush1.msra.mxu0 0.0
      %484 = vmatprep.subr.mxu0 0.0
      %485 = vmatpush1.msra.mxu0 0.0
      %486 = vmatprep.subr.mxu0 0.0
      %487 = vmatpush1.msra.mxu0 0.0
      %488 = vmatprep.subr.mxu0 0.0
      %489 = vmatpush1.msra.mxu0 0.0
      %490 = vmatprep.subr.mxu0 0.0
      %491 = vmatpush1.msra.mxu0 0.0
      %492 = vmatprep.subr.mxu0 0.0
      %493 = vmatpush1.msra.mxu0 0.0
      %494 = vmatprep.subr.mxu0 0.0
      %495 = vmatpush1.msra.mxu0 0.0
      %496 = vmatprep.subr.mxu0 0.0
      %497 = vmatpush1.msra.mxu0 0.0
      %498 = vmatprep.subr.mxu0 0.0
      %499 = vmatpush1.msra.mxu0 0.0
      %500 = vmatprep.subr.mxu0 0.0
      %501 = vmatpush1.msra.mxu0 0.0
      %502 = vmatprep.subr.mxu0 0.0
      %503 = vmatpush1.msra.mxu0 0.0
      %504 = vmatprep.subr.mxu0 0.0
      %505 = vmatpush1.msra.mxu0 0.0
      %506 = vmatprep.subr.mxu0 0.0
      %507 = vmatpush1.msra.mxu0 0.0
      %508 = vmatprep.subr.mxu0 0.0
      %509 = vmatpush1.msra.mxu0 0.0
      %510 = vmatprep.subr.mxu0 0.0
      %511 = vmatpush1.msra.mxu0 0.0
      %512 = vmatprep.subr.mxu0 0.0
      %513 = vmatpush1.msra.mxu0 0.0
      %514 = vmatprep.mubr.f32.mxu0 0.0
      %515 = vmatmul.mubr.f32.gmra.mrb[0].mxu0 %v448
      %v516 = vpop.f32.mrb[0].mxu0
      %v517 = vadd.f32 %v372, %v516
      %v518 = vpop.f32.mrb[0].mxu0
      %v519 = vadd.f32 %v374, %v518
      %520 = vdwg.mxu0
      %521 = vmatprep.subr.mxu0 %v273
      %522 = vmatpush1.msra.mxu0 %v272
      %523 = vmatprep.subr.mxu0 0.0
      %524 = vmatpush1.msra.mxu0 0.0
      %525 = vmatprep.subr.mxu0 0.0
      %526 = vmatpush1.msra.mxu0 0.0
      %527 = vmatprep.subr.mxu0 0.0
      %528 = vmatpush1.msra.mxu0 0.0
      %529 = vmatprep.subr.mxu0 0.0
      %530 = vmatpush1.msra.mxu0 0.0
      %531 = vmatprep.subr.mxu0 0.0
      %532 = vmatpush1.msra.mxu0 0.0
      %533 = vmatprep.subr.mxu0 0.0
      %534 = vmatpush1.msra.mxu0 0.0
      %535 = vmatprep.subr.mxu0 0.0
      %536 = vmatpush1.msra.mxu0 0.0
      %537 = vmatprep.subr.mxu0 0.0
      %538 = vmatpush1.msra.mxu0 0.0
      %539 = vmatprep.subr.mxu0 0.0
      %540 = vmatpush1.msra.mxu0 0.0
      %541 = vmatprep.subr.mxu0 0.0
      %542 = vmatpush1.msra.mxu0 0.0
      %543 = vmatprep.subr.mxu0 0.0
      %544 = vmatpush1.msra.mxu0 0.0
      %545 = vmatprep.subr.mxu0 0.0
      %546 = vmatpush1.msra.mxu0 0.0
      %547 = vmatprep.subr.mxu0 0.0
      %548 = vmatpush1.msra.mxu0 0.0
      %549 = vmatprep.subr.mxu0 0.0
      %550 = vmatpush1.msra.mxu0 0.0
      %551 = vmatprep.subr.mxu0 0.0
      %552 = vmatpush1.msra.mxu0 0.0
      %553 = vmatprep.subr.mxu0 0.0
      %554 = vmatpush1.msra.mxu0 0.0
      %555 = vmatprep.subr.mxu0 0.0
      %556 = vmatpush1.msra.mxu0 0.0
      %557 = vmatprep.subr.mxu0 0.0
      %558 = vmatpush1.msra.mxu0 0.0
      %559 = vmatprep.subr.mxu0 0.0
      %560 = vmatpush1.msra.mxu0 0.0
      %561 = vmatprep.subr.mxu0 0.0
      %562 = vmatpush1.msra.mxu0 0.0
      %563 = vmatprep.subr.mxu0 0.0
      %564 = vmatpush1.msra.mxu0 0.0
      %565 = vmatprep.subr.mxu0 0.0
      %566 = vmatpush1.msra.mxu0 0.0
      %567 = vmatprep.subr.mxu0 0.0
      %568 = vmatpush1.msra.mxu0 0.0
      %569 = vmatprep.subr.mxu0 0.0
      %570 = vmatpush1.msra.mxu0 0.0
      %571 = vmatprep.subr.mxu0 0.0
      %572 = vmatpush1.msra.mxu0 0.0
      %573 = vmatprep.subr.mxu0 0.0
      %574 = vmatpush1.msra.mxu0 0.0
      %575 = vmatprep.subr.mxu0 0.0
      %576 = vmatpush1.msra.mxu0 0.0
      %577 = vmatprep.subr.mxu0 0.0
      %578 = vmatpush1.msra.mxu0 0.0
      %579 = vmatprep.subr.mxu0 0.0
      %580 = vmatpush1.msra.mxu0 0.0
      %581 = vmatprep.subr.mxu0 0.0
      %582 = vmatpush1.msra.mxu0 0.0
      %583 = vmatprep.subr.mxu0 0.0
      %584 = vmatpush1.msra.mxu0 0.0
      %585 = vmatprep.mubr.f32.mxu0 0.0
      %586 = vmatmul.mubr.f32.gmra.mrb[0].mxu0 %v448
      %v587 = vpop.f32.mrb[0].mxu0
      %v588 = vadd.f32 %v443, %v587
      %v589 = vpop.f32.mrb[0].mxu0
      %v590 = vadd.f32 %v445, %v589
      %591 = vdwg.mxu0
      %s592 = scalar_lea.vmem %s2, 16
      %v593 = vld [vmem:[%s592] sm:$0xff]
      %594 = vrot.lane.b32.xlu0 %v270, 126
      %v595 = vpop.permute.xlu0 %594
      %596 = vrot.lane.b32.xlu0 %v271, 126
      %v597 = vpop.permute.xlu0 %596
      %598 = vrot.lane.b32.xlu0 %v272, 126
      %v599 = vpop.permute.xlu0 %598
      %600 = vrot.lane.b32.xlu0 %v273, 126
      %v601 = vpop.permute.xlu0 %600
      %602 = vrot.lane.b32.xlu0 %v276, 126
      %v603 = vpop.permute.xlu0 %602
      %vm604 = vcmask 1031168
      %v605 = vsel %vm604, %v595, %v597
      %v606 = vsel %vm604, %v597, %v599
      %v607 = vsel %vm604, %v599, %v601
      %v608 = vsel %vm604, %v601, %v603
      %v614 = vsel %vm301, %v593, 0
      %616 = vmatprep.subr.mxu0 %v606
      %617 = vmatpush1.msra.mxu0 %v605
      %618 = vmatprep.subr.mxu0 0.0
      %619 = vmatpush1.msra.mxu0 0.0
      %620 = vmatprep.subr.mxu0 0.0
      %621 = vmatpush1.msra.mxu0 0.0
      %622 = vmatprep.subr.mxu0 0.0
      %623 = vmatpush1.msra.mxu0 0.0
      %624 = vmatprep.subr.mxu0 0.0
      %625 = vmatpush1.msra.mxu0 0.0
      %626 = vmatprep.subr.mxu0 0.0
      %627 = vmatpush1.msra.mxu0 0.0
      %628 = vmatprep.subr.mxu0 0.0
      %629 = vmatpush1.msra.mxu0 0.0
      %630 = vmatprep.subr.mxu0 0.0
      %631 = vmatpush1.msra.mxu0 0.0
      %632 = vmatprep.subr.mxu0 0.0
      %633 = vmatpush1.msra.mxu0 0.0
      %634 = vmatprep.subr.mxu0 0.0
      %635 = vmatpush1.msra.mxu0 0.0
      %636 = vmatprep.subr.mxu0 0.0
      %637 = vmatpush1.msra.mxu0 0.0
      %638 = vmatprep.subr.mxu0 0.0
      %639 = vmatpush1.msra.mxu0 0.0
      %640 = vmatprep.subr.mxu0 0.0
      %641 = vmatpush1.msra.mxu0 0.0
      %642 = vmatprep.subr.mxu0 0.0
      %643 = vmatpush1.msra.mxu0 0.0
      %644 = vmatprep.subr.mxu0 0.0
      %645 = vmatpush1.msra.mxu0 0.0
      %646 = vmatprep.subr.mxu0 0.0
      %647 = vmatpush1.msra.mxu0 0.0
      %648 = vmatprep.subr.mxu0 0.0
      %649 = vmatpush1.msra.mxu0 0.0
      %650 = vmatprep.subr.mxu0 0.0
      %651 = vmatpush1.msra.mxu0 0.0
      %652 = vmatprep.subr.mxu0 0.0
      %653 = vmatpush1.msra.mxu0 0.0
      %654 = vmatprep.subr.mxu0 0.0
      %655 = vmatpush1.msra.mxu0 0.0
      %656 = vmatprep.subr.mxu0 0.0
      %657 = vmatpush1.msra.mxu0 0.0
      %658 = vmatprep.subr.mxu0 0.0
      %659 = vmatpush1.msra.mxu0 0.0
      %660 = vmatprep.subr.mxu0 0.0
      %661 = vmatpush1.msra.mxu0 0.0
      %662 = vmatprep.subr.mxu0 0.0
      %663 = vmatpush1.msra.mxu0 0.0
      %664 = vmatprep.subr.mxu0 0.0
      %665 = vmatpush1.msra.mxu0 0.0
      %666 = vmatprep.subr.mxu0 0.0
      %667 = vmatpush1.msra.mxu0 0.0
      %668 = vmatprep.subr.mxu0 0.0
      %669 = vmatpush1.msra.mxu0 0.0
      %670 = vmatprep.subr.mxu0 0.0
      %671 = vmatpush1.msra.mxu0 0.0
      %672 = vmatprep.subr.mxu0 0.0
      %673 = vmatpush1.msra.mxu0 0.0
      %674 = vmatprep.subr.mxu0 0.0
      %675 = vmatpush1.msra.mxu0 0.0
      %676 = vmatprep.subr.mxu0 0.0
      %677 = vmatpush1.msra.mxu0 0.0
      %678 = vmatprep.subr.mxu0 0.0
      %679 = vmatpush1.msra.mxu0 0.0
      %680 = vmatprep.mubr.f32.mxu0 0.0
      %681 = vmatmul.mubr.f32.gmra.mrb[0].mxu0 %v614
      %v682 = vpop.f32.mrb[0].mxu0
      %v683 = vadd.f32 0.0, %v682
      %v684 = vpop.f32.mrb[0].mxu0
      %v685 = vadd.f32 0.0, %v684
      %686 = vdwg.mxu0
      %687 = vmatprep.subr.mxu0 %v608
      %688 = vmatpush1.msra.mxu0 %v607
      %689 = vmatprep.subr.mxu0 0.0
      %690 = vmatpush1.msra.mxu0 0.0
      %691 = vmatprep.subr.mxu0 0.0
      %692 = vmatpush1.msra.mxu0 0.0
      %693 = vmatprep.subr.mxu0 0.0
      %694 = vmatpush1.msra.mxu0 0.0
      %695 = vmatprep.subr.mxu0 0.0
      %696 = vmatpush1.msra.mxu0 0.0
      %697 = vmatprep.subr.mxu0 0.0
      %698 = vmatpush1.msra.mxu0 0.0
      %699 = vmatprep.subr.mxu0 0.0
      %700 = vmatpush1.msra.mxu0 0.0
      %701 = vmatprep.subr.mxu0 0.0
      %702 = vmatpush1.msra.mxu0 0.0
      %703 = vmatprep.subr.mxu0 0.0
      %704 = vmatpush1.msra.mxu0 0.0
      %705 = vmatprep.subr.mxu0 0.0
      %706 = vmatpush1.msra.mxu0 0.0
      %707 = vmatprep.subr.mxu0 0.0
      %708 = vmatpush1.msra.mxu0 0.0
      %709 = vmatprep.subr.mxu0 0.0
      %710 = vmatpush1.msra.mxu0 0.0
      %711 = vmatprep.subr.mxu0 0.0
      %712 = vmatpush1.msra.mxu0 0.0
      %713 = vmatprep.subr.mxu0 0.0
      %714 = vmatpush1.msra.mxu0 0.0
      %715 = vmatprep.subr.mxu0 0.0
      %716 = vmatpush1.msra.mxu0 0.0
      %717 = vmatprep.subr.mxu0 0.0
      %718 = vmatpush1.msra.mxu0 0.0
      %719 = vmatprep.subr.mxu0 0.0
      %720 = vmatpush1.msra.mxu0 0.0
      %721 = vmatprep.subr.mxu0 0.0
      %722 = vmatpush1.msra.mxu0 0.0
      %723 = vmatprep.subr.mxu0 0.0
      %724 = vmatpush1.msra.mxu0 0.0
      %725 = vmatprep.subr.mxu0 0.0
      %726 = vmatpush1.msra.mxu0 0.0
      %727 = vmatprep.subr.mxu0 0.0
      %728 = vmatpush1.msra.mxu0 0.0
      %729 = vmatprep.subr.mxu0 0.0
      %730 = vmatpush1.msra.mxu0 0.0
      %731 = vmatprep.subr.mxu0 0.0
      %732 = vmatpush1.msra.mxu0 0.0
      %733 = vmatprep.subr.mxu0 0.0
      %734 = vmatpush1.msra.mxu0 0.0
      %735 = vmatprep.subr.mxu0 0.0
      %736 = vmatpush1.msra.mxu0 0.0
      %737 = vmatprep.subr.mxu0 0.0
      %738 = vmatpush1.msra.mxu0 0.0
      %739 = vmatprep.subr.mxu0 0.0
      %740 = vmatpush1.msra.mxu0 0.0
      %741 = vmatprep.subr.mxu0 0.0
      %742 = vmatpush1.msra.mxu0 0.0
      %743 = vmatprep.subr.mxu0 0.0
      %744 = vmatpush1.msra.mxu0 0.0
      %745 = vmatprep.subr.mxu0 0.0
      %746 = vmatpush1.msra.mxu0 0.0
      %747 = vmatprep.subr.mxu0 0.0
      %748 = vmatpush1.msra.mxu0 0.0
      %749 = vmatprep.subr.mxu0 0.0
      %750 = vmatpush1.msra.mxu0 0.0
      %751 = vmatprep.mubr.f32.mxu0 0.0
      %752 = vmatmul.mubr.f32.gmra.mrb[0].mxu0 %v614
      %v753 = vpop.f32.mrb[0].mxu0
      %v754 = vadd.f32 0.0, %v753
      %v755 = vpop.f32.mrb[0].mxu0
      %v756 = vadd.f32 0.0, %v755
      %757 = vdwg.mxu0
      %v758 = vadd.f32 %v517, %v683
      %v759 = vadd.f32 %v519, %v685
      %v760 = vadd.f32 %v588, %v754
      %v761 = vadd.f32 %v590, %v756
      %s762 = scalar_lea.vmem %s2, 24
      %v763 = vld [vmem:[%s762] sm:$0xff]
      %764 = vrot.lane.b32.xlu0 %v270, 120
      %v765 = vpop.permute.xlu0 %764
      %766 = vrot.lane.b32.xlu0 %v271, 120
      %v767 = vpop.permute.xlu0 %766
      %768 = vrot.lane.b32.xlu0 %v272, 120
      %v769 = vpop.permute.xlu0 %768
      %770 = vrot.lane.b32.xlu0 %v273, 120
      %v771 = vpop.permute.xlu0 %770
      %772 = vrot.lane.b32.xlu0 %v276, 120
      %v773 = vpop.permute.xlu0 %772
      %vm774 = vcmask 982016
      %v775 = vsel %vm774, %v765, %v767
      %v776 = vsel %vm774, %v767, %v769
      %v777 = vsel %vm774, %v769, %v771
      %v778 = vsel %vm774, %v771, %v773
      %v784 = vsel %vm301, %v763, 0
      %786 = vmatprep.subr.mxu0 %v776
      %787 = vmatpush1.msra.mxu0 %v775
      %788 = vmatprep.subr.mxu0 0.0
      %789 = vmatpush1.msra.mxu0 0.0
      %790 = vmatprep.subr.mxu0 0.0
      %791 = vmatpush1.msra.mxu0 0.0
      %792 = vmatprep.subr.mxu0 0.0
      %793 = vmatpush1.msra.mxu0 0.0
      %794 = vmatprep.subr.mxu0 0.0
      %795 = vmatpush1.msra.mxu0 0.0
      %796 = vmatprep.subr.mxu0 0.0
      %797 = vmatpush1.msra.mxu0 0.0
      %798 = vmatprep.subr.mxu0 0.0
      %799 = vmatpush1.msra.mxu0 0.0
      %800 = vmatprep.subr.mxu0 0.0
      %801 = vmatpush1.msra.mxu0 0.0
      %802 = vmatprep.subr.mxu0 0.0
      %803 = vmatpush1.msra.mxu0 0.0
      %804 = vmatprep.subr.mxu0 0.0
      %805 = vmatpush1.msra.mxu0 0.0
      %806 = vmatprep.subr.mxu0 0.0
      %807 = vmatpush1.msra.mxu0 0.0
      %808 = vmatprep.subr.mxu0 0.0
      %809 = vmatpush1.msra.mxu0 0.0
      %810 = vmatprep.subr.mxu0 0.0
      %811 = vmatpush1.msra.mxu0 0.0
      %812 = vmatprep.subr.mxu0 0.0
      %813 = vmatpush1.msra.mxu0 0.0
      %814 = vmatprep.subr.mxu0 0.0
      %815 = vmatpush1.msra.mxu0 0.0
      %816 = vmatprep.subr.mxu0 0.0
      %817 = vmatpush1.msra.mxu0 0.0
      %818 = vmatprep.subr.mxu0 0.0
      %819 = vmatpush1.msra.mxu0 0.0
      %820 = vmatprep.subr.mxu0 0.0
      %821 = vmatpush1.msra.mxu0 0.0
      %822 = vmatprep.subr.mxu0 0.0
      %823 = vmatpush1.msra.mxu0 0.0
      %824 = vmatprep.subr.mxu0 0.0
      %825 = vmatpush1.msra.mxu0 0.0
      %826 = vmatprep.subr.mxu0 0.0
      %827 = vmatpush1.msra.mxu0 0.0
      %828 = vmatprep.subr.mxu0 0.0
      %829 = vmatpush1.msra.mxu0 0.0
      %830 = vmatprep.subr.mxu0 0.0
      %831 = vmatpush1.msra.mxu0 0.0
      %832 = vmatprep.subr.mxu0 0.0
      %833 = vmatpush1.msra.mxu0 0.0
      %834 = vmatprep.subr.mxu0 0.0
      %835 = vmatpush1.msra.mxu0 0.0
      %836 = vmatprep.subr.mxu0 0.0
      %837 = vmatpush1.msra.mxu0 0.0
      %838 = vmatprep.subr.mxu0 0.0
      %839 = vmatpush1.msra.mxu0 0.0
      %840 = vmatprep.subr.mxu0 0.0
      %841 = vmatpush1.msra.mxu0 0.0
      %842 = vmatprep.subr.mxu0 0.0
      %843 = vmatpush1.msra.mxu0 0.0
      %844 = vmatprep.subr.mxu0 0.0
      %845 = vmatpush1.msra.mxu0 0.0
      %846 = vmatprep.subr.mxu0 0.0
      %847 = vmatpush1.msra.mxu0 0.0
      %848 = vmatprep.subr.mxu0 0.0
      %849 = vmatpush1.msra.mxu0 0.0
      %850 = vmatprep.mubr.f32.mxu0 0.0
      %851 = vmatmul.mubr.f32.gmra.mrb[0].mxu0 %v784
      %v852 = vpop.f32.mrb[0].mxu0
      %v853 = vadd.f32 0.0, %v852
      %v854 = vpop.f32.mrb[0].mxu0
      %v855 = vadd.f32 0.0, %v854
      %856 = vdwg.mxu0
      %857 = vmatprep.subr.mxu0 %v778
      %858 = vmatpush1.msra.mxu0 %v777
      %859 = vmatprep.subr.mxu0 0.0
      %860 = vmatpush1.msra.mxu0 0.0
      %861 = vmatprep.subr.mxu0 0.0
      %862 = vmatpush1.msra.mxu0 0.0
      %863 = vmatprep.subr.mxu0 0.0
      %864 = vmatpush1.msra.mxu0 0.0
      %865 = vmatprep.subr.mxu0 0.0
      %866 = vmatpush1.msra.mxu0 0.0
      %867 = vmatprep.subr.mxu0 0.0
      %868 = vmatpush1.msra.mxu0 0.0
      %869 = vmatprep.subr.mxu0 0.0
      %870 = vmatpush1.msra.mxu0 0.0
      %871 = vmatprep.subr.mxu0 0.0
      %872 = vmatpush1.msra.mxu0 0.0
      %873 = vmatprep.subr.mxu0 0.0
      %874 = vmatpush1.msra.mxu0 0.0
      %875 = vmatprep.subr.mxu0 0.0
      %876 = vmatpush1.msra.mxu0 0.0
      %877 = vmatprep.subr.mxu0 0.0
      %878 = vmatpush1.msra.mxu0 0.0
      %879 = vmatprep.subr.mxu0 0.0
      %880 = vmatpush1.msra.mxu0 0.0
      %881 = vmatprep.subr.mxu0 0.0
      %882 = vmatpush1.msra.mxu0 0.0
      %883 = vmatprep.subr.mxu0 0.0
      %884 = vmatpush1.msra.mxu0 0.0
      %885 = vmatprep.subr.mxu0 0.0
      %886 = vmatpush1.msra.mxu0 0.0
      %887 = vmatprep.subr.mxu0 0.0
      %888 = vmatpush1.msra.mxu0 0.0
      %889 = vmatprep.subr.mxu0 0.0
      %890 = vmatpush1.msra.mxu0 0.0
      %891 = vmatprep.subr.mxu0 0.0
      %892 = vmatpush1.msra.mxu0 0.0
      %893 = vmatprep.subr.mxu0 0.0
      %894 = vmatpush1.msra.mxu0 0.0
      %895 = vmatprep.subr.mxu0 0.0
      %896 = vmatpush1.msra.mxu0 0.0
      %897 = vmatprep.subr.mxu0 0.0
      %898 = vmatpush1.msra.mxu0 0.0
      %899 = vmatprep.subr.mxu0 0.0
      %900 = vmatpush1.msra.mxu0 0.0
      %901 = vmatprep.subr.mxu0 0.0
      %902 = vmatpush1.msra.mxu0 0.0
      %903 = vmatprep.subr.mxu0 0.0
      %904 = vmatpush1.msra.mxu0 0.0
      %905 = vmatprep.subr.mxu0 0.0
      %906 = vmatpush1.msra.mxu0 0.0
      %907 = vmatprep.subr.mxu0 0.0
      %908 = vmatpush1.msra.mxu0 0.0
      %909 = vmatprep.subr.mxu0 0.0
      %910 = vmatpush1.msra.mxu0 0.0
      %911 = vmatprep.subr.mxu0 0.0
      %912 = vmatpush1.msra.mxu0 0.0
      %913 = vmatprep.subr.mxu0 0.0
      %914 = vmatpush1.msra.mxu0 0.0
      %915 = vmatprep.subr.mxu0 0.0
      %916 = vmatpush1.msra.mxu0 0.0
      %917 = vmatprep.subr.mxu0 0.0
      %918 = vmatpush1.msra.mxu0 0.0
      %919 = vmatprep.subr.mxu0 0.0
      %920 = vmatpush1.msra.mxu0 0.0
      %921 = vmatprep.mubr.f32.mxu0 0.0
      %922 = vmatmul.mubr.f32.gmra.mrb[0].mxu0 %v784
      %v923 = vpop.f32.mrb[0].mxu0
      %v924 = vadd.f32 0.0, %v923
      %v925 = vpop.f32.mrb[0].mxu0
      %v926 = vadd.f32 0.0, %v925
      %927 = vdwg.mxu0
      %v928 = vadd.f32 %v758, %v853
      %v929 = vadd.f32 %v759, %v855
      %v930 = vadd.f32 %v760, %v924
      %v931 = vadd.f32 %v761, %v926
      %s932 = scalar_lea.vmem %s2, 32
      %v933 = vld [vmem:[%s932] sm:$0xff]
      %934 = vrot.lane.b32.xlu0 %v270, 119
      %v935 = vpop.permute.xlu0 %934
      %936 = vrot.lane.b32.xlu0 %v271, 119
      %v937 = vpop.permute.xlu0 %936
      %938 = vrot.lane.b32.xlu0 %v272, 119
      %v939 = vpop.permute.xlu0 %938
      %940 = vrot.lane.b32.xlu0 %v273, 119
      %v941 = vpop.permute.xlu0 %940
      %942 = vrot.lane.b32.xlu0 %v276, 119
      %v943 = vpop.permute.xlu0 %942
      %vm944 = vcmask 973824
      %v945 = vsel %vm944, %v935, %v937
      %v946 = vsel %vm944, %v937, %v939
      %v947 = vsel %vm944, %v939, %v941
      %v948 = vsel %vm944, %v941, %v943
      %v954 = vsel %vm301, %v933, 0
      %956 = vmatprep.subr.mxu0 %v946
      %957 = vmatpush1.msra.mxu0 %v945
      %958 = vmatprep.subr.mxu0 0.0
      %959 = vmatpush1.msra.mxu0 0.0
      %960 = vmatprep.subr.mxu0 0.0
      %961 = vmatpush1.msra.mxu0 0.0
      %962 = vmatprep.subr.mxu0 0.0
      %963 = vmatpush1.msra.mxu0 0.0
      %964 = vmatprep.subr.mxu0 0.0
      %965 = vmatpush1.msra.mxu0 0.0
      %966 = vmatprep.subr.mxu0 0.0
      %967 = vmatpush1.msra.mxu0 0.0
      %968 = vmatprep.subr.mxu0 0.0
      %969 = vmatpush1.msra.mxu0 0.0
      %970 = vmatprep.subr.mxu0 0.0
      %971 = vmatpush1.msra.mxu0 0.0
      %972 = vmatprep.subr.mxu0 0.0
      %973 = vmatpush1.msra.mxu0 0.0
      %974 = vmatprep.subr.mxu0 0.0
      %975 = vmatpush1.msra.mxu0 0.0
      %976 = vmatprep.subr.mxu0 0.0
      %977 = vmatpush1.msra.mxu0 0.0
      %978 = vmatprep.subr.mxu0 0.0
      %979 = vmatpush1.msra.mxu0 0.0
      %980 = vmatprep.subr.mxu0 0.0
      %981 = vmatpush1.msra.mxu0 0.0
      %982 = vmatprep.subr.mxu0 0.0
      %983 = vmatpush1.msra.mxu0 0.0
      %984 = vmatprep.subr.mxu0 0.0
      %985 = vmatpush1.msra.mxu0 0.0
      %986 = vmatprep.subr.mxu0 0.0
      %987 = vmatpush1.msra.mxu0 0.0
      %988 = vmatprep.subr.mxu0 0.0
      %989 = vmatpush1.msra.mxu0 0.0
      %990 = vmatprep.subr.mxu0 0.0
      %991 = vmatpush1.msra.mxu0 0.0
      %992 = vmatprep.subr.mxu0 0.0
      %993 = vmatpush1.msra.mxu0 0.0
      %994 = vmatprep.subr.mxu0 0.0
      %995 = vmatpush1.msra.mxu0 0.0
      %996 = vmatprep.subr.mxu0 0.0
      %997 = vmatpush1.msra.mxu0 0.0
      %998 = vmatprep.subr.mxu0 0.0
      %999 = vmatpush1.msra.mxu0 0.0
      %1000 = vmatprep.subr.mxu0 0.0
      %1001 = vmatpush1.msra.mxu0 0.0
      %1002 = vmatprep.subr.mxu0 0.0
      %1003 = vmatpush1.msra.mxu0 0.0
      %1004 = vmatprep.subr.mxu0 0.0
      %1005 = vmatpush1.msra.mxu0 0.0
      %1006 = vmatprep.subr.mxu0 0.0
      %1007 = vmatpush1.msra.mxu0 0.0
      %1008 = vmatprep.subr.mxu0 0.0
      %1009 = vmatpush1.msra.mxu0 0.0
      %1010 = vmatprep.subr.mxu0 0.0
      %1011 = vmatpush1.msra.mxu0 0.0
      %1012 = vmatprep.subr.mxu0 0.0
      %1013 = vmatpush1.msra.mxu0 0.0
      %1014 = vmatprep.subr.mxu0 0.0
      %1015 = vmatpush1.msra.mxu0 0.0
      %1016 = vmatprep.subr.mxu0 0.0
      %1017 = vmatpush1.msra.mxu0 0.0
      %1018 = vmatprep.subr.mxu0 0.0
      %1019 = vmatpush1.msra.mxu0 0.0
      %1020 = vmatprep.mubr.f32.mxu0 0.0
      %1021 = vmatmul.mubr.f32.gmra.mrb[0].mxu0 %v954
      %v1022 = vpop.f32.mrb[0].mxu0
      %v1023 = vadd.f32 0.0, %v1022
      %v1024 = vpop.f32.mrb[0].mxu0
      %v1025 = vadd.f32 0.0, %v1024
      %1026 = vdwg.mxu0
      %1027 = vmatprep.subr.mxu0 %v948
      %1028 = vmatpush1.msra.mxu0 %v947
      %1029 = vmatprep.subr.mxu0 0.0
      %1030 = vmatpush1.msra.mxu0 0.0
      %1031 = vmatprep.subr.mxu0 0.0
      %1032 = vmatpush1.msra.mxu0 0.0
      %1033 = vmatprep.subr.mxu0 0.0
      %1034 = vmatpush1.msra.mxu0 0.0
      %1035 = vmatprep.subr.mxu0 0.0
      %1036 = vmatpush1.msra.mxu0 0.0
      %1037 = vmatprep.subr.mxu0 0.0
      %1038 = vmatpush1.msra.mxu0 0.0
      %1039 = vmatprep.subr.mxu0 0.0
      %1040 = vmatpush1.msra.mxu0 0.0
      %1041 = vmatprep.subr.mxu0 0.0
      %1042 = vmatpush1.msra.mxu0 0.0
      %1043 = vmatprep.subr.mxu0 0.0
      %1044 = vmatpush1.msra.mxu0 0.0
      %1045 = vmatprep.subr.mxu0 0.0
      %1046 = vmatpush1.msra.mxu0 0.0
      %1047 = vmatprep.subr.mxu0 0.0
      %1048 = vmatpush1.msra.mxu0 0.0
      %1049 = vmatprep.subr.mxu0 0.0
      %1050 = vmatpush1.msra.mxu0 0.0
      %1051 = vmatprep.subr.mxu0 0.0
      %1052 = vmatpush1.msra.mxu0 0.0
      %1053 = vmatprep.subr.mxu0 0.0
      %1054 = vmatpush1.msra.mxu0 0.0
      %1055 = vmatprep.subr.mxu0 0.0
      %1056 = vmatpush1.msra.mxu0 0.0
      %1057 = vmatprep.subr.mxu0 0.0
      %1058 = vmatpush1.msra.mxu0 0.0
      %1059 = vmatprep.subr.mxu0 0.0
      %1060 = vmatpush1.msra.mxu0 0.0
      %1061 = vmatprep.subr.mxu0 0.0
      %1062 = vmatpush1.msra.mxu0 0.0
      %1063 = vmatprep.subr.mxu0 0.0
      %1064 = vmatpush1.msra.mxu0 0.0
      %1065 = vmatprep.subr.mxu0 0.0
      %1066 = vmatpush1.msra.mxu0 0.0
      %1067 = vmatprep.subr.mxu0 0.0
      %1068 = vmatpush1.msra.mxu0 0.0
      %1069 = vmatprep.subr.mxu0 0.0
      %1070 = vmatpush1.msra.mxu0 0.0
      %1071 = vmatprep.subr.mxu0 0.0
      %1072 = vmatpush1.msra.mxu0 0.0
      %1073 = vmatprep.subr.mxu0 0.0
      %1074 = vmatpush1.msra.mxu0 0.0
      %1075 = vmatprep.subr.mxu0 0.0
      %1076 = vmatpush1.msra.mxu0 0.0
      %1077 = vmatprep.subr.mxu0 0.0
      %1078 = vmatpush1.msra.mxu0 0.0
      %1079 = vmatprep.subr.mxu0 0.0
      %1080 = vmatpush1.msra.mxu0 0.0
      %1081 = vmatprep.subr.mxu0 0.0
      %1082 = vmatpush1.msra.mxu0 0.0
      %1083 = vmatprep.subr.mxu0 0.0
      %1084 = vmatpush1.msra.mxu0 0.0
      %1085 = vmatprep.subr.mxu0 0.0
      %1086 = vmatpush1.msra.mxu0 0.0
      %1087 = vmatprep.subr.mxu0 0.0
      %1088 = vmatpush1.msra.mxu0 0.0
      %1089 = vmatprep.subr.mxu0 0.0
      %1090 = vmatpush1.msra.mxu0 0.0
      %1091 = vmatprep.mubr.f32.mxu0 0.0
      %1092 = vmatmul.mubr.f32.gmra.mrb[0].mxu0 %v954
      %v1093 = vpop.f32.mrb[0].mxu0
      %v1094 = vadd.f32 0.0, %v1093
      %v1095 = vpop.f32.mrb[0].mxu0
      %v1096 = vadd.f32 0.0, %v1095
      %1097 = vdwg.mxu0
      %v1098 = vadd.f32 %v928, %v1023
      %v1099 = vadd.f32 %v929, %v1025
      %v1100 = vadd.f32 %v930, %v1094
      %v1101 = vadd.f32 %v931, %v1096
      %s1102 = scalar_lea.vmem %s2, 40
      %v1103 = vld [vmem:[%s1102] sm:$0xff]
      %1104 = vrot.lane.b32.xlu0 %v270, 118
      %v1105 = vpop.permute.xlu0 %1104
      %1106 = vrot.lane.b32.xlu0 %v271, 118
      %v1107 = vpop.permute.xlu0 %1106
      %1108 = vrot.lane.b32.xlu0 %v272, 118
      %v1109 = vpop.permute.xlu0 %1108
      %1110 = vrot.lane.b32.xlu0 %v273, 118
      %v1111 = vpop.permute.xlu0 %1110
      %1112 = vrot.lane.b32.xlu0 %v276, 118
      %v1113 = vpop.permute.xlu0 %1112
      %vm1114 = vcmask 965632
      %v1115 = vsel %vm1114, %v1105, %v1107
      %v1116 = vsel %vm1114, %v1107, %v1109
      %v1117 = vsel %vm1114, %v1109, %v1111
      %v1118 = vsel %vm1114, %v1111, %v1113
      %v1124 = vsel %vm301, %v1103, 0
      %1126 = vmatprep.subr.mxu0 %v1116
      %1127 = vmatpush1.msra.mxu0 %v1115
      %1128 = vmatprep.subr.mxu0 0.0
      %1129 = vmatpush1.msra.mxu0 0.0
      %1130 = vmatprep.subr.mxu0 0.0
      %1131 = vmatpush1.msra.mxu0 0.0
      %1132 = vmatprep.subr.mxu0 0.0
      %1133 = vmatpush1.msra.mxu0 0.0
      %1134 = vmatprep.subr.mxu0 0.0
      %1135 = vmatpush1.msra.mxu0 0.0
      %1136 = vmatprep.subr.mxu0 0.0
      %1137 = vmatpush1.msra.mxu0 0.0
      %1138 = vmatprep.subr.mxu0 0.0
      %1139 = vmatpush1.msra.mxu0 0.0
      %1140 = vmatprep.subr.mxu0 0.0
      %1141 = vmatpush1.msra.mxu0 0.0
      %1142 = vmatprep.subr.mxu0 0.0
      %1143 = vmatpush1.msra.mxu0 0.0
      %1144 = vmatprep.subr.mxu0 0.0
      %1145 = vmatpush1.msra.mxu0 0.0
      %1146 = vmatprep.subr.mxu0 0.0
      %1147 = vmatpush1.msra.mxu0 0.0
      %1148 = vmatprep.subr.mxu0 0.0
      %1149 = vmatpush1.msra.mxu0 0.0
      %1150 = vmatprep.subr.mxu0 0.0
      %1151 = vmatpush1.msra.mxu0 0.0
      %1152 = vmatprep.subr.mxu0 0.0
      %1153 = vmatpush1.msra.mxu0 0.0
      %1154 = vmatprep.subr.mxu0 0.0
      %1155 = vmatpush1.msra.mxu0 0.0
      %1156 = vmatprep.subr.mxu0 0.0
      %1157 = vmatpush1.msra.mxu0 0.0
      %1158 = vmatprep.subr.mxu0 0.0
      %1159 = vmatpush1.msra.mxu0 0.0
      %1160 = vmatprep.subr.mxu0 0.0
      %1161 = vmatpush1.msra.mxu0 0.0
      %1162 = vmatprep.subr.mxu0 0.0
      %1163 = vmatpush1.msra.mxu0 0.0
      %1164 = vmatprep.subr.mxu0 0.0
      %1165 = vmatpush1.msra.mxu0 0.0
      %1166 = vmatprep.subr.mxu0 0.0
      %1167 = vmatpush1.msra.mxu0 0.0
      %1168 = vmatprep.subr.mxu0 0.0
      %1169 = vmatpush1.msra.mxu0 0.0
      %1170 = vmatprep.subr.mxu0 0.0
      %1171 = vmatpush1.msra.mxu0 0.0
      %1172 = vmatprep.subr.mxu0 0.0
      %1173 = vmatpush1.msra.mxu0 0.0
      %1174 = vmatprep.subr.mxu0 0.0
      %1175 = vmatpush1.msra.mxu0 0.0
      %1176 = vmatprep.subr.mxu0 0.0
      %1177 = vmatpush1.msra.mxu0 0.0
      %1178 = vmatprep.subr.mxu0 0.0
      %1179 = vmatpush1.msra.mxu0 0.0
      %1180 = vmatprep.subr.mxu0 0.0
      %1181 = vmatpush1.msra.mxu0 0.0
      %1182 = vmatprep.subr.mxu0 0.0
      %1183 = vmatpush1.msra.mxu0 0.0
      %1184 = vmatprep.subr.mxu0 0.0
      %1185 = vmatpush1.msra.mxu0 0.0
      %1186 = vmatprep.subr.mxu0 0.0
      %1187 = vmatpush1.msra.mxu0 0.0
      %1188 = vmatprep.subr.mxu0 0.0
      %1189 = vmatpush1.msra.mxu0 0.0
      %1190 = vmatprep.mubr.f32.mxu0 0.0
      %1191 = vmatmul.mubr.f32.gmra.mrb[0].mxu0 %v1124
      %v1192 = vpop.f32.mrb[0].mxu0
      %v1193 = vadd.f32 0.0, %v1192
      %v1194 = vpop.f32.mrb[0].mxu0
      %v1195 = vadd.f32 0.0, %v1194
      %1196 = vdwg.mxu0
      %1197 = vmatprep.subr.mxu0 %v1118
      %1198 = vmatpush1.msra.mxu0 %v1117
      %1199 = vmatprep.subr.mxu0 0.0
      %1200 = vmatpush1.msra.mxu0 0.0
      %1201 = vmatprep.subr.mxu0 0.0
      %1202 = vmatpush1.msra.mxu0 0.0
      %1203 = vmatprep.subr.mxu0 0.0
      %1204 = vmatpush1.msra.mxu0 0.0
      %1205 = vmatprep.subr.mxu0 0.0
      %1206 = vmatpush1.msra.mxu0 0.0
      %1207 = vmatprep.subr.mxu0 0.0
      %1208 = vmatpush1.msra.mxu0 0.0
      %1209 = vmatprep.subr.mxu0 0.0
      %1210 = vmatpush1.msra.mxu0 0.0
      %1211 = vmatprep.subr.mxu0 0.0
      %1212 = vmatpush1.msra.mxu0 0.0
      %1213 = vmatprep.subr.mxu0 0.0
      %1214 = vmatpush1.msra.mxu0 0.0
      %1215 = vmatprep.subr.mxu0 0.0
      %1216 = vmatpush1.msra.mxu0 0.0
      %1217 = vmatprep.subr.mxu0 0.0
      %1218 = vmatpush1.msra.mxu0 0.0
      %1219 = vmatprep.subr.mxu0 0.0
      %1220 = vmatpush1.msra.mxu0 0.0
      %1221 = vmatprep.subr.mxu0 0.0
      %1222 = vmatpush1.msra.mxu0 0.0
      %1223 = vmatprep.subr.mxu0 0.0
      %1224 = vmatpush1.msra.mxu0 0.0
      %1225 = vmatprep.subr.mxu0 0.0
      %1226 = vmatpush1.msra.mxu0 0.0
      %1227 = vmatprep.subr.mxu0 0.0
      %1228 = vmatpush1.msra.mxu0 0.0
      %1229 = vmatprep.subr.mxu0 0.0
      %1230 = vmatpush1.msra.mxu0 0.0
      %1231 = vmatprep.subr.mxu0 0.0
      %1232 = vmatpush1.msra.mxu0 0.0
      %1233 = vmatprep.subr.mxu0 0.0
      %1234 = vmatpush1.msra.mxu0 0.0
      %1235 = vmatprep.subr.mxu0 0.0
      %1236 = vmatpush1.msra.mxu0 0.0
      %1237 = vmatprep.subr.mxu0 0.0
      %1238 = vmatpush1.msra.mxu0 0.0
      %1239 = vmatprep.subr.mxu0 0.0
      %1240 = vmatpush1.msra.mxu0 0.0
      %1241 = vmatprep.subr.mxu0 0.0
      %1242 = vmatpush1.msra.mxu0 0.0
      %1243 = vmatprep.subr.mxu0 0.0
      %1244 = vmatpush1.msra.mxu0 0.0
      %1245 = vmatprep.subr.mxu0 0.0
      %1246 = vmatpush1.msra.mxu0 0.0
      %1247 = vmatprep.subr.mxu0 0.0
      %1248 = vmatpush1.msra.mxu0 0.0
      %1249 = vmatprep.subr.mxu0 0.0
      %1250 = vmatpush1.msra.mxu0 0.0
      %1251 = vmatprep.subr.mxu0 0.0
      %1252 = vmatpush1.msra.mxu0 0.0
      %1253 = vmatprep.subr.mxu0 0.0
      %1254 = vmatpush1.msra.mxu0 0.0
      %1255 = vmatprep.subr.mxu0 0.0
      %1256 = vmatpush1.msra.mxu0 0.0
      %1257 = vmatprep.subr.mxu0 0.0
      %1258 = vmatpush1.msra.mxu0 0.0
      %1259 = vmatprep.subr.mxu0 0.0
      %1260 = vmatpush1.msra.mxu0 0.0
      %1261 = vmatprep.mubr.f32.mxu0 0.0
      %1262 = vmatmul.mubr.f32.gmra.mrb[0].mxu0 %v1124
      %v1263 = vpop.f32.mrb[0].mxu0
      %v1264 = vadd.f32 0.0, %v1263
      %v1265 = vpop.f32.mrb[0].mxu0
      %v1266 = vadd.f32 0.0, %v1265
      %1267 = vdwg.mxu0
      %v1268 = vadd.f32 %v1098, %v1193
      %v1269 = vadd.f32 %v1099, %v1195
      %v1270 = vadd.f32 %v1100, %v1264
      %v1271 = vadd.f32 %v1101, %v1266
      %s1272 = scalar_lea.vmem %s2, 48
      %v1273 = vld [vmem:[%s1272] sm:$0xff]
      %1274 = vrot.lane.b32.xlu0 %v270, 112
      %v1275 = vpop.permute.xlu0 %1274
      %1276 = vrot.lane.b32.xlu0 %v271, 112
      %v1277 = vpop.permute.xlu0 %1276
      %1278 = vrot.lane.b32.xlu0 %v272, 112
      %v1279 = vpop.permute.xlu0 %1278
      %1280 = vrot.lane.b32.xlu0 %v273, 112
      %v1281 = vpop.permute.xlu0 %1280
      %1282 = vrot.lane.b32.xlu0 %v276, 112
      %v1283 = vpop.permute.xlu0 %1282
      %vm1284 = vcmask 916480
      %v1285 = vsel %vm1284, %v1275, %v1277
      %v1286 = vsel %vm1284, %v1277, %v1279
      %v1287 = vsel %vm1284, %v1279, %v1281
      %v1288 = vsel %vm1284, %v1281, %v1283
      %v1294 = vsel %vm301, %v1273, 0
      %1296 = vmatprep.subr.mxu0 %v1286
      %1297 = vmatpush1.msra.mxu0 %v1285
      %1298 = vmatprep.subr.mxu0 0.0
      %1299 = vmatpush1.msra.mxu0 0.0
      %1300 = vmatprep.subr.mxu0 0.0
      %1301 = vmatpush1.msra.mxu0 0.0
      %1302 = vmatprep.subr.mxu0 0.0
      %1303 = vmatpush1.msra.mxu0 0.0
      %1304 = vmatprep.subr.mxu0 0.0
      %1305 = vmatpush1.msra.mxu0 0.0
      %1306 = vmatprep.subr.mxu0 0.0
      %1307 = vmatpush1.msra.mxu0 0.0
      %1308 = vmatprep.subr.mxu0 0.0
      %1309 = vmatpush1.msra.mxu0 0.0
      %1310 = vmatprep.subr.mxu0 0.0
      %1311 = vmatpush1.msra.mxu0 0.0
      %1312 = vmatprep.subr.mxu0 0.0
      %1313 = vmatpush1.msra.mxu0 0.0
      %1314 = vmatprep.subr.mxu0 0.0
      %1315 = vmatpush1.msra.mxu0 0.0
      %1316 = vmatprep.subr.mxu0 0.0
      %1317 = vmatpush1.msra.mxu0 0.0
      %1318 = vmatprep.subr.mxu0 0.0
      %1319 = vmatpush1.msra.mxu0 0.0
      %1320 = vmatprep.subr.mxu0 0.0
      %1321 = vmatpush1.msra.mxu0 0.0
      %1322 = vmatprep.subr.mxu0 0.0
      %1323 = vmatpush1.msra.mxu0 0.0
      %1324 = vmatprep.subr.mxu0 0.0
      %1325 = vmatpush1.msra.mxu0 0.0
      %1326 = vmatprep.subr.mxu0 0.0
      %1327 = vmatpush1.msra.mxu0 0.0
      %1328 = vmatprep.subr.mxu0 0.0
      %1329 = vmatpush1.msra.mxu0 0.0
      %1330 = vmatprep.subr.mxu0 0.0
      %1331 = vmatpush1.msra.mxu0 0.0
      %1332 = vmatprep.subr.mxu0 0.0
      %1333 = vmatpush1.msra.mxu0 0.0
      %1334 = vmatprep.subr.mxu0 0.0
      %1335 = vmatpush1.msra.mxu0 0.0
      %1336 = vmatprep.subr.mxu0 0.0
      %1337 = vmatpush1.msra.mxu0 0.0
      %1338 = vmatprep.subr.mxu0 0.0
      %1339 = vmatpush1.msra.mxu0 0.0
      %1340 = vmatprep.subr.mxu0 0.0
      %1341 = vmatpush1.msra.mxu0 0.0
      %1342 = vmatprep.subr.mxu0 0.0
      %1343 = vmatpush1.msra.mxu0 0.0
      %1344 = vmatprep.subr.mxu0 0.0
      %1345 = vmatpush1.msra.mxu0 0.0
      %1346 = vmatprep.subr.mxu0 0.0
      %1347 = vmatpush1.msra.mxu0 0.0
      %1348 = vmatprep.subr.mxu0 0.0
      %1349 = vmatpush1.msra.mxu0 0.0
      %1350 = vmatprep.subr.mxu0 0.0
      %1351 = vmatpush1.msra.mxu0 0.0
      %1352 = vmatprep.subr.mxu0 0.0
      %1353 = vmatpush1.msra.mxu0 0.0
      %1354 = vmatprep.subr.mxu0 0.0
      %1355 = vmatpush1.msra.mxu0 0.0
      %1356 = vmatprep.subr.mxu0 0.0
      %1357 = vmatpush1.msra.mxu0 0.0
      %1358 = vmatprep.subr.mxu0 0.0
      %1359 = vmatpush1.msra.mxu0 0.0
      %1360 = vmatprep.mubr.f32.mxu0 0.0
      %1361 = vmatmul.mubr.f32.gmra.mrb[0].mxu0 %v1294
      %v1362 = vpop.f32.mrb[0].mxu0
      %v1363 = vadd.f32 0.0, %v1362
      %v1364 = vpop.f32.mrb[0].mxu0
      %v1365 = vadd.f32 0.0, %v1364
      %1366 = vdwg.mxu0
      %1367 = vmatprep.subr.mxu0 %v1288
      %1368 = vmatpush1.msra.mxu0 %v1287
      %1369 = vmatprep.subr.mxu0 0.0
      %1370 = vmatpush1.msra.mxu0 0.0
      %1371 = vmatprep.subr.mxu0 0.0
      %1372 = vmatpush1.msra.mxu0 0.0
      %1373 = vmatprep.subr.mxu0 0.0
      %1374 = vmatpush1.msra.mxu0 0.0
      %1375 = vmatprep.subr.mxu0 0.0
      %1376 = vmatpush1.msra.mxu0 0.0
      %1377 = vmatprep.subr.mxu0 0.0
      %1378 = vmatpush1.msra.mxu0 0.0
      %1379 = vmatprep.subr.mxu0 0.0
      %1380 = vmatpush1.msra.mxu0 0.0
      %1381 = vmatprep.subr.mxu0 0.0
      %1382 = vmatpush1.msra.mxu0 0.0
      %1383 = vmatprep.subr.mxu0 0.0
      %1384 = vmatpush1.msra.mxu0 0.0
      %1385 = vmatprep.subr.mxu0 0.0
      %1386 = vmatpush1.msra.mxu0 0.0
      %1387 = vmatprep.subr.mxu0 0.0
      %1388 = vmatpush1.msra.mxu0 0.0
      %1389 = vmatprep.subr.mxu0 0.0
      %1390 = vmatpush1.msra.mxu0 0.0
      %1391 = vmatprep.subr.mxu0 0.0
      %1392 = vmatpush1.msra.mxu0 0.0
      %1393 = vmatprep.subr.mxu0 0.0
      %1394 = vmatpush1.msra.mxu0 0.0
      %1395 = vmatprep.subr.mxu0 0.0
      %1396 = vmatpush1.msra.mxu0 0.0
      %1397 = vmatprep.subr.mxu0 0.0
      %1398 = vmatpush1.msra.mxu0 0.0
      %1399 = vmatprep.subr.mxu0 0.0
      %1400 = vmatpush1.msra.mxu0 0.0
      %1401 = vmatprep.subr.mxu0 0.0
      %1402 = vmatpush1.msra.mxu0 0.0
      %1403 = vmatprep.subr.mxu0 0.0
      %1404 = vmatpush1.msra.mxu0 0.0
      %1405 = vmatprep.subr.mxu0 0.0
      %1406 = vmatpush1.msra.mxu0 0.0
      %1407 = vmatprep.subr.mxu0 0.0
      %1408 = vmatpush1.msra.mxu0 0.0
      %1409 = vmatprep.subr.mxu0 0.0
      %1410 = vmatpush1.msra.mxu0 0.0
      %1411 = vmatprep.subr.mxu0 0.0
      %1412 = vmatpush1.msra.mxu0 0.0
      %1413 = vmatprep.subr.mxu0 0.0
      %1414 = vmatpush1.msra.mxu0 0.0
      %1415 = vmatprep.subr.mxu0 0.0
      %1416 = vmatpush1.msra.mxu0 0.0
      %1417 = vmatprep.subr.mxu0 0.0
      %1418 = vmatpush1.msra.mxu0 0.0
      %1419 = vmatprep.subr.mxu0 0.0
      %1420 = vmatpush1.msra.mxu0 0.0
      %1421 = vmatprep.subr.mxu0 0.0
      %1422 = vmatpush1.msra.mxu0 0.0
      %1423 = vmatprep.subr.mxu0 0.0
      %1424 = vmatpush1.msra.mxu0 0.0
      %1425 = vmatprep.subr.mxu0 0.0
      %1426 = vmatpush1.msra.mxu0 0.0
      %1427 = vmatprep.subr.mxu0 0.0
      %1428 = vmatpush1.msra.mxu0 0.0
      %1429 = vmatprep.subr.mxu0 0.0
      %1430 = vmatpush1.msra.mxu0 0.0
      %1431 = vmatprep.mubr.f32.mxu0 0.0
      %1432 = vmatmul.mubr.f32.gmra.mrb[0].mxu0 %v1294
      %v1433 = vpop.f32.mrb[0].mxu0
      %v1434 = vadd.f32 0.0, %v1433
      %v1435 = vpop.f32.mrb[0].mxu0
      %v1436 = vadd.f32 0.0, %v1435
      %1437 = vdwg.mxu0
      %v1438 = vadd.f32 %v1268, %v1363
      %v1439 = vadd.f32 %v1269, %v1365
      %v1440 = vadd.f32 %v1270, %v1434
      %v1441 = vadd.f32 %v1271, %v1436
      %s1442 = scalar_lea.vmem %s2, 56
      %v1443 = vld [vmem:[%s1442] sm:$0xff]
      %1444 = vrot.lane.b32.xlu0 %v270, 111
      %v1445 = vpop.permute.xlu0 %1444
      %1446 = vrot.lane.b32.xlu0 %v271, 111
      %v1447 = vpop.permute.xlu0 %1446
      %1448 = vrot.lane.b32.xlu0 %v272, 111
      %v1449 = vpop.permute.xlu0 %1448
      %1450 = vrot.lane.b32.xlu0 %v273, 111
      %v1451 = vpop.permute.xlu0 %1450
      %1452 = vrot.lane.b32.xlu0 %v276, 111
      %v1453 = vpop.permute.xlu0 %1452
      %vm1454 = vcmask 908288
      %v1455 = vsel %vm1454, %v1445, %v1447
      %v1456 = vsel %vm1454, %v1447, %v1449
      %v1457 = vsel %vm1454, %v1449, %v1451
      %v1458 = vsel %vm1454, %v1451, %v1453
      %v1464 = vsel %vm301, %v1443, 0
      %1466 = vmatprep.subr.mxu0 %v1456
      %1467 = vmatpush1.msra.mxu0 %v1455
      %1468 = vmatprep.subr.mxu0 0.0
      %1469 = vmatpush1.msra.mxu0 0.0
      %1470 = vmatprep.subr.mxu0 0.0
      %1471 = vmatpush1.msra.mxu0 0.0
      %1472 = vmatprep.subr.mxu0 0.0
      %1473 = vmatpush1.msra.mxu0 0.0
      %1474 = vmatprep.subr.mxu0 0.0
      %1475 = vmatpush1.msra.mxu0 0.0
      %1476 = vmatprep.subr.mxu0 0.0
      %1477 = vmatpush1.msra.mxu0 0.0
      %1478 = vmatprep.subr.mxu0 0.0
      %1479 = vmatpush1.msra.mxu0 0.0
      %1480 = vmatprep.subr.mxu0 0.0
      %1481 = vmatpush1.msra.mxu0 0.0
      %1482 = vmatprep.subr.mxu0 0.0
      %1483 = vmatpush1.msra.mxu0 0.0
      %1484 = vmatprep.subr.mxu0 0.0
      %1485 = vmatpush1.msra.mxu0 0.0
      %1486 = vmatprep.subr.mxu0 0.0
      %1487 = vmatpush1.msra.mxu0 0.0
      %1488 = vmatprep.subr.mxu0 0.0
      %1489 = vmatpush1.msra.mxu0 0.0
      %1490 = vmatprep.subr.mxu0 0.0
      %1491 = vmatpush1.msra.mxu0 0.0
      %1492 = vmatprep.subr.mxu0 0.0
      %1493 = vmatpush1.msra.mxu0 0.0
      %1494 = vmatprep.subr.mxu0 0.0
      %1495 = vmatpush1.msra.mxu0 0.0
      %1496 = vmatprep.subr.mxu0 0.0
      %1497 = vmatpush1.msra.mxu0 0.0
      %1498 = vmatprep.subr.mxu0 0.0
      %1499 = vmatpush1.msra.mxu0 0.0
      %1500 = vmatprep.subr.mxu0 0.0
      %1501 = vmatpush1.msra.mxu0 0.0
      %1502 = vmatprep.subr.mxu0 0.0
      %1503 = vmatpush1.msra.mxu0 0.0
      %1504 = vmatprep.subr.mxu0 0.0
      %1505 = vmatpush1.msra.mxu0 0.0
      %1506 = vmatprep.subr.mxu0 0.0
      %1507 = vmatpush1.msra.mxu0 0.0
      %1508 = vmatprep.subr.mxu0 0.0
      %1509 = vmatpush1.msra.mxu0 0.0
      %1510 = vmatprep.subr.mxu0 0.0
      %1511 = vmatpush1.msra.mxu0 0.0
      %1512 = vmatprep.subr.mxu0 0.0
      %1513 = vmatpush1.msra.mxu0 0.0
      %1514 = vmatprep.subr.mxu0 0.0
      %1515 = vmatpush1.msra.mxu0 0.0
      %1516 = vmatprep.subr.mxu0 0.0
      %1517 = vmatpush1.msra.mxu0 0.0
      %1518 = vmatprep.subr.mxu0 0.0
      %1519 = vmatpush1.msra.mxu0 0.0
      %1520 = vmatprep.subr.mxu0 0.0
      %1521 = vmatpush1.msra.mxu0 0.0
      %1522 = vmatprep.subr.mxu0 0.0
      %1523 = vmatpush1.msra.mxu0 0.0
      %1524 = vmatprep.subr.mxu0 0.0
      %1525 = vmatpush1.msra.mxu0 0.0
      %1526 = vmatprep.subr.mxu0 0.0
      %1527 = vmatpush1.msra.mxu0 0.0
      %1528 = vmatprep.subr.mxu0 0.0
      %1529 = vmatpush1.msra.mxu0 0.0
      %1530 = vmatprep.mubr.f32.mxu0 0.0
      %1531 = vmatmul.mubr.f32.gmra.mrb[0].mxu0 %v1464
      %v1532 = vpop.f32.mrb[0].mxu0
      %v1533 = vadd.f32 0.0, %v1532
      %v1534 = vpop.f32.mrb[0].mxu0
      %v1535 = vadd.f32 0.0, %v1534
      %1536 = vdwg.mxu0
      %1537 = vmatprep.subr.mxu0 %v1458
      %1538 = vmatpush1.msra.mxu0 %v1457
      %1539 = vmatprep.subr.mxu0 0.0
      %1540 = vmatpush1.msra.mxu0 0.0
      %1541 = vmatprep.subr.mxu0 0.0
      %1542 = vmatpush1.msra.mxu0 0.0
      %1543 = vmatprep.subr.mxu0 0.0
      %1544 = vmatpush1.msra.mxu0 0.0
      %1545 = vmatprep.subr.mxu0 0.0
      %1546 = vmatpush1.msra.mxu0 0.0
      %1547 = vmatprep.subr.mxu0 0.0
      %1548 = vmatpush1.msra.mxu0 0.0
      %1549 = vmatprep.subr.mxu0 0.0
      %1550 = vmatpush1.msra.mxu0 0.0
      %1551 = vmatprep.subr.mxu0 0.0
      %1552 = vmatpush1.msra.mxu0 0.0
      %1553 = vmatprep.subr.mxu0 0.0
      %1554 = vmatpush1.msra.mxu0 0.0
      %1555 = vmatprep.subr.mxu0 0.0
      %1556 = vmatpush1.msra.mxu0 0.0
      %1557 = vmatprep.subr.mxu0 0.0
      %1558 = vmatpush1.msra.mxu0 0.0
      %1559 = vmatprep.subr.mxu0 0.0
      %1560 = vmatpush1.msra.mxu0 0.0
      %1561 = vmatprep.subr.mxu0 0.0
      %1562 = vmatpush1.msra.mxu0 0.0
      %1563 = vmatprep.subr.mxu0 0.0
      %1564 = vmatpush1.msra.mxu0 0.0
      %1565 = vmatprep.subr.mxu0 0.0
      %1566 = vmatpush1.msra.mxu0 0.0
      %1567 = vmatprep.subr.mxu0 0.0
      %1568 = vmatpush1.msra.mxu0 0.0
      %1569 = vmatprep.subr.mxu0 0.0
      %1570 = vmatpush1.msra.mxu0 0.0
      %1571 = vmatprep.subr.mxu0 0.0
      %1572 = vmatpush1.msra.mxu0 0.0
      %1573 = vmatprep.subr.mxu0 0.0
      %1574 = vmatpush1.msra.mxu0 0.0
      %1575 = vmatprep.subr.mxu0 0.0
      %1576 = vmatpush1.msra.mxu0 0.0
      %1577 = vmatprep.subr.mxu0 0.0
      %1578 = vmatpush1.msra.mxu0 0.0
      %1579 = vmatprep.subr.mxu0 0.0
      %1580 = vmatpush1.msra.mxu0 0.0
      %1581 = vmatprep.subr.mxu0 0.0
      %1582 = vmatpush1.msra.mxu0 0.0
      %1583 = vmatprep.subr.mxu0 0.0
      %1584 = vmatpush1.msra.mxu0 0.0
      %1585 = vmatprep.subr.mxu0 0.0
      %1586 = vmatpush1.msra.mxu0 0.0
      %1587 = vmatprep.subr.mxu0 0.0
      %1588 = vmatpush1.msra.mxu0 0.0
      %1589 = vmatprep.subr.mxu0 0.0
      %1590 = vmatpush1.msra.mxu0 0.0
      %1591 = vmatprep.subr.mxu0 0.0
      %1592 = vmatpush1.msra.mxu0 0.0
      %1593 = vmatprep.subr.mxu0 0.0
      %1594 = vmatpush1.msra.mxu0 0.0
      %1595 = vmatprep.subr.mxu0 0.0
      %1596 = vmatpush1.msra.mxu0 0.0
      %1597 = vmatprep.subr.mxu0 0.0
      %1598 = vmatpush1.msra.mxu0 0.0
      %1599 = vmatprep.subr.mxu0 0.0
      %1600 = vmatpush1.msra.mxu0 0.0
      %1601 = vmatprep.mubr.f32.mxu0 0.0
      %1602 = vmatmul.mubr.f32.gmra.mrb[0].mxu0 %v1464
      %v1603 = vpop.f32.mrb[0].mxu0
      %v1604 = vadd.f32 0.0, %v1603
      %v1605 = vpop.f32.mrb[0].mxu0
      %v1606 = vadd.f32 0.0, %v1605
      %1607 = vdwg.mxu0
      %v1608 = vadd.f32 %v1438, %v1533
      %v1609 = vadd.f32 %v1439, %v1535
      %v1610 = vadd.f32 %v1440, %v1604
      %v1611 = vadd.f32 %v1441, %v1606
      %s1612 = scalar_lea.vmem %s2, 64
      %v1613 = vld [vmem:[%s1612] sm:$0xff]
      %1614 = vrot.lane.b32.xlu0 %v270, 110
      %v1615 = vpop.permute.xlu0 %1614
      %1616 = vrot.lane.b32.xlu0 %v271, 110
      %v1617 = vpop.permute.xlu0 %1616
      %1618 = vrot.lane.b32.xlu0 %v272, 110
      %v1619 = vpop.permute.xlu0 %1618
      %1620 = vrot.lane.b32.xlu0 %v273, 110
      %v1621 = vpop.permute.xlu0 %1620
      %1622 = vrot.lane.b32.xlu0 %v276, 110
      %v1623 = vpop.permute.xlu0 %1622
      %vm1624 = vcmask 900096
      %v1625 = vsel %vm1624, %v1615, %v1617
      %v1626 = vsel %vm1624, %v1617, %v1619
      %v1627 = vsel %vm1624, %v1619, %v1621
      %v1628 = vsel %vm1624, %v1621, %v1623
      %v1634 = vsel %vm301, %v1613, 0
      %1636 = vmatprep.subr.mxu0 %v1626
      %1637 = vmatpush1.msra.mxu0 %v1625
      %1638 = vmatprep.subr.mxu0 0.0
      %1639 = vmatpush1.msra.mxu0 0.0
      %1640 = vmatprep.subr.mxu0 0.0
      %1641 = vmatpush1.msra.mxu0 0.0
      %1642 = vmatprep.subr.mxu0 0.0
      %1643 = vmatpush1.msra.mxu0 0.0
      %1644 = vmatprep.subr.mxu0 0.0
      %1645 = vmatpush1.msra.mxu0 0.0
      %1646 = vmatprep.subr.mxu0 0.0
      %1647 = vmatpush1.msra.mxu0 0.0
      %1648 = vmatprep.subr.mxu0 0.0
      %1649 = vmatpush1.msra.mxu0 0.0
      %1650 = vmatprep.subr.mxu0 0.0
      %1651 = vmatpush1.msra.mxu0 0.0
      %1652 = vmatprep.subr.mxu0 0.0
      %1653 = vmatpush1.msra.mxu0 0.0
      %1654 = vmatprep.subr.mxu0 0.0
      %1655 = vmatpush1.msra.mxu0 0.0
      %1656 = vmatprep.subr.mxu0 0.0
      %1657 = vmatpush1.msra.mxu0 0.0
      %1658 = vmatprep.subr.mxu0 0.0
      %1659 = vmatpush1.msra.mxu0 0.0
      %1660 = vmatprep.subr.mxu0 0.0
      %1661 = vmatpush1.msra.mxu0 0.0
      %1662 = vmatprep.subr.mxu0 0.0
      %1663 = vmatpush1.msra.mxu0 0.0
      %1664 = vmatprep.subr.mxu0 0.0
      %1665 = vmatpush1.msra.mxu0 0.0
      %1666 = vmatprep.subr.mxu0 0.0
      %1667 = vmatpush1.msra.mxu0 0.0
      %1668 = vmatprep.subr.mxu0 0.0
      %1669 = vmatpush1.msra.mxu0 0.0
      %1670 = vmatprep.subr.mxu0 0.0
      %1671 = vmatpush1.msra.mxu0 0.0
      %1672 = vmatprep.subr.mxu0 0.0
      %1673 = vmatpush1.msra.mxu0 0.0
      %1674 = vmatprep.subr.mxu0 0.0
      %1675 = vmatpush1.msra.mxu0 0.0
      %1676 = vmatprep.subr.mxu0 0.0
      %1677 = vmatpush1.msra.mxu0 0.0
      %1678 = vmatprep.subr.mxu0 0.0
      %1679 = vmatpush1.msra.mxu0 0.0
      %1680 = vmatprep.subr.mxu0 0.0
      %1681 = vmatpush1.msra.mxu0 0.0
      %1682 = vmatprep.subr.mxu0 0.0
      %1683 = vmatpush1.msra.mxu0 0.0
      %1684 = vmatprep.subr.mxu0 0.0
      %1685 = vmatpush1.msra.mxu0 0.0
      %1686 = vmatprep.subr.mxu0 0.0
      %1687 = vmatpush1.msra.mxu0 0.0
      %1688 = vmatprep.subr.mxu0 0.0
      %1689 = vmatpush1.msra.mxu0 0.0
      %1690 = vmatprep.subr.mxu0 0.0
      %1691 = vmatpush1.msra.mxu0 0.0
      %1692 = vmatprep.subr.mxu0 0.0
      %1693 = vmatpush1.msra.mxu0 0.0
      %1694 = vmatprep.subr.mxu0 0.0
      %1695 = vmatpush1.msra.mxu0 0.0
      %1696 = vmatprep.subr.mxu0 0.0
      %1697 = vmatpush1.msra.mxu0 0.0
      %1698 = vmatprep.subr.mxu0 0.0
      %1699 = vmatpush1.msra.mxu0 0.0
      %1700 = vmatprep.mubr.f32.mxu0 0.0
      %1701 = vmatmul.mubr.f32.gmra.mrb[0].mxu0 %v1634
      %v1702 = vpop.f32.mrb[0].mxu0
      %v1703 = vadd.f32 0.0, %v1702
      %v1704 = vpop.f32.mrb[0].mxu0
      %v1705 = vadd.f32 0.0, %v1704
      %1706 = vdwg.mxu0
      %1707 = vmatprep.subr.mxu0 %v1628
      %1708 = vmatpush1.msra.mxu0 %v1627
      %1709 = vmatprep.subr.mxu0 0.0
      %1710 = vmatpush1.msra.mxu0 0.0
      %1711 = vmatprep.subr.mxu0 0.0
      %1712 = vmatpush1.msra.mxu0 0.0
      %1713 = vmatprep.subr.mxu0 0.0
      %1714 = vmatpush1.msra.mxu0 0.0
      %1715 = vmatprep.subr.mxu0 0.0
      %1716 = vmatpush1.msra.mxu0 0.0
      %1717 = vmatprep.subr.mxu0 0.0
      %1718 = vmatpush1.msra.mxu0 0.0
      %1719 = vmatprep.subr.mxu0 0.0
      %1720 = vmatpush1.msra.mxu0 0.0
      %1721 = vmatprep.subr.mxu0 0.0
      %1722 = vmatpush1.msra.mxu0 0.0
      %1723 = vmatprep.subr.mxu0 0.0
      %1724 = vmatpush1.msra.mxu0 0.0
      %1725 = vmatprep.subr.mxu0 0.0
      %1726 = vmatpush1.msra.mxu0 0.0
      %1727 = vmatprep.subr.mxu0 0.0
      %1728 = vmatpush1.msra.mxu0 0.0
      %1729 = vmatprep.subr.mxu0 0.0
      %1730 = vmatpush1.msra.mxu0 0.0
      %1731 = vmatprep.subr.mxu0 0.0
      %1732 = vmatpush1.msra.mxu0 0.0
      %1733 = vmatprep.subr.mxu0 0.0
      %1734 = vmatpush1.msra.mxu0 0.0
      %1735 = vmatprep.subr.mxu0 0.0
      %1736 = vmatpush1.msra.mxu0 0.0
      %1737 = vmatprep.subr.mxu0 0.0
      %1738 = vmatpush1.msra.mxu0 0.0
      %1739 = vmatprep.subr.mxu0 0.0
      %1740 = vmatpush1.msra.mxu0 0.0
      %1741 = vmatprep.subr.mxu0 0.0
      %1742 = vmatpush1.msra.mxu0 0.0
      %1743 = vmatprep.subr.mxu0 0.0
      %1744 = vmatpush1.msra.mxu0 0.0
      %1745 = vmatprep.subr.mxu0 0.0
      %1746 = vmatpush1.msra.mxu0 0.0
      %1747 = vmatprep.subr.mxu0 0.0
      %1748 = vmatpush1.msra.mxu0 0.0
      %1749 = vmatprep.subr.mxu0 0.0
      %1750 = vmatpush1.msra.mxu0 0.0
      %1751 = vmatprep.subr.mxu0 0.0
      %1752 = vmatpush1.msra.mxu0 0.0
      %1753 = vmatprep.subr.mxu0 0.0
      %1754 = vmatpush1.msra.mxu0 0.0
      %1755 = vmatprep.subr.mxu0 0.0
      %1756 = vmatpush1.msra.mxu0 0.0
      %1757 = vmatprep.subr.mxu0 0.0
      %1758 = vmatpush1.msra.mxu0 0.0
      %1759 = vmatprep.subr.mxu0 0.0
      %1760 = vmatpush1.msra.mxu0 0.0
      %1761 = vmatprep.subr.mxu0 0.0
      %1762 = vmatpush1.msra.mxu0 0.0
      %1763 = vmatprep.subr.mxu0 0.0
      %1764 = vmatpush1.msra.mxu0 0.0
      %1765 = vmatprep.subr.mxu0 0.0
      %1766 = vmatpush1.msra.mxu0 0.0
      %1767 = vmatprep.subr.mxu0 0.0
      %1768 = vmatpush1.msra.mxu0 0.0
      %1769 = vmatprep.subr.mxu0 0.0
      %1770 = vmatpush1.msra.mxu0 0.0
      %1771 = vmatprep.mubr.f32.mxu0 0.0
      %1772 = vmatmul.mubr.f32.gmra.mrb[0].mxu0 %v1634
      %v1773 = vpop.f32.mrb[0].mxu0
      %v1774 = vadd.f32 0.0, %v1773
      %v1775 = vpop.f32.mrb[0].mxu0
      %v1776 = vadd.f32 0.0, %v1775
      %1777 = vdwg.mxu0
      %v1778 = vadd.f32 %v1608, %v1703
      %v1779 = vadd.f32 %v1609, %v1705
      %v1780 = vadd.f32 %v1610, %v1774
      %v1781 = vadd.f32 %v1611, %v1776
      %s1782 = scalar_lea.vmem %s2, 72
      %v1783 = vld [vmem:[%s1782] sm:$0xff]
      %1784 = vrot.lane.b32.xlu0 %v270, 64
      %v1785 = vpop.permute.xlu0 %1784
      %1786 = vrot.lane.b32.xlu0 %v271, 64
      %v1787 = vpop.permute.xlu0 %1786
      %1788 = vrot.lane.b32.xlu0 %v272, 64
      %v1789 = vpop.permute.xlu0 %1788
      %1790 = vrot.lane.b32.xlu0 %v273, 64
      %v1791 = vpop.permute.xlu0 %1790
      %1792 = vrot.lane.b32.xlu0 %v276, 64
      %v1793 = vpop.permute.xlu0 %1792
      %vm1794 = vcmask 523264
      %v1795 = vsel %vm1794, %v1785, %v1787
      %v1796 = vsel %vm1794, %v1787, %v1789
      %v1797 = vsel %vm1794, %v1789, %v1791
      %v1798 = vsel %vm1794, %v1791, %v1793
      %v1804 = vsel %vm301, %v1783, 0
      %1806 = vmatprep.subr.mxu0 %v1796
      %1807 = vmatpush1.msra.mxu0 %v1795
      %1808 = vmatprep.subr.mxu0 0.0
      %1809 = vmatpush1.msra.mxu0 0.0
      %1810 = vmatprep.subr.mxu0 0.0
      %1811 = vmatpush1.msra.mxu0 0.0
      %1812 = vmatprep.subr.mxu0 0.0
      %1813 = vmatpush1.msra.mxu0 0.0
      %1814 = vmatprep.subr.mxu0 0.0
      %1815 = vmatpush1.msra.mxu0 0.0
      %1816 = vmatprep.subr.mxu0 0.0
      %1817 = vmatpush1.msra.mxu0 0.0
      %1818 = vmatprep.subr.mxu0 0.0
      %1819 = vmatpush1.msra.mxu0 0.0
      %1820 = vmatprep.subr.mxu0 0.0
      %1821 = vmatpush1.msra.mxu0 0.0
      %1822 = vmatprep.subr.mxu0 0.0
      %1823 = vmatpush1.msra.mxu0 0.0
      %1824 = vmatprep.subr.mxu0 0.0
      %1825 = vmatpush1.msra.mxu0 0.0
      %1826 = vmatprep.subr.mxu0 0.0
      %1827 = vmatpush1.msra.mxu0 0.0
      %1828 = vmatprep.subr.mxu0 0.0
      %1829 = vmatpush1.msra.mxu0 0.0
      %1830 = vmatprep.subr.mxu0 0.0
      %1831 = vmatpush1.msra.mxu0 0.0
      %1832 = vmatprep.subr.mxu0 0.0
      %1833 = vmatpush1.msra.mxu0 0.0
      %1834 = vmatprep.subr.mxu0 0.0
      %1835 = vmatpush1.msra.mxu0 0.0
      %1836 = vmatprep.subr.mxu0 0.0
      %1837 = vmatpush1.msra.mxu0 0.0
      %1838 = vmatprep.subr.mxu0 0.0
      %1839 = vmatpush1.msra.mxu0 0.0
      %1840 = vmatprep.subr.mxu0 0.0
      %1841 = vmatpush1.msra.mxu0 0.0
      %1842 = vmatprep.subr.mxu0 0.0
      %1843 = vmatpush1.msra.mxu0 0.0
      %1844 = vmatprep.subr.mxu0 0.0
      %1845 = vmatpush1.msra.mxu0 0.0
      %1846 = vmatprep.subr.mxu0 0.0
      %1847 = vmatpush1.msra.mxu0 0.0
      %1848 = vmatprep.subr.mxu0 0.0
      %1849 = vmatpush1.msra.mxu0 0.0
      %1850 = vmatprep.subr.mxu0 0.0
      %1851 = vmatpush1.msra.mxu0 0.0
      %1852 = vmatprep.subr.mxu0 0.0
      %1853 = vmatpush1.msra.mxu0 0.0
      %1854 = vmatprep.subr.mxu0 0.0
      %1855 = vmatpush1.msra.mxu0 0.0
      %1856 = vmatprep.subr.mxu0 0.0
      %1857 = vmatpush1.msra.mxu0 0.0
      %1858 = vmatprep.subr.mxu0 0.0
      %1859 = vmatpush1.msra.mxu0 0.0
      %1860 = vmatprep.subr.mxu0 0.0
      %1861 = vmatpush1.msra.mxu0 0.0
      %1862 = vmatprep.subr.mxu0 0.0
      %1863 = vmatpush1.msra.mxu0 0.0
      %1864 = vmatprep.subr.mxu0 0.0
      %1865 = vmatpush1.msra.mxu0 0.0
      %1866 = vmatprep.subr.mxu0 0.0
      %1867 = vmatpush1.msra.mxu0 0.0
      %1868 = vmatprep.subr.mxu0 0.0
      %1869 = vmatpush1.msra.mxu0 0.0
      %1870 = vmatprep.mubr.f32.mxu0 0.0
      %1871 = vmatmul.mubr.f32.gmra.mrb[0].mxu0 %v1804
      %v1872 = vpop.f32.mrb[0].mxu0
      %v1873 = vadd.f32 0.0, %v1872
      %v1874 = vpop.f32.mrb[0].mxu0
      %v1875 = vadd.f32 0.0, %v1874
      %1876 = vdwg.mxu0
      %1877 = vmatprep.subr.mxu0 %v1798
      %1878 = vmatpush1.msra.mxu0 %v1797
      %1879 = vmatprep.subr.mxu0 0.0
      %1880 = vmatpush1.msra.mxu0 0.0
      %1881 = vmatprep.subr.mxu0 0.0
      %1882 = vmatpush1.msra.mxu0 0.0
      %1883 = vmatprep.subr.mxu0 0.0
      %1884 = vmatpush1.msra.mxu0 0.0
      %1885 = vmatprep.subr.mxu0 0.0
      %1886 = vmatpush1.msra.mxu0 0.0
      %1887 = vmatprep.subr.mxu0 0.0
      %1888 = vmatpush1.msra.mxu0 0.0
      %1889 = vmatprep.subr.mxu0 0.0
      %1890 = vmatpush1.msra.mxu0 0.0
      %1891 = vmatprep.subr.mxu0 0.0
      %1892 = vmatpush1.msra.mxu0 0.0
      %1893 = vmatprep.subr.mxu0 0.0
      %1894 = vmatpush1.msra.mxu0 0.0
      %1895 = vmatprep.subr.mxu0 0.0
      %1896 = vmatpush1.msra.mxu0 0.0
      %1897 = vmatprep.subr.mxu0 0.0
      %1898 = vmatpush1.msra.mxu0 0.0
      %1899 = vmatprep.subr.mxu0 0.0
      %1900 = vmatpush1.msra.mxu0 0.0
      %1901 = vmatprep.subr.mxu0 0.0
      %1902 = vmatpush1.msra.mxu0 0.0
      %1903 = vmatprep.subr.mxu0 0.0
      %1904 = vmatpush1.msra.mxu0 0.0
      %1905 = vmatprep.subr.mxu0 0.0
      %1906 = vmatpush1.msra.mxu0 0.0
      %1907 = vmatprep.subr.mxu0 0.0
      %1908 = vmatpush1.msra.mxu0 0.0
      %1909 = vmatprep.subr.mxu0 0.0
      %1910 = vmatpush1.msra.mxu0 0.0
      %1911 = vmatprep.subr.mxu0 0.0
      %1912 = vmatpush1.msra.mxu0 0.0
      %1913 = vmatprep.subr.mxu0 0.0
      %1914 = vmatpush1.msra.mxu0 0.0
      %1915 = vmatprep.subr.mxu0 0.0
      %1916 = vmatpush1.msra.mxu0 0.0
      %1917 = vmatprep.subr.mxu0 0.0
      %1918 = vmatpush1.msra.mxu0 0.0
      %1919 = vmatprep.subr.mxu0 0.0
      %1920 = vmatpush1.msra.mxu0 0.0
      %1921 = vmatprep.subr.mxu0 0.0
      %1922 = vmatpush1.msra.mxu0 0.0
      %1923 = vmatprep.subr.mxu0 0.0
      %1924 = vmatpush1.msra.mxu0 0.0
      %1925 = vmatprep.subr.mxu0 0.0
      %1926 = vmatpush1.msra.mxu0 0.0
      %1927 = vmatprep.subr.mxu0 0.0
      %1928 = vmatpush1.msra.mxu0 0.0
      %1929 = vmatprep.subr.mxu0 0.0
      %1930 = vmatpush1.msra.mxu0 0.0
      %1931 = vmatprep.subr.mxu0 0.0
      %1932 = vmatpush1.msra.mxu0 0.0
      %1933 = vmatprep.subr.mxu0 0.0
      %1934 = vmatpush1.msra.mxu0 0.0
      %1935 = vmatprep.subr.mxu0 0.0
      %1936 = vmatpush1.msra.mxu0 0.0
      %1937 = vmatprep.subr.mxu0 0.0
      %1938 = vmatpush1.msra.mxu0 0.0
      %1939 = vmatprep.subr.mxu0 0.0
      %1940 = vmatpush1.msra.mxu0 0.0
      %1941 = vmatprep.mubr.f32.mxu0 0.0
      %1942 = vmatmul.mubr.f32.gmra.mrb[0].mxu0 %v1804
      %v1943 = vpop.f32.mrb[0].mxu0
      %v1944 = vadd.f32 0.0, %v1943
      %v1945 = vpop.f32.mrb[0].mxu0
      %v1946 = vadd.f32 0.0, %v1945
      %1947 = vdwg.mxu0
      %v1948 = vadd.f32 %v1778, %v1873
      %v1949 = vadd.f32 %v1779, %v1875
      %v1950 = vadd.f32 %v1780, %v1944
      %v1951 = vadd.f32 %v1781, %v1946
      %s1952 = scalar_lea.vmem %s2, 80
      %v1953 = vld [vmem:[%s1952] sm:$0xff]
      %1954 = vrot.lane.b32.xlu0 %v270, 63
      %v1955 = vpop.permute.xlu0 %1954
      %1956 = vrot.lane.b32.xlu0 %v271, 63
      %v1957 = vpop.permute.xlu0 %1956
      %1958 = vrot.lane.b32.xlu0 %v272, 63
      %v1959 = vpop.permute.xlu0 %1958
      %1960 = vrot.lane.b32.xlu0 %v273, 63
      %v1961 = vpop.permute.xlu0 %1960
      %1962 = vrot.lane.b32.xlu0 %v276, 63
      %v1963 = vpop.permute.xlu0 %1962
      %vm1964 = vcmask 515072
      %v1965 = vsel %vm1964, %v1955, %v1957
      %v1966 = vsel %vm1964, %v1957, %v1959
      %v1967 = vsel %vm1964, %v1959, %v1961
      %v1968 = vsel %vm1964, %v1961, %v1963
      %v1974 = vsel %vm301, %v1953, 0
      %1976 = vmatprep.subr.mxu0 %v1966
      %1977 = vmatpush1.msra.mxu0 %v1965
      %1978 = vmatprep.subr.mxu0 0.0
      %1979 = vmatpush1.msra.mxu0 0.0
      %1980 = vmatprep.subr.mxu0 0.0
      %1981 = vmatpush1.msra.mxu0 0.0
      %1982 = vmatprep.subr.mxu0 0.0
      %1983 = vmatpush1.msra.mxu0 0.0
      %1984 = vmatprep.subr.mxu0 0.0
      %1985 = vmatpush1.msra.mxu0 0.0
      %1986 = vmatprep.subr.mxu0 0.0
      %1987 = vmatpush1.msra.mxu0 0.0
      %1988 = vmatprep.subr.mxu0 0.0
      %1989 = vmatpush1.msra.mxu0 0.0
      %1990 = vmatprep.subr.mxu0 0.0
      %1991 = vmatpush1.msra.mxu0 0.0
      %1992 = vmatprep.subr.mxu0 0.0
      %1993 = vmatpush1.msra.mxu0 0.0
      %1994 = vmatprep.subr.mxu0 0.0
      %1995 = vmatpush1.msra.mxu0 0.0
      %1996 = vmatprep.subr.mxu0 0.0
      %1997 = vmatpush1.msra.mxu0 0.0
      %1998 = vmatprep.subr.mxu0 0.0
      %1999 = vmatpush1.msra.mxu0 0.0
      %2000 = vmatprep.subr.mxu0 0.0
      %2001 = vmatpush1.msra.mxu0 0.0
      %2002 = vmatprep.subr.mxu0 0.0
      %2003 = vmatpush1.msra.mxu0 0.0
      %2004 = vmatprep.subr.mxu0 0.0
      %2005 = vmatpush1.msra.mxu0 0.0
      %2006 = vmatprep.subr.mxu0 0.0
      %2007 = vmatpush1.msra.mxu0 0.0
      %2008 = vmatprep.subr.mxu0 0.0
      %2009 = vmatpush1.msra.mxu0 0.0
      %2010 = vmatprep.subr.mxu0 0.0
      %2011 = vmatpush1.msra.mxu0 0.0
      %2012 = vmatprep.subr.mxu0 0.0
      %2013 = vmatpush1.msra.mxu0 0.0
      %2014 = vmatprep.subr.mxu0 0.0
      %2015 = vmatpush1.msra.mxu0 0.0
      %2016 = vmatprep.subr.mxu0 0.0
      %2017 = vmatpush1.msra.mxu0 0.0
      %2018 = vmatprep.subr.mxu0 0.0
      %2019 = vmatpush1.msra.mxu0 0.0
      %2020 = vmatprep.subr.mxu0 0.0
      %2021 = vmatpush1.msra.mxu0 0.0
      %2022 = vmatprep.subr.mxu0 0.0
      %2023 = vmatpush1.msra.mxu0 0.0
      %2024 = vmatprep.subr.mxu0 0.0
      %2025 = vmatpush1.msra.mxu0 0.0
      %2026 = vmatprep.subr.mxu0 0.0
      %2027 = vmatpush1.msra.mxu0 0.0
      %2028 = vmatprep.subr.mxu0 0.0
      %2029 = vmatpush1.msra.mxu0 0.0
      %2030 = vmatprep.subr.mxu0 0.0
      %2031 = vmatpush1.msra.mxu0 0.0
      %2032 = vmatprep.subr.mxu0 0.0
      %2033 = vmatpush1.msra.mxu0 0.0
      %2034 = vmatprep.subr.mxu0 0.0
      %2035 = vmatpush1.msra.mxu0 0.0
      %2036 = vmatprep.subr.mxu0 0.0
      %2037 = vmatpush1.msra.mxu0 0.0
      %2038 = vmatprep.subr.mxu0 0.0
      %2039 = vmatpush1.msra.mxu0 0.0
      %2040 = vmatprep.mubr.f32.mxu0 0.0
      %2041 = vmatmul.mubr.f32.gmra.mrb[0].mxu0 %v1974
      %v2042 = vpop.f32.mrb[0].mxu0
      %v2043 = vadd.f32 0.0, %v2042
      %v2044 = vpop.f32.mrb[0].mxu0
      %v2045 = vadd.f32 0.0, %v2044
      %2046 = vdwg.mxu0
      %2047 = vmatprep.subr.mxu0 %v1968
      %2048 = vmatpush1.msra.mxu0 %v1967
      %2049 = vmatprep.subr.mxu0 0.0
      %2050 = vmatpush1.msra.mxu0 0.0
      %2051 = vmatprep.subr.mxu0 0.0
      %2052 = vmatpush1.msra.mxu0 0.0
      %2053 = vmatprep.subr.mxu0 0.0
      %2054 = vmatpush1.msra.mxu0 0.0
      %2055 = vmatprep.subr.mxu0 0.0
      %2056 = vmatpush1.msra.mxu0 0.0
      %2057 = vmatprep.subr.mxu0 0.0
      %2058 = vmatpush1.msra.mxu0 0.0
      %2059 = vmatprep.subr.mxu0 0.0
      %2060 = vmatpush1.msra.mxu0 0.0
      %2061 = vmatprep.subr.mxu0 0.0
      %2062 = vmatpush1.msra.mxu0 0.0
      %2063 = vmatprep.subr.mxu0 0.0
      %2064 = vmatpush1.msra.mxu0 0.0
      %2065 = vmatprep.subr.mxu0 0.0
      %2066 = vmatpush1.msra.mxu0 0.0
      %2067 = vmatprep.subr.mxu0 0.0
      %2068 = vmatpush1.msra.mxu0 0.0
      %2069 = vmatprep.subr.mxu0 0.0
      %2070 = vmatpush1.msra.mxu0 0.0
      %2071 = vmatprep.subr.mxu0 0.0
      %2072 = vmatpush1.msra.mxu0 0.0
      %2073 = vmatprep.subr.mxu0 0.0
      %2074 = vmatpush1.msra.mxu0 0.0
      %2075 = vmatprep.subr.mxu0 0.0
      %2076 = vmatpush1.msra.mxu0 0.0
      %2077 = vmatprep.subr.mxu0 0.0
      %2078 = vmatpush1.msra.mxu0 0.0
      %2079 = vmatprep.subr.mxu0 0.0
      %2080 = vmatpush1.msra.mxu0 0.0
      %2081 = vmatprep.subr.mxu0 0.0
      %2082 = vmatpush1.msra.mxu0 0.0
      %2083 = vmatprep.subr.mxu0 0.0
      %2084 = vmatpush1.msra.mxu0 0.0
      %2085 = vmatprep.subr.mxu0 0.0
      %2086 = vmatpush1.msra.mxu0 0.0
      %2087 = vmatprep.subr.mxu0 0.0
      %2088 = vmatpush1.msra.mxu0 0.0
      %2089 = vmatprep.subr.mxu0 0.0
      %2090 = vmatpush1.msra.mxu0 0.0
      %2091 = vmatprep.subr.mxu0 0.0
      %2092 = vmatpush1.msra.mxu0 0.0
      %2093 = vmatprep.subr.mxu0 0.0
      %2094 = vmatpush1.msra.mxu0 0.0
      %2095 = vmatprep.subr.mxu0 0.0
      %2096 = vmatpush1.msra.mxu0 0.0
      %2097 = vmatprep.subr.mxu0 0.0
      %2098 = vmatpush1.msra.mxu0 0.0
      %2099 = vmatprep.subr.mxu0 0.0
      %2100 = vmatpush1.msra.mxu0 0.0
      %2101 = vmatprep.subr.mxu0 0.0
      %2102 = vmatpush1.msra.mxu0 0.0
      %2103 = vmatprep.subr.mxu0 0.0
      %2104 = vmatpush1.msra.mxu0 0.0
      %2105 = vmatprep.subr.mxu0 0.0
      %2106 = vmatpush1.msra.mxu0 0.0
      %2107 = vmatprep.subr.mxu0 0.0
      %2108 = vmatpush1.msra.mxu0 0.0
      %2109 = vmatprep.subr.mxu0 0.0
      %2110 = vmatpush1.msra.mxu0 0.0
      %2111 = vmatprep.mubr.f32.mxu0 0.0
      %2112 = vmatmul.mubr.f32.gmra.mrb[0].mxu0 %v1974
      %v2113 = vpop.f32.mrb[0].mxu0
      %v2114 = vadd.f32 0.0, %v2113
      %v2115 = vpop.f32.mrb[0].mxu0
      %v2116 = vadd.f32 0.0, %v2115
      %2117 = vdwg.mxu0
      %v2118 = vadd.f32 %v1948, %v2043
      %v2119 = vadd.f32 %v1949, %v2045
      %v2120 = vadd.f32 %v1950, %v2114
      %v2121 = vadd.f32 %v1951, %v2116
      %s2122 = scalar_lea.vmem %s2, 88
      %v2123 = vld [vmem:[%s2122] sm:$0xff]
      %2124 = vrot.lane.b32.xlu0 %v270, 62
      %v2125 = vpop.permute.xlu0 %2124
      %2126 = vrot.lane.b32.xlu0 %v271, 62
      %v2127 = vpop.permute.xlu0 %2126
      %2128 = vrot.lane.b32.xlu0 %v272, 62
      %v2129 = vpop.permute.xlu0 %2128
      %2130 = vrot.lane.b32.xlu0 %v273, 62
      %v2131 = vpop.permute.xlu0 %2130
      %2132 = vrot.lane.b32.xlu0 %v276, 62
      %v2133 = vpop.permute.xlu0 %2132
      %vm2134 = vcmask 506880
      %v2135 = vsel %vm2134, %v2125, %v2127
      %v2136 = vsel %vm2134, %v2127, %v2129
      %v2137 = vsel %vm2134, %v2129, %v2131
      %v2138 = vsel %vm2134, %v2131, %v2133
      %v2144 = vsel %vm301, %v2123, 0
      %2146 = vmatprep.subr.mxu0 %v2136
      %2147 = vmatpush1.msra.mxu0 %v2135
      %2148 = vmatprep.subr.mxu0 0.0
      %2149 = vmatpush1.msra.mxu0 0.0
      %2150 = vmatprep.subr.mxu0 0.0
      %2151 = vmatpush1.msra.mxu0 0.0
      %2152 = vmatprep.subr.mxu0 0.0
      %2153 = vmatpush1.msra.mxu0 0.0
      %2154 = vmatprep.subr.mxu0 0.0
      %2155 = vmatpush1.msra.mxu0 0.0
      %2156 = vmatprep.subr.mxu0 0.0
      %2157 = vmatpush1.msra.mxu0 0.0
      %2158 = vmatprep.subr.mxu0 0.0
      %2159 = vmatpush1.msra.mxu0 0.0
      %2160 = vmatprep.subr.mxu0 0.0
      %2161 = vmatpush1.msra.mxu0 0.0
      %2162 = vmatprep.subr.mxu0 0.0
      %2163 = vmatpush1.msra.mxu0 0.0
      %2164 = vmatprep.subr.mxu0 0.0
      %2165 = vmatpush1.msra.mxu0 0.0
      %2166 = vmatprep.subr.mxu0 0.0
      %2167 = vmatpush1.msra.mxu0 0.0
      %2168 = vmatprep.subr.mxu0 0.0
      %2169 = vmatpush1.msra.mxu0 0.0
      %2170 = vmatprep.subr.mxu0 0.0
      %2171 = vmatpush1.msra.mxu0 0.0
      %2172 = vmatprep.subr.mxu0 0.0
      %2173 = vmatpush1.msra.mxu0 0.0
      %2174 = vmatprep.subr.mxu0 0.0
      %2175 = vmatpush1.msra.mxu0 0.0
      %2176 = vmatprep.subr.mxu0 0.0
      %2177 = vmatpush1.msra.mxu0 0.0
      %2178 = vmatprep.subr.mxu0 0.0
      %2179 = vmatpush1.msra.mxu0 0.0
      %2180 = vmatprep.subr.mxu0 0.0
      %2181 = vmatpush1.msra.mxu0 0.0
      %2182 = vmatprep.subr.mxu0 0.0
      %2183 = vmatpush1.msra.mxu0 0.0
      %2184 = vmatprep.subr.mxu0 0.0
      %2185 = vmatpush1.msra.mxu0 0.0
      %2186 = vmatprep.subr.mxu0 0.0
      %2187 = vmatpush1.msra.mxu0 0.0
      %2188 = vmatprep.subr.mxu0 0.0
      %2189 = vmatpush1.msra.mxu0 0.0
      %2190 = vmatprep.subr.mxu0 0.0
      %2191 = vmatpush1.msra.mxu0 0.0
      %2192 = vmatprep.subr.mxu0 0.0
      %2193 = vmatpush1.msra.mxu0 0.0
      %2194 = vmatprep.subr.mxu0 0.0
      %2195 = vmatpush1.msra.mxu0 0.0
      %2196 = vmatprep.subr.mxu0 0.0
      %2197 = vmatpush1.msra.mxu0 0.0
      %2198 = vmatprep.subr.mxu0 0.0
      %2199 = vmatpush1.msra.mxu0 0.0
      %2200 = vmatprep.subr.mxu0 0.0
      %2201 = vmatpush1.msra.mxu0 0.0
      %2202 = vmatprep.subr.mxu0 0.0
      %2203 = vmatpush1.msra.mxu0 0.0
      %2204 = vmatprep.subr.mxu0 0.0
      %2205 = vmatpush1.msra.mxu0 0.0
      %2206 = vmatprep.subr.mxu0 0.0
      %2207 = vmatpush1.msra.mxu0 0.0
      %2208 = vmatprep.subr.mxu0 0.0
      %2209 = vmatpush1.msra.mxu0 0.0
      %2210 = vmatprep.mubr.f32.mxu0 0.0
      %2211 = vmatmul.mubr.f32.gmra.mrb[0].mxu0 %v2144
      %v2212 = vpop.f32.mrb[0].mxu0
      %v2213 = vadd.f32 0.0, %v2212
      %v2214 = vpop.f32.mrb[0].mxu0
      %v2215 = vadd.f32 0.0, %v2214
      %2216 = vdwg.mxu0
      %2217 = vmatprep.subr.mxu0 %v2138
      %2218 = vmatpush1.msra.mxu0 %v2137
      %2219 = vmatprep.subr.mxu0 0.0
      %2220 = vmatpush1.msra.mxu0 0.0
      %2221 = vmatprep.subr.mxu0 0.0
      %2222 = vmatpush1.msra.mxu0 0.0
      %2223 = vmatprep.subr.mxu0 0.0
      %2224 = vmatpush1.msra.mxu0 0.0
      %2225 = vmatprep.subr.mxu0 0.0
      %2226 = vmatpush1.msra.mxu0 0.0
      %2227 = vmatprep.subr.mxu0 0.0
      %2228 = vmatpush1.msra.mxu0 0.0
      %2229 = vmatprep.subr.mxu0 0.0
      %2230 = vmatpush1.msra.mxu0 0.0
      %2231 = vmatprep.subr.mxu0 0.0
      %2232 = vmatpush1.msra.mxu0 0.0
      %2233 = vmatprep.subr.mxu0 0.0
      %2234 = vmatpush1.msra.mxu0 0.0
      %2235 = vmatprep.subr.mxu0 0.0
      %2236 = vmatpush1.msra.mxu0 0.0
      %2237 = vmatprep.subr.mxu0 0.0
      %2238 = vmatpush1.msra.mxu0 0.0
      %2239 = vmatprep.subr.mxu0 0.0
      %2240 = vmatpush1.msra.mxu0 0.0
      %2241 = vmatprep.subr.mxu0 0.0
      %2242 = vmatpush1.msra.mxu0 0.0
      %2243 = vmatprep.subr.mxu0 0.0
      %2244 = vmatpush1.msra.mxu0 0.0
      %2245 = vmatprep.subr.mxu0 0.0
      %2246 = vmatpush1.msra.mxu0 0.0
      %2247 = vmatprep.subr.mxu0 0.0
      %2248 = vmatpush1.msra.mxu0 0.0
      %2249 = vmatprep.subr.mxu0 0.0
      %2250 = vmatpush1.msra.mxu0 0.0
      %2251 = vmatprep.subr.mxu0 0.0
      %2252 = vmatpush1.msra.mxu0 0.0
      %2253 = vmatprep.subr.mxu0 0.0
      %2254 = vmatpush1.msra.mxu0 0.0
      %2255 = vmatprep.subr.mxu0 0.0
      %2256 = vmatpush1.msra.mxu0 0.0
      %2257 = vmatprep.subr.mxu0 0.0
      %2258 = vmatpush1.msra.mxu0 0.0
      %2259 = vmatprep.subr.mxu0 0.0
      %2260 = vmatpush1.msra.mxu0 0.0
      %2261 = vmatprep.subr.mxu0 0.0
      %2262 = vmatpush1.msra.mxu0 0.0
      %2263 = vmatprep.subr.mxu0 0.0
      %2264 = vmatpush1.msra.mxu0 0.0
      %2265 = vmatprep.subr.mxu0 0.0
      %2266 = vmatpush1.msra.mxu0 0.0
      %2267 = vmatprep.subr.mxu0 0.0
      %2268 = vmatpush1.msra.mxu0 0.0
      %2269 = vmatprep.subr.mxu0 0.0
      %2270 = vmatpush1.msra.mxu0 0.0
      %2271 = vmatprep.subr.mxu0 0.0
      %2272 = vmatpush1.msra.mxu0 0.0
      %2273 = vmatprep.subr.mxu0 0.0
      %2274 = vmatpush1.msra.mxu0 0.0
      %2275 = vmatprep.subr.mxu0 0.0
      %2276 = vmatpush1.msra.mxu0 0.0
      %2277 = vmatprep.subr.mxu0 0.0
      %2278 = vmatpush1.msra.mxu0 0.0
      %2279 = vmatprep.subr.mxu0 0.0
      %2280 = vmatpush1.msra.mxu0 0.0
      %2281 = vmatprep.mubr.f32.mxu0 0.0
      %2282 = vmatmul.mubr.f32.gmra.mrb[0].mxu0 %v2144
      %v2283 = vpop.f32.mrb[0].mxu0
      %v2284 = vadd.f32 0.0, %v2283
      %v2285 = vpop.f32.mrb[0].mxu0
      %v2286 = vadd.f32 0.0, %v2285
      %2287 = vdwg.mxu0
      %v2288 = vadd.f32 %v2118, %v2213
      %v2289 = vadd.f32 %v2119, %v2215
      %v2290 = vadd.f32 %v2120, %v2284
      %v2291 = vadd.f32 %v2121, %v2286
      %s2292 = scalar_lea.vmem %s2, 96
      %v2293 = vld [vmem:[%s2292] sm:$0xff]
      %2294 = vrot.lane.b32.xlu0 %v270, 56
      %v2295 = vpop.permute.xlu0 %2294
      %2296 = vrot.lane.b32.xlu0 %v271, 56
      %v2297 = vpop.permute.xlu0 %2296
      %2298 = vrot.lane.b32.xlu0 %v272, 56
      %v2299 = vpop.permute.xlu0 %2298
      %2300 = vrot.lane.b32.xlu0 %v273, 56
      %v2301 = vpop.permute.xlu0 %2300
      %2302 = vrot.lane.b32.xlu0 %v276, 56
      %v2303 = vpop.permute.xlu0 %2302
      %vm2304 = vcmask 457728
      %v2305 = vsel %vm2304, %v2295, %v2297
      %v2306 = vsel %vm2304, %v2297, %v2299
      %v2307 = vsel %vm2304, %v2299, %v2301
      %v2308 = vsel %vm2304, %v2301, %v2303
      %v2314 = vsel %vm301, %v2293, 0
      %2316 = vmatprep.subr.mxu0 %v2306
      %2317 = vmatpush1.msra.mxu0 %v2305
      %2318 = vmatprep.subr.mxu0 0.0
      %2319 = vmatpush1.msra.mxu0 0.0
      %2320 = vmatprep.subr.mxu0 0.0
      %2321 = vmatpush1.msra.mxu0 0.0
      %2322 = vmatprep.subr.mxu0 0.0
      %2323 = vmatpush1.msra.mxu0 0.0
      %2324 = vmatprep.subr.mxu0 0.0
      %2325 = vmatpush1.msra.mxu0 0.0
      %2326 = vmatprep.subr.mxu0 0.0
      %2327 = vmatpush1.msra.mxu0 0.0
      %2328 = vmatprep.subr.mxu0 0.0
      %2329 = vmatpush1.msra.mxu0 0.0
      %2330 = vmatprep.subr.mxu0 0.0
      %2331 = vmatpush1.msra.mxu0 0.0
      %2332 = vmatprep.subr.mxu0 0.0
      %2333 = vmatpush1.msra.mxu0 0.0
      %2334 = vmatprep.subr.mxu0 0.0
      %2335 = vmatpush1.msra.mxu0 0.0
      %2336 = vmatprep.subr.mxu0 0.0
      %2337 = vmatpush1.msra.mxu0 0.0
      %2338 = vmatprep.subr.mxu0 0.0
      %2339 = vmatpush1.msra.mxu0 0.0
      %2340 = vmatprep.subr.mxu0 0.0
      %2341 = vmatpush1.msra.mxu0 0.0
      %2342 = vmatprep.subr.mxu0 0.0
      %2343 = vmatpush1.msra.mxu0 0.0
      %2344 = vmatprep.subr.mxu0 0.0
      %2345 = vmatpush1.msra.mxu0 0.0
      %2346 = vmatprep.subr.mxu0 0.0
      %2347 = vmatpush1.msra.mxu0 0.0
      %2348 = vmatprep.subr.mxu0 0.0
      %2349 = vmatpush1.msra.mxu0 0.0
      %2350 = vmatprep.subr.mxu0 0.0
      %2351 = vmatpush1.msra.mxu0 0.0
      %2352 = vmatprep.subr.mxu0 0.0
      %2353 = vmatpush1.msra.mxu0 0.0
      %2354 = vmatprep.subr.mxu0 0.0
      %2355 = vmatpush1.msra.mxu0 0.0
      %2356 = vmatprep.subr.mxu0 0.0
      %2357 = vmatpush1.msra.mxu0 0.0
      %2358 = vmatprep.subr.mxu0 0.0
      %2359 = vmatpush1.msra.mxu0 0.0
      %2360 = vmatprep.subr.mxu0 0.0
      %2361 = vmatpush1.msra.mxu0 0.0
      %2362 = vmatprep.subr.mxu0 0.0
      %2363 = vmatpush1.msra.mxu0 0.0
      %2364 = vmatprep.subr.mxu0 0.0
      %2365 = vmatpush1.msra.mxu0 0.0
      %2366 = vmatprep.subr.mxu0 0.0
      %2367 = vmatpush1.msra.mxu0 0.0
      %2368 = vmatprep.subr.mxu0 0.0
      %2369 = vmatpush1.msra.mxu0 0.0
      %2370 = vmatprep.subr.mxu0 0.0
      %2371 = vmatpush1.msra.mxu0 0.0
      %2372 = vmatprep.subr.mxu0 0.0
      %2373 = vmatpush1.msra.mxu0 0.0
      %2374 = vmatprep.subr.mxu0 0.0
      %2375 = vmatpush1.msra.mxu0 0.0
      %2376 = vmatprep.subr.mxu0 0.0
      %2377 = vmatpush1.msra.mxu0 0.0
      %2378 = vmatprep.subr.mxu0 0.0
      %2379 = vmatpush1.msra.mxu0 0.0
      %2380 = vmatprep.mubr.f32.mxu0 0.0
      %2381 = vmatmul.mubr.f32.gmra.mrb[0].mxu0 %v2314
      %v2382 = vpop.f32.mrb[0].mxu0
      %v2383 = vadd.f32 0.0, %v2382
      %v2384 = vpop.f32.mrb[0].mxu0
      %v2385 = vadd.f32 0.0, %v2384
      %2386 = vdwg.mxu0
      %2387 = vmatprep.subr.mxu0 %v2308
      %2388 = vmatpush1.msra.mxu0 %v2307
      %2389 = vmatprep.subr.mxu0 0.0
      %2390 = vmatpush1.msra.mxu0 0.0
      %2391 = vmatprep.subr.mxu0 0.0
      %2392 = vmatpush1.msra.mxu0 0.0
      %2393 = vmatprep.subr.mxu0 0.0
      %2394 = vmatpush1.msra.mxu0 0.0
      %2395 = vmatprep.subr.mxu0 0.0
      %2396 = vmatpush1.msra.mxu0 0.0
      %2397 = vmatprep.subr.mxu0 0.0
      %2398 = vmatpush1.msra.mxu0 0.0
      %2399 = vmatprep.subr.mxu0 0.0
      %2400 = vmatpush1.msra.mxu0 0.0
      %2401 = vmatprep.subr.mxu0 0.0
      %2402 = vmatpush1.msra.mxu0 0.0
      %2403 = vmatprep.subr.mxu0 0.0
      %2404 = vmatpush1.msra.mxu0 0.0
      %2405 = vmatprep.subr.mxu0 0.0
      %2406 = vmatpush1.msra.mxu0 0.0
      %2407 = vmatprep.subr.mxu0 0.0
      %2408 = vmatpush1.msra.mxu0 0.0
      %2409 = vmatprep.subr.mxu0 0.0
      %2410 = vmatpush1.msra.mxu0 0.0
      %2411 = vmatprep.subr.mxu0 0.0
      %2412 = vmatpush1.msra.mxu0 0.0
      %2413 = vmatprep.subr.mxu0 0.0
      %2414 = vmatpush1.msra.mxu0 0.0
      %2415 = vmatprep.subr.mxu0 0.0
      %2416 = vmatpush1.msra.mxu0 0.0
      %2417 = vmatprep.subr.mxu0 0.0
      %2418 = vmatpush1.msra.mxu0 0.0
      %2419 = vmatprep.subr.mxu0 0.0
      %2420 = vmatpush1.msra.mxu0 0.0
      %2421 = vmatprep.subr.mxu0 0.0
      %2422 = vmatpush1.msra.mxu0 0.0
      %2423 = vmatprep.subr.mxu0 0.0
      %2424 = vmatpush1.msra.mxu0 0.0
      %2425 = vmatprep.subr.mxu0 0.0
      %2426 = vmatpush1.msra.mxu0 0.0
      %2427 = vmatprep.subr.mxu0 0.0
      %2428 = vmatpush1.msra.mxu0 0.0
      %2429 = vmatprep.subr.mxu0 0.0
      %2430 = vmatpush1.msra.mxu0 0.0
      %2431 = vmatprep.subr.mxu0 0.0
      %2432 = vmatpush1.msra.mxu0 0.0
      %2433 = vmatprep.subr.mxu0 0.0
      %2434 = vmatpush1.msra.mxu0 0.0
      %2435 = vmatprep.subr.mxu0 0.0
      %2436 = vmatpush1.msra.mxu0 0.0
      %2437 = vmatprep.subr.mxu0 0.0
      %2438 = vmatpush1.msra.mxu0 0.0
      %2439 = vmatprep.subr.mxu0 0.0
      %2440 = vmatpush1.msra.mxu0 0.0
      %2441 = vmatprep.subr.mxu0 0.0
      %2442 = vmatpush1.msra.mxu0 0.0
      %2443 = vmatprep.subr.mxu0 0.0
      %2444 = vmatpush1.msra.mxu0 0.0
      %2445 = vmatprep.subr.mxu0 0.0
      %2446 = vmatpush1.msra.mxu0 0.0
      %2447 = vmatprep.subr.mxu0 0.0
      %2448 = vmatpush1.msra.mxu0 0.0
      %2449 = vmatprep.subr.mxu0 0.0
      %2450 = vmatpush1.msra.mxu0 0.0
      %2451 = vmatprep.mubr.f32.mxu0 0.0
      %2452 = vmatmul.mubr.f32.gmra.mrb[0].mxu0 %v2314
      %v2453 = vpop.f32.mrb[0].mxu0
      %v2454 = vadd.f32 0.0, %v2453
      %v2455 = vpop.f32.mrb[0].mxu0
      %v2456 = vadd.f32 0.0, %v2455
      %2457 = vdwg.mxu0
      %v2458 = vadd.f32 %v2288, %v2383
      %v2459 = vadd.f32 %v2289, %v2385
      %v2460 = vadd.f32 %v2290, %v2454
      %v2461 = vadd.f32 %v2291, %v2456
      %s2462 = scalar_lea.vmem %s2, 104
      %v2463 = vld [vmem:[%s2462] sm:$0xff]
      %2464 = vrot.lane.b32.xlu0 %v270, 55
      %v2465 = vpop.permute.xlu0 %2464
      %2466 = vrot.lane.b32.xlu0 %v271, 55
      %v2467 = vpop.permute.xlu0 %2466
      %2468 = vrot.lane.b32.xlu0 %v272, 55
      %v2469 = vpop.permute.xlu0 %2468
      %2470 = vrot.lane.b32.xlu0 %v273, 55
      %v2471 = vpop.permute.xlu0 %2470
      %2472 = vrot.lane.b32.xlu0 %v276, 55
      %v2473 = vpop.permute.xlu0 %2472
      %vm2474 = vcmask 449536
      %v2475 = vsel %vm2474, %v2465, %v2467
      %v2476 = vsel %vm2474, %v2467, %v2469
      %v2477 = vsel %vm2474, %v2469, %v2471
      %v2478 = vsel %vm2474, %v2471, %v2473
      %v2484 = vsel %vm301, %v2463, 0
      %2486 = vmatprep.subr.mxu0 %v2476
      %2487 = vmatpush1.msra.mxu0 %v2475
      %2488 = vmatprep.subr.mxu0 0.0
      %2489 = vmatpush1.msra.mxu0 0.0
      %2490 = vmatprep.subr.mxu0 0.0
      %2491 = vmatpush1.msra.mxu0 0.0
      %2492 = vmatprep.subr.mxu0 0.0
      %2493 = vmatpush1.msra.mxu0 0.0
      %2494 = vmatprep.subr.mxu0 0.0
      %2495 = vmatpush1.msra.mxu0 0.0
      %2496 = vmatprep.subr.mxu0 0.0
      %2497 = vmatpush1.msra.mxu0 0.0
      %2498 = vmatprep.subr.mxu0 0.0
      %2499 = vmatpush1.msra.mxu0 0.0
      %2500 = vmatprep.subr.mxu0 0.0
      %2501 = vmatpush1.msra.mxu0 0.0
      %2502 = vmatprep.subr.mxu0 0.0
      %2503 = vmatpush1.msra.mxu0 0.0
      %2504 = vmatprep.subr.mxu0 0.0
      %2505 = vmatpush1.msra.mxu0 0.0
      %2506 = vmatprep.subr.mxu0 0.0
      %2507 = vmatpush1.msra.mxu0 0.0
      %2508 = vmatprep.subr.mxu0 0.0
      %2509 = vmatpush1.msra.mxu0 0.0
      %2510 = vmatprep.subr.mxu0 0.0
      %2511 = vmatpush1.msra.mxu0 0.0
      %2512 = vmatprep.subr.mxu0 0.0
      %2513 = vmatpush1.msra.mxu0 0.0
      %2514 = vmatprep.subr.mxu0 0.0
      %2515 = vmatpush1.msra.mxu0 0.0
      %2516 = vmatprep.subr.mxu0 0.0
      %2517 = vmatpush1.msra.mxu0 0.0
      %2518 = vmatprep.subr.mxu0 0.0
      %2519 = vmatpush1.msra.mxu0 0.0
      %2520 = vmatprep.subr.mxu0 0.0
      %2521 = vmatpush1.msra.mxu0 0.0
      %2522 = vmatprep.subr.mxu0 0.0
      %2523 = vmatpush1.msra.mxu0 0.0
      %2524 = vmatprep.subr.mxu0 0.0
      %2525 = vmatpush1.msra.mxu0 0.0
      %2526 = vmatprep.subr.mxu0 0.0
      %2527 = vmatpush1.msra.mxu0 0.0
      %2528 = vmatprep.subr.mxu0 0.0
      %2529 = vmatpush1.msra.mxu0 0.0
      %2530 = vmatprep.subr.mxu0 0.0
      %2531 = vmatpush1.msra.mxu0 0.0
      %2532 = vmatprep.subr.mxu0 0.0
      %2533 = vmatpush1.msra.mxu0 0.0
      %2534 = vmatprep.subr.mxu0 0.0
      %2535 = vmatpush1.msra.mxu0 0.0
      %2536 = vmatprep.subr.mxu0 0.0
      %2537 = vmatpush1.msra.mxu0 0.0
      %2538 = vmatprep.subr.mxu0 0.0
      %2539 = vmatpush1.msra.mxu0 0.0
      %2540 = vmatprep.subr.mxu0 0.0
      %2541 = vmatpush1.msra.mxu0 0.0
      %2542 = vmatprep.subr.mxu0 0.0
      %2543 = vmatpush1.msra.mxu0 0.0
      %2544 = vmatprep.subr.mxu0 0.0
      %2545 = vmatpush1.msra.mxu0 0.0
      %2546 = vmatprep.subr.mxu0 0.0
      %2547 = vmatpush1.msra.mxu0 0.0
      %2548 = vmatprep.subr.mxu0 0.0
      %2549 = vmatpush1.msra.mxu0 0.0
      %2550 = vmatprep.mubr.f32.mxu0 0.0
      %2551 = vmatmul.mubr.f32.gmra.mrb[0].mxu0 %v2484
      %v2552 = vpop.f32.mrb[0].mxu0
      %v2553 = vadd.f32 0.0, %v2552
      %v2554 = vpop.f32.mrb[0].mxu0
      %v2555 = vadd.f32 0.0, %v2554
      %2556 = vdwg.mxu0
      %2557 = vmatprep.subr.mxu0 %v2478
      %2558 = vmatpush1.msra.mxu0 %v2477
      %2559 = vmatprep.subr.mxu0 0.0
      %2560 = vmatpush1.msra.mxu0 0.0
      %2561 = vmatprep.subr.mxu0 0.0
      %2562 = vmatpush1.msra.mxu0 0.0
      %2563 = vmatprep.subr.mxu0 0.0
      %2564 = vmatpush1.msra.mxu0 0.0
      %2565 = vmatprep.subr.mxu0 0.0
      %2566 = vmatpush1.msra.mxu0 0.0
      %2567 = vmatprep.subr.mxu0 0.0
      %2568 = vmatpush1.msra.mxu0 0.0
      %2569 = vmatprep.subr.mxu0 0.0
      %2570 = vmatpush1.msra.mxu0 0.0
      %2571 = vmatprep.subr.mxu0 0.0
      %2572 = vmatpush1.msra.mxu0 0.0
      %2573 = vmatprep.subr.mxu0 0.0
      %2574 = vmatpush1.msra.mxu0 0.0
      %2575 = vmatprep.subr.mxu0 0.0
      %2576 = vmatpush1.msra.mxu0 0.0
      %2577 = vmatprep.subr.mxu0 0.0
      %2578 = vmatpush1.msra.mxu0 0.0
      %2579 = vmatprep.subr.mxu0 0.0
      %2580 = vmatpush1.msra.mxu0 0.0
      %2581 = vmatprep.subr.mxu0 0.0
      %2582 = vmatpush1.msra.mxu0 0.0
      %2583 = vmatprep.subr.mxu0 0.0
      %2584 = vmatpush1.msra.mxu0 0.0
      %2585 = vmatprep.subr.mxu0 0.0
      %2586 = vmatpush1.msra.mxu0 0.0
      %2587 = vmatprep.subr.mxu0 0.0
      %2588 = vmatpush1.msra.mxu0 0.0
      %2589 = vmatprep.subr.mxu0 0.0
      %2590 = vmatpush1.msra.mxu0 0.0
      %2591 = vmatprep.subr.mxu0 0.0
      %2592 = vmatpush1.msra.mxu0 0.0
      %2593 = vmatprep.subr.mxu0 0.0
      %2594 = vmatpush1.msra.mxu0 0.0
      %2595 = vmatprep.subr.mxu0 0.0
      %2596 = vmatpush1.msra.mxu0 0.0
      %2597 = vmatprep.subr.mxu0 0.0
      %2598 = vmatpush1.msra.mxu0 0.0
      %2599 = vmatprep.subr.mxu0 0.0
      %2600 = vmatpush1.msra.mxu0 0.0
      %2601 = vmatprep.subr.mxu0 0.0
      %2602 = vmatpush1.msra.mxu0 0.0
      %2603 = vmatprep.subr.mxu0 0.0
      %2604 = vmatpush1.msra.mxu0 0.0
      %2605 = vmatprep.subr.mxu0 0.0
      %2606 = vmatpush1.msra.mxu0 0.0
      %2607 = vmatprep.subr.mxu0 0.0
      %2608 = vmatpush1.msra.mxu0 0.0
      %2609 = vmatprep.subr.mxu0 0.0
      %2610 = vmatpush1.msra.mxu0 0.0
      %2611 = vmatprep.subr.mxu0 0.0
      %2612 = vmatpush1.msra.mxu0 0.0
      %2613 = vmatprep.subr.mxu0 0.0
      %2614 = vmatpush1.msra.mxu0 0.0
      %2615 = vmatprep.subr.mxu0 0.0
      %2616 = vmatpush1.msra.mxu0 0.0
      %2617 = vmatprep.subr.mxu0 0.0
      %2618 = vmatpush1.msra.mxu0 0.0
      %2619 = vmatprep.subr.mxu0 0.0
      %2620 = vmatpush1.msra.mxu0 0.0
      %2621 = vmatprep.mubr.f32.mxu0 0.0
      %2622 = vmatmul.mubr.f32.gmra.mrb[0].mxu0 %v2484
      %v2623 = vpop.f32.mrb[0].mxu0
      %v2624 = vadd.f32 0.0, %v2623
      %v2625 = vpop.f32.mrb[0].mxu0
      %v2626 = vadd.f32 0.0, %v2625
      %2627 = vdwg.mxu0
      %v2628 = vadd.f32 %v2458, %v2553
      %v2629 = vadd.f32 %v2459, %v2555
      %v2630 = vadd.f32 %v2460, %v2624
      %v2631 = vadd.f32 %v2461, %v2626
      %s2632 = scalar_lea.vmem %s2, 112
      %v2633 = vld [vmem:[%s2632] sm:$0xff]
      %2634 = vrot.lane.b32.xlu0 %v270, 54
      %v2635 = vpop.permute.xlu0 %2634
      %2636 = vrot.lane.b32.xlu0 %v271, 54
      %v2637 = vpop.permute.xlu0 %2636
      %2638 = vrot.lane.b32.xlu0 %v272, 54
      %v2639 = vpop.permute.xlu0 %2638
      %2640 = vrot.lane.b32.xlu0 %v273, 54
      %v2641 = vpop.permute.xlu0 %2640
      %2642 = vrot.lane.b32.xlu0 %v276, 54
      %v2643 = vpop.permute.xlu0 %2642
      %vm2644 = vcmask 441344
      %v2645 = vsel %vm2644, %v2635, %v2637
      %v2646 = vsel %vm2644, %v2637, %v2639
      %v2647 = vsel %vm2644, %v2639, %v2641
      %v2648 = vsel %vm2644, %v2641, %v2643
      %v2654 = vsel %vm301, %v2633, 0
      %2656 = vmatprep.subr.mxu0 %v2646
      %2657 = vmatpush1.msra.mxu0 %v2645
      %2658 = vmatprep.subr.mxu0 0.0
      %2659 = vmatpush1.msra.mxu0 0.0
      %2660 = vmatprep.subr.mxu0 0.0
      %2661 = vmatpush1.msra.mxu0 0.0
      %2662 = vmatprep.subr.mxu0 0.0
      %2663 = vmatpush1.msra.mxu0 0.0
      %2664 = vmatprep.subr.mxu0 0.0
      %2665 = vmatpush1.msra.mxu0 0.0
      %2666 = vmatprep.subr.mxu0 0.0
      %2667 = vmatpush1.msra.mxu0 0.0
      %2668 = vmatprep.subr.mxu0 0.0
      %2669 = vmatpush1.msra.mxu0 0.0
      %2670 = vmatprep.subr.mxu0 0.0
      %2671 = vmatpush1.msra.mxu0 0.0
      %2672 = vmatprep.subr.mxu0 0.0
      %2673 = vmatpush1.msra.mxu0 0.0
      %2674 = vmatprep.subr.mxu0 0.0
      %2675 = vmatpush1.msra.mxu0 0.0
      %2676 = vmatprep.subr.mxu0 0.0
      %2677 = vmatpush1.msra.mxu0 0.0
      %2678 = vmatprep.subr.mxu0 0.0
      %2679 = vmatpush1.msra.mxu0 0.0
      %2680 = vmatprep.subr.mxu0 0.0
      %2681 = vmatpush1.msra.mxu0 0.0
      %2682 = vmatprep.subr.mxu0 0.0
      %2683 = vmatpush1.msra.mxu0 0.0
      %2684 = vmatprep.subr.mxu0 0.0
      %2685 = vmatpush1.msra.mxu0 0.0
      %2686 = vmatprep.subr.mxu0 0.0
      %2687 = vmatpush1.msra.mxu0 0.0
      %2688 = vmatprep.subr.mxu0 0.0
      %2689 = vmatpush1.msra.mxu0 0.0
      %2690 = vmatprep.subr.mxu0 0.0
      %2691 = vmatpush1.msra.mxu0 0.0
      %2692 = vmatprep.subr.mxu0 0.0
      %2693 = vmatpush1.msra.mxu0 0.0
      %2694 = vmatprep.subr.mxu0 0.0
      %2695 = vmatpush1.msra.mxu0 0.0
      %2696 = vmatprep.subr.mxu0 0.0
      %2697 = vmatpush1.msra.mxu0 0.0
      %2698 = vmatprep.subr.mxu0 0.0
      %2699 = vmatpush1.msra.mxu0 0.0
      %2700 = vmatprep.subr.mxu0 0.0
      %2701 = vmatpush1.msra.mxu0 0.0
      %2702 = vmatprep.subr.mxu0 0.0
      %2703 = vmatpush1.msra.mxu0 0.0
      %2704 = vmatprep.subr.mxu0 0.0
      %2705 = vmatpush1.msra.mxu0 0.0
      %2706 = vmatprep.subr.mxu0 0.0
      %2707 = vmatpush1.msra.mxu0 0.0
      %2708 = vmatprep.subr.mxu0 0.0
      %2709 = vmatpush1.msra.mxu0 0.0
      %2710 = vmatprep.subr.mxu0 0.0
      %2711 = vmatpush1.msra.mxu0 0.0
      %2712 = vmatprep.subr.mxu0 0.0
      %2713 = vmatpush1.msra.mxu0 0.0
      %2714 = vmatprep.subr.mxu0 0.0
      %2715 = vmatpush1.msra.mxu0 0.0
      %2716 = vmatprep.subr.mxu0 0.0
      %2717 = vmatpush1.msra.mxu0 0.0
      %2718 = vmatprep.subr.mxu0 0.0
      %2719 = vmatpush1.msra.mxu0 0.0
      %2720 = vmatprep.mubr.f32.mxu0 0.0
      %2721 = vmatmul.mubr.f32.gmra.mrb[0].mxu0 %v2654
      %v2722 = vpop.f32.mrb[0].mxu0
      %v2723 = vadd.f32 0.0, %v2722
      %v2724 = vpop.f32.mrb[0].mxu0
      %v2725 = vadd.f32 0.0, %v2724
      %2726 = vdwg.mxu0
      %2727 = vmatprep.subr.mxu0 %v2648
      %2728 = vmatpush1.msra.mxu0 %v2647
      %2729 = vmatprep.subr.mxu0 0.0
      %2730 = vmatpush1.msra.mxu0 0.0
      %2731 = vmatprep.subr.mxu0 0.0
      %2732 = vmatpush1.msra.mxu0 0.0
      %2733 = vmatprep.subr.mxu0 0.0
      %2734 = vmatpush1.msra.mxu0 0.0
      %2735 = vmatprep.subr.mxu0 0.0
      %2736 = vmatpush1.msra.mxu0 0.0
      %2737 = vmatprep.subr.mxu0 0.0
      %2738 = vmatpush1.msra.mxu0 0.0
      %2739 = vmatprep.subr.mxu0 0.0
      %2740 = vmatpush1.msra.mxu0 0.0
      %2741 = vmatprep.subr.mxu0 0.0
      %2742 = vmatpush1.msra.mxu0 0.0
      %2743 = vmatprep.subr.mxu0 0.0
      %2744 = vmatpush1.msra.mxu0 0.0
      %2745 = vmatprep.subr.mxu0 0.0
      %2746 = vmatpush1.msra.mxu0 0.0
      %2747 = vmatprep.subr.mxu0 0.0
      %2748 = vmatpush1.msra.mxu0 0.0
      %2749 = vmatprep.subr.mxu0 0.0
      %2750 = vmatpush1.msra.mxu0 0.0
      %2751 = vmatprep.subr.mxu0 0.0
      %2752 = vmatpush1.msra.mxu0 0.0
      %2753 = vmatprep.subr.mxu0 0.0
      %2754 = vmatpush1.msra.mxu0 0.0
      %2755 = vmatprep.subr.mxu0 0.0
      %2756 = vmatpush1.msra.mxu0 0.0
      %2757 = vmatprep.subr.mxu0 0.0
      %2758 = vmatpush1.msra.mxu0 0.0
      %2759 = vmatprep.subr.mxu0 0.0
      %2760 = vmatpush1.msra.mxu0 0.0
      %2761 = vmatprep.subr.mxu0 0.0
      %2762 = vmatpush1.msra.mxu0 0.0
      %2763 = vmatprep.subr.mxu0 0.0
      %2764 = vmatpush1.msra.mxu0 0.0
      %2765 = vmatprep.subr.mxu0 0.0
      %2766 = vmatpush1.msra.mxu0 0.0
      %2767 = vmatprep.subr.mxu0 0.0
      %2768 = vmatpush1.msra.mxu0 0.0
      %2769 = vmatprep.subr.mxu0 0.0
      %2770 = vmatpush1.msra.mxu0 0.0
      %2771 = vmatprep.subr.mxu0 0.0
      %2772 = vmatpush1.msra.mxu0 0.0
      %2773 = vmatprep.subr.mxu0 0.0
      %2774 = vmatpush1.msra.mxu0 0.0
      %2775 = vmatprep.subr.mxu0 0.0
      %2776 = vmatpush1.msra.mxu0 0.0
      %2777 = vmatprep.subr.mxu0 0.0
      %2778 = vmatpush1.msra.mxu0 0.0
      %2779 = vmatprep.subr.mxu0 0.0
      %2780 = vmatpush1.msra.mxu0 0.0
      %2781 = vmatprep.subr.mxu0 0.0
      %2782 = vmatpush1.msra.mxu0 0.0
      %2783 = vmatprep.subr.mxu0 0.0
      %2784 = vmatpush1.msra.mxu0 0.0
      %2785 = vmatprep.subr.mxu0 0.0
      %2786 = vmatpush1.msra.mxu0 0.0
      %2787 = vmatprep.subr.mxu0 0.0
      %2788 = vmatpush1.msra.mxu0 0.0
      %2789 = vmatprep.subr.mxu0 0.0
      %2790 = vmatpush1.msra.mxu0 0.0
      %2791 = vmatprep.mubr.f32.mxu0 0.0
      %2792 = vmatmul.mubr.f32.gmra.mrb[0].mxu0 %v2654
      %v2793 = vpop.f32.mrb[0].mxu0
      %v2794 = vadd.f32 0.0, %v2793
      %v2795 = vpop.f32.mrb[0].mxu0
      %v2796 = vadd.f32 0.0, %v2795
      %2797 = vdwg.mxu0
      %v2798 = vadd.f32 %v2628, %v2723
      %v2799 = vadd.f32 %v2629, %v2725
      %v2800 = vadd.f32 %v2630, %v2794
      %v2801 = vadd.f32 %v2631, %v2796
      %s2802 = scalar_lea.vmem %s2, 120
      %v2803 = vld [vmem:[%s2802] sm:$0xff]
      %2804 = vrot.lane.b32.xlu0 %v270, 48
      %v2805 = vpop.permute.xlu0 %2804
      %2806 = vrot.lane.b32.xlu0 %v271, 48
      %v2807 = vpop.permute.xlu0 %2806
      %2808 = vrot.lane.b32.xlu0 %v272, 48
      %v2809 = vpop.permute.xlu0 %2808
      %2810 = vrot.lane.b32.xlu0 %v273, 48
      %v2811 = vpop.permute.xlu0 %2810
      %2812 = vrot.lane.b32.xlu0 %v276, 48
      %v2813 = vpop.permute.xlu0 %2812
      %vm2814 = vcmask 392192
      %v2815 = vsel %vm2814, %v2805, %v2807
      %v2816 = vsel %vm2814, %v2807, %v2809
      %v2817 = vsel %vm2814, %v2809, %v2811
      %v2818 = vsel %vm2814, %v2811, %v2813
      %v2824 = vsel %vm301, %v2803, 0
      %2826 = vmatprep.subr.mxu0 %v2816
      %2827 = vmatpush1.msra.mxu0 %v2815
      %2828 = vmatprep.subr.mxu0 0.0
      %2829 = vmatpush1.msra.mxu0 0.0
      %2830 = vmatprep.subr.mxu0 0.0
      %2831 = vmatpush1.msra.mxu0 0.0
      %2832 = vmatprep.subr.mxu0 0.0
      %2833 = vmatpush1.msra.mxu0 0.0
      %2834 = vmatprep.subr.mxu0 0.0
      %2835 = vmatpush1.msra.mxu0 0.0
      %2836 = vmatprep.subr.mxu0 0.0
      %2837 = vmatpush1.msra.mxu0 0.0
      %2838 = vmatprep.subr.mxu0 0.0
      %2839 = vmatpush1.msra.mxu0 0.0
      %2840 = vmatprep.subr.mxu0 0.0
      %2841 = vmatpush1.msra.mxu0 0.0
      %2842 = vmatprep.subr.mxu0 0.0
      %2843 = vmatpush1.msra.mxu0 0.0
      %2844 = vmatprep.subr.mxu0 0.0
      %2845 = vmatpush1.msra.mxu0 0.0
      %2846 = vmatprep.subr.mxu0 0.0
      %2847 = vmatpush1.msra.mxu0 0.0
      %2848 = vmatprep.subr.mxu0 0.0
      %2849 = vmatpush1.msra.mxu0 0.0
      %2850 = vmatprep.subr.mxu0 0.0
      %2851 = vmatpush1.msra.mxu0 0.0
      %2852 = vmatprep.subr.mxu0 0.0
      %2853 = vmatpush1.msra.mxu0 0.0
      %2854 = vmatprep.subr.mxu0 0.0
      %2855 = vmatpush1.msra.mxu0 0.0
      %2856 = vmatprep.subr.mxu0 0.0
      %2857 = vmatpush1.msra.mxu0 0.0
      %2858 = vmatprep.subr.mxu0 0.0
      %2859 = vmatpush1.msra.mxu0 0.0
      %2860 = vmatprep.subr.mxu0 0.0
      %2861 = vmatpush1.msra.mxu0 0.0
      %2862 = vmatprep.subr.mxu0 0.0
      %2863 = vmatpush1.msra.mxu0 0.0
      %2864 = vmatprep.subr.mxu0 0.0
      %2865 = vmatpush1.msra.mxu0 0.0
      %2866 = vmatprep.subr.mxu0 0.0
      %2867 = vmatpush1.msra.mxu0 0.0
      %2868 = vmatprep.subr.mxu0 0.0
      %2869 = vmatpush1.msra.mxu0 0.0
      %2870 = vmatprep.subr.mxu0 0.0
      %2871 = vmatpush1.msra.mxu0 0.0
      %2872 = vmatprep.subr.mxu0 0.0
      %2873 = vmatpush1.msra.mxu0 0.0
      %2874 = vmatprep.subr.mxu0 0.0
      %2875 = vmatpush1.msra.mxu0 0.0
      %2876 = vmatprep.subr.mxu0 0.0
      %2877 = vmatpush1.msra.mxu0 0.0
      %2878 = vmatprep.subr.mxu0 0.0
      %2879 = vmatpush1.msra.mxu0 0.0
      %2880 = vmatprep.subr.mxu0 0.0
      %2881 = vmatpush1.msra.mxu0 0.0
      %2882 = vmatprep.subr.mxu0 0.0
      %2883 = vmatpush1.msra.mxu0 0.0
      %2884 = vmatprep.subr.mxu0 0.0
      %2885 = vmatpush1.msra.mxu0 0.0
      %2886 = vmatprep.subr.mxu0 0.0
      %2887 = vmatpush1.msra.mxu0 0.0
      %2888 = vmatprep.subr.mxu0 0.0
      %2889 = vmatpush1.msra.mxu0 0.0
      %2890 = vmatprep.mubr.f32.mxu0 0.0
      %2891 = vmatmul.mubr.f32.gmra.mrb[0].mxu0 %v2824
      %v2892 = vpop.f32.mrb[0].mxu0
      %v2893 = vadd.f32 0.0, %v2892
      %v2894 = vpop.f32.mrb[0].mxu0
      %v2895 = vadd.f32 0.0, %v2894
      %2896 = vdwg.mxu0
      %2897 = vmatprep.subr.mxu0 %v2818
      %2898 = vmatpush1.msra.mxu0 %v2817
      %2899 = vmatprep.subr.mxu0 0.0
      %2900 = vmatpush1.msra.mxu0 0.0
      %2901 = vmatprep.subr.mxu0 0.0
      %2902 = vmatpush1.msra.mxu0 0.0
      %2903 = vmatprep.subr.mxu0 0.0
      %2904 = vmatpush1.msra.mxu0 0.0
      %2905 = vmatprep.subr.mxu0 0.0
      %2906 = vmatpush1.msra.mxu0 0.0
      %2907 = vmatprep.subr.mxu0 0.0
      %2908 = vmatpush1.msra.mxu0 0.0
      %2909 = vmatprep.subr.mxu0 0.0
      %2910 = vmatpush1.msra.mxu0 0.0
      %2911 = vmatprep.subr.mxu0 0.0
      %2912 = vmatpush1.msra.mxu0 0.0
      %2913 = vmatprep.subr.mxu0 0.0
      %2914 = vmatpush1.msra.mxu0 0.0
      %2915 = vmatprep.subr.mxu0 0.0
      %2916 = vmatpush1.msra.mxu0 0.0
      %2917 = vmatprep.subr.mxu0 0.0
      %2918 = vmatpush1.msra.mxu0 0.0
      %2919 = vmatprep.subr.mxu0 0.0
      %2920 = vmatpush1.msra.mxu0 0.0
      %2921 = vmatprep.subr.mxu0 0.0
      %2922 = vmatpush1.msra.mxu0 0.0
      %2923 = vmatprep.subr.mxu0 0.0
      %2924 = vmatpush1.msra.mxu0 0.0
      %2925 = vmatprep.subr.mxu0 0.0
      %2926 = vmatpush1.msra.mxu0 0.0
      %2927 = vmatprep.subr.mxu0 0.0
      %2928 = vmatpush1.msra.mxu0 0.0
      %2929 = vmatprep.subr.mxu0 0.0
      %2930 = vmatpush1.msra.mxu0 0.0
      %2931 = vmatprep.subr.mxu0 0.0
      %2932 = vmatpush1.msra.mxu0 0.0
      %2933 = vmatprep.subr.mxu0 0.0
      %2934 = vmatpush1.msra.mxu0 0.0
      %2935 = vmatprep.subr.mxu0 0.0
      %2936 = vmatpush1.msra.mxu0 0.0
      %2937 = vmatprep.subr.mxu0 0.0
      %2938 = vmatpush1.msra.mxu0 0.0
      %2939 = vmatprep.subr.mxu0 0.0
      %2940 = vmatpush1.msra.mxu0 0.0
      %2941 = vmatprep.subr.mxu0 0.0
      %2942 = vmatpush1.msra.mxu0 0.0
      %2943 = vmatprep.subr.mxu0 0.0
      %2944 = vmatpush1.msra.mxu0 0.0
      %2945 = vmatprep.subr.mxu0 0.0
      %2946 = vmatpush1.msra.mxu0 0.0
      %2947 = vmatprep.subr.mxu0 0.0
      %2948 = vmatpush1.msra.mxu0 0.0
      %2949 = vmatprep.subr.mxu0 0.0
      %2950 = vmatpush1.msra.mxu0 0.0
      %2951 = vmatprep.subr.mxu0 0.0
      %2952 = vmatpush1.msra.mxu0 0.0
      %2953 = vmatprep.subr.mxu0 0.0
      %2954 = vmatpush1.msra.mxu0 0.0
      %2955 = vmatprep.subr.mxu0 0.0
      %2956 = vmatpush1.msra.mxu0 0.0
      %2957 = vmatprep.subr.mxu0 0.0
      %2958 = vmatpush1.msra.mxu0 0.0
      %2959 = vmatprep.subr.mxu0 0.0
      %2960 = vmatpush1.msra.mxu0 0.0
      %2961 = vmatprep.mubr.f32.mxu0 0.0
      %2962 = vmatmul.mubr.f32.gmra.mrb[0].mxu0 %v2824
      %v2963 = vpop.f32.mrb[0].mxu0
      %v2964 = vadd.f32 0.0, %v2963
      %v2965 = vpop.f32.mrb[0].mxu0
      %v2966 = vadd.f32 0.0, %v2965
      %2967 = vdwg.mxu0
      %v2968 = vadd.f32 %v2798, %v2893
      %v2969 = vadd.f32 %v2799, %v2895
      %v2970 = vadd.f32 %v2800, %v2964
      %v2971 = vadd.f32 %v2801, %v2966
      %s2972 = scalar_lea.vmem %s2, 128
      %v2973 = vld [vmem:[%s2972] sm:$0xff]
      %2974 = vrot.lane.b32.xlu0 %v270, 47
      %v2975 = vpop.permute.xlu0 %2974
      %2976 = vrot.lane.b32.xlu0 %v271, 47
      %v2977 = vpop.permute.xlu0 %2976
      %2978 = vrot.lane.b32.xlu0 %v272, 47
      %v2979 = vpop.permute.xlu0 %2978
      %2980 = vrot.lane.b32.xlu0 %v273, 47
      %v2981 = vpop.permute.xlu0 %2980
      %2982 = vrot.lane.b32.xlu0 %v276, 47
      %v2983 = vpop.permute.xlu0 %2982
      %vm2984 = vcmask 384000
      %v2985 = vsel %vm2984, %v2975, %v2977
      %v2986 = vsel %vm2984, %v2977, %v2979
      %v2987 = vsel %vm2984, %v2979, %v2981
      %v2988 = vsel %vm2984, %v2981, %v2983
      %v2994 = vsel %vm301, %v2973, 0
      %2996 = vmatprep.subr.mxu0 %v2986
      %2997 = vmatpush1.msra.mxu0 %v2985
      %2998 = vmatprep.subr.mxu0 0.0
      %2999 = vmatpush1.msra.mxu0 0.0
      %3000 = vmatprep.subr.mxu0 0.0
      %3001 = vmatpush1.msra.mxu0 0.0
      %3002 = vmatprep.subr.mxu0 0.0
      %3003 = vmatpush1.msra.mxu0 0.0
      %3004 = vmatprep.subr.mxu0 0.0
      %3005 = vmatpush1.msra.mxu0 0.0
      %3006 = vmatprep.subr.mxu0 0.0
      %3007 = vmatpush1.msra.mxu0 0.0
      %3008 = vmatprep.subr.mxu0 0.0
      %3009 = vmatpush1.msra.mxu0 0.0
      %3010 = vmatprep.subr.mxu0 0.0
      %3011 = vmatpush1.msra.mxu0 0.0
      %3012 = vmatprep.subr.mxu0 0.0
      %3013 = vmatpush1.msra.mxu0 0.0
      %3014 = vmatprep.subr.mxu0 0.0
      %3015 = vmatpush1.msra.mxu0 0.0
      %3016 = vmatprep.subr.mxu0 0.0
      %3017 = vmatpush1.msra.mxu0 0.0
      %3018 = vmatprep.subr.mxu0 0.0
      %3019 = vmatpush1.msra.mxu0 0.0
      %3020 = vmatprep.subr.mxu0 0.0
      %3021 = vmatpush1.msra.mxu0 0.0
      %3022 = vmatprep.subr.mxu0 0.0
      %3023 = vmatpush1.msra.mxu0 0.0
      %3024 = vmatprep.subr.mxu0 0.0
      %3025 = vmatpush1.msra.mxu0 0.0
      %3026 = vmatprep.subr.mxu0 0.0
      %3027 = vmatpush1.msra.mxu0 0.0
      %3028 = vmatprep.subr.mxu0 0.0
      %3029 = vmatpush1.msra.mxu0 0.0
      %3030 = vmatprep.subr.mxu0 0.0
      %3031 = vmatpush1.msra.mxu0 0.0
      %3032 = vmatprep.subr.mxu0 0.0
      %3033 = vmatpush1.msra.mxu0 0.0
      %3034 = vmatprep.subr.mxu0 0.0
      %3035 = vmatpush1.msra.mxu0 0.0
      %3036 = vmatprep.subr.mxu0 0.0
      %3037 = vmatpush1.msra.mxu0 0.0
      %3038 = vmatprep.subr.mxu0 0.0
      %3039 = vmatpush1.msra.mxu0 0.0
      %3040 = vmatprep.subr.mxu0 0.0
      %3041 = vmatpush1.msra.mxu0 0.0
      %3042 = vmatprep.subr.mxu0 0.0
      %3043 = vmatpush1.msra.mxu0 0.0
      %3044 = vmatprep.subr.mxu0 0.0
      %3045 = vmatpush1.msra.mxu0 0.0
      %3046 = vmatprep.subr.mxu0 0.0
      %3047 = vmatpush1.msra.mxu0 0.0
      %3048 = vmatprep.subr.mxu0 0.0
      %3049 = vmatpush1.msra.mxu0 0.0
      %3050 = vmatprep.subr.mxu0 0.0
      %3051 = vmatpush1.msra.mxu0 0.0
      %3052 = vmatprep.subr.mxu0 0.0
      %3053 = vmatpush1.msra.mxu0 0.0
      %3054 = vmatprep.subr.mxu0 0.0
      %3055 = vmatpush1.msra.mxu0 0.0
      %3056 = vmatprep.subr.mxu0 0.0
      %3057 = vmatpush1.msra.mxu0 0.0
      %3058 = vmatprep.subr.mxu0 0.0
      %3059 = vmatpush1.msra.mxu0 0.0
      %3060 = vmatprep.mubr.f32.mxu0 0.0
      %3061 = vmatmul.mubr.f32.gmra.mrb[0].mxu0 %v2994
      %v3062 = vpop.f32.mrb[0].mxu0
      %v3063 = vadd.f32 0.0, %v3062
      %v3064 = vpop.f32.mrb[0].mxu0
      %v3065 = vadd.f32 0.0, %v3064
      %3066 = vdwg.mxu0
      %3067 = vmatprep.subr.mxu0 %v2988
      %3068 = vmatpush1.msra.mxu0 %v2987
      %3069 = vmatprep.subr.mxu0 0.0
      %3070 = vmatpush1.msra.mxu0 0.0
      %3071 = vmatprep.subr.mxu0 0.0
      %3072 = vmatpush1.msra.mxu0 0.0
      %3073 = vmatprep.subr.mxu0 0.0
      %3074 = vmatpush1.msra.mxu0 0.0
      %3075 = vmatprep.subr.mxu0 0.0
      %3076 = vmatpush1.msra.mxu0 0.0
      %3077 = vmatprep.subr.mxu0 0.0
      %3078 = vmatpush1.msra.mxu0 0.0
      %3079 = vmatprep.subr.mxu0 0.0
      %3080 = vmatpush1.msra.mxu0 0.0
      %3081 = vmatprep.subr.mxu0 0.0
      %3082 = vmatpush1.msra.mxu0 0.0
      %3083 = vmatprep.subr.mxu0 0.0
      %3084 = vmatpush1.msra.mxu0 0.0
      %3085 = vmatprep.subr.mxu0 0.0
      %3086 = vmatpush1.msra.mxu0 0.0
      %3087 = vmatprep.subr.mxu0 0.0
      %3088 = vmatpush1.msra.mxu0 0.0
      %3089 = vmatprep.subr.mxu0 0.0
      %3090 = vmatpush1.msra.mxu0 0.0
      %3091 = vmatprep.subr.mxu0 0.0
      %3092 = vmatpush1.msra.mxu0 0.0
      %3093 = vmatprep.subr.mxu0 0.0
      %3094 = vmatpush1.msra.mxu0 0.0
      %3095 = vmatprep.subr.mxu0 0.0
      %3096 = vmatpush1.msra.mxu0 0.0
      %3097 = vmatprep.subr.mxu0 0.0
      %3098 = vmatpush1.msra.mxu0 0.0
      %3099 = vmatprep.subr.mxu0 0.0
      %3100 = vmatpush1.msra.mxu0 0.0
      %3101 = vmatprep.subr.mxu0 0.0
      %3102 = vmatpush1.msra.mxu0 0.0
      %3103 = vmatprep.subr.mxu0 0.0
      %3104 = vmatpush1.msra.mxu0 0.0
      %3105 = vmatprep.subr.mxu0 0.0
      %3106 = vmatpush1.msra.mxu0 0.0
      %3107 = vmatprep.subr.mxu0 0.0
      %3108 = vmatpush1.msra.mxu0 0.0
      %3109 = vmatprep.subr.mxu0 0.0
      %3110 = vmatpush1.msra.mxu0 0.0
      %3111 = vmatprep.subr.mxu0 0.0
      %3112 = vmatpush1.msra.mxu0 0.0
      %3113 = vmatprep.subr.mxu0 0.0
      %3114 = vmatpush1.msra.mxu0 0.0
      %3115 = vmatprep.subr.mxu0 0.0
      %3116 = vmatpush1.msra.mxu0 0.0
      %3117 = vmatprep.subr.mxu0 0.0
      %3118 = vmatpush1.msra.mxu0 0.0
      %3119 = vmatprep.subr.mxu0 0.0
      %3120 = vmatpush1.msra.mxu0 0.0
      %3121 = vmatprep.subr.mxu0 0.0
      %3122 = vmatpush1.msra.mxu0 0.0
      %3123 = vmatprep.subr.mxu0 0.0
      %3124 = vmatpush1.msra.mxu0 0.0
      %3125 = vmatprep.subr.mxu0 0.0
      %3126 = vmatpush1.msra.mxu0 0.0
      %3127 = vmatprep.subr.mxu0 0.0
      %3128 = vmatpush1.msra.mxu0 0.0
      %3129 = vmatprep.subr.mxu0 0.0
      %3130 = vmatpush1.msra.mxu0 0.0
      %3131 = vmatprep.mubr.f32.mxu0 0.0
      %3132 = vmatmul.mubr.f32.gmra.mrb[0].mxu0 %v2994
      %v3133 = vpop.f32.mrb[0].mxu0
      %v3134 = vadd.f32 0.0, %v3133
      %v3135 = vpop.f32.mrb[0].mxu0
      %v3136 = vadd.f32 0.0, %v3135
      %3137 = vdwg.mxu0
      %v3138 = vadd.f32 %v2968, %v3063
      %v3139 = vadd.f32 %v2969, %v3065
      %v3140 = vadd.f32 %v2970, %v3134
      %v3141 = vadd.f32 %v2971, %v3136
      %s3142 = scalar_lea.vmem %s2, 136
      %v3143 = vld [vmem:[%s3142] sm:$0xff]
      %3144 = vrot.lane.b32.xlu0 %v270, 46
      %v3145 = vpop.permute.xlu0 %3144
      %3146 = vrot.lane.b32.xlu0 %v271, 46
      %v3147 = vpop.permute.xlu0 %3146
      %3148 = vrot.lane.b32.xlu0 %v272, 46
      %v3149 = vpop.permute.xlu0 %3148
      %3150 = vrot.lane.b32.xlu0 %v273, 46
      %v3151 = vpop.permute.xlu0 %3150
      %3152 = vrot.lane.b32.xlu0 %v276, 46
      %v3153 = vpop.permute.xlu0 %3152
      %vm3154 = vcmask 375808
      %v3155 = vsel %vm3154, %v3145, %v3147
      %v3156 = vsel %vm3154, %v3147, %v3149
      %v3157 = vsel %vm3154, %v3149, %v3151
      %v3158 = vsel %vm3154, %v3151, %v3153
      %v3164 = vsel %vm301, %v3143, 0
      %3166 = vmatprep.subr.mxu0 %v3156
      %3167 = vmatpush1.msra.mxu0 %v3155
      %3168 = vmatprep.subr.mxu0 0.0
      %3169 = vmatpush1.msra.mxu0 0.0
      %3170 = vmatprep.subr.mxu0 0.0
      %3171 = vmatpush1.msra.mxu0 0.0
      %3172 = vmatprep.subr.mxu0 0.0
      %3173 = vmatpush1.msra.mxu0 0.0
      %3174 = vmatprep.subr.mxu0 0.0
      %3175 = vmatpush1.msra.mxu0 0.0
      %3176 = vmatprep.subr.mxu0 0.0
      %3177 = vmatpush1.msra.mxu0 0.0
      %3178 = vmatprep.subr.mxu0 0.0
      %3179 = vmatpush1.msra.mxu0 0.0
      %3180 = vmatprep.subr.mxu0 0.0
      %3181 = vmatpush1.msra.mxu0 0.0
      %3182 = vmatprep.subr.mxu0 0.0
      %3183 = vmatpush1.msra.mxu0 0.0
      %3184 = vmatprep.subr.mxu0 0.0
      %3185 = vmatpush1.msra.mxu0 0.0
      %3186 = vmatprep.subr.mxu0 0.0
      %3187 = vmatpush1.msra.mxu0 0.0
      %3188 = vmatprep.subr.mxu0 0.0
      %3189 = vmatpush1.msra.mxu0 0.0
      %3190 = vmatprep.subr.mxu0 0.0
      %3191 = vmatpush1.msra.mxu0 0.0
      %3192 = vmatprep.subr.mxu0 0.0
      %3193 = vmatpush1.msra.mxu0 0.0
      %3194 = vmatprep.subr.mxu0 0.0
      %3195 = vmatpush1.msra.mxu0 0.0
      %3196 = vmatprep.subr.mxu0 0.0
      %3197 = vmatpush1.msra.mxu0 0.0
      %3198 = vmatprep.subr.mxu0 0.0
      %3199 = vmatpush1.msra.mxu0 0.0
      %3200 = vmatprep.subr.mxu0 0.0
      %3201 = vmatpush1.msra.mxu0 0.0
      %3202 = vmatprep.subr.mxu0 0.0
      %3203 = vmatpush1.msra.mxu0 0.0
      %3204 = vmatprep.subr.mxu0 0.0
      %3205 = vmatpush1.msra.mxu0 0.0
      %3206 = vmatprep.subr.mxu0 0.0
      %3207 = vmatpush1.msra.mxu0 0.0
      %3208 = vmatprep.subr.mxu0 0.0
      %3209 = vmatpush1.msra.mxu0 0.0
      %3210 = vmatprep.subr.mxu0 0.0
      %3211 = vmatpush1.msra.mxu0 0.0
      %3212 = vmatprep.subr.mxu0 0.0
      %3213 = vmatpush1.msra.mxu0 0.0
      %3214 = vmatprep.subr.mxu0 0.0
      %3215 = vmatpush1.msra.mxu0 0.0
      %3216 = vmatprep.subr.mxu0 0.0
      %3217 = vmatpush1.msra.mxu0 0.0
      %3218 = vmatprep.subr.mxu0 0.0
      %3219 = vmatpush1.msra.mxu0 0.0
      %3220 = vmatprep.subr.mxu0 0.0
      %3221 = vmatpush1.msra.mxu0 0.0
      %3222 = vmatprep.subr.mxu0 0.0
      %3223 = vmatpush1.msra.mxu0 0.0
      %3224 = vmatprep.subr.mxu0 0.0
      %3225 = vmatpush1.msra.mxu0 0.0
      %3226 = vmatprep.subr.mxu0 0.0
      %3227 = vmatpush1.msra.mxu0 0.0
      %3228 = vmatprep.subr.mxu0 0.0
      %3229 = vmatpush1.msra.mxu0 0.0
      %3230 = vmatprep.mubr.f32.mxu0 0.0
      %3231 = vmatmul.mubr.f32.gmra.mrb[0].mxu0 %v3164
      %v3232 = vpop.f32.mrb[0].mxu0
      %v3233 = vadd.f32 0.0, %v3232
      %v3234 = vpop.f32.mrb[0].mxu0
      %v3235 = vadd.f32 0.0, %v3234
      %3236 = vdwg.mxu0
      %3237 = vmatprep.subr.mxu0 %v3158
      %3238 = vmatpush1.msra.mxu0 %v3157
      %3239 = vmatprep.subr.mxu0 0.0
      %3240 = vmatpush1.msra.mxu0 0.0
      %3241 = vmatprep.subr.mxu0 0.0
      %3242 = vmatpush1.msra.mxu0 0.0
      %3243 = vmatprep.subr.mxu0 0.0
      %3244 = vmatpush1.msra.mxu0 0.0
      %3245 = vmatprep.subr.mxu0 0.0
      %3246 = vmatpush1.msra.mxu0 0.0
      %3247 = vmatprep.subr.mxu0 0.0
      %3248 = vmatpush1.msra.mxu0 0.0
      %3249 = vmatprep.subr.mxu0 0.0
      %3250 = vmatpush1.msra.mxu0 0.0
      %3251 = vmatprep.subr.mxu0 0.0
      %3252 = vmatpush1.msra.mxu0 0.0
      %3253 = vmatprep.subr.mxu0 0.0
      %3254 = vmatpush1.msra.mxu0 0.0
      %3255 = vmatprep.subr.mxu0 0.0
      %3256 = vmatpush1.msra.mxu0 0.0
      %3257 = vmatprep.subr.mxu0 0.0
      %3258 = vmatpush1.msra.mxu0 0.0
      %3259 = vmatprep.subr.mxu0 0.0
      %3260 = vmatpush1.msra.mxu0 0.0
      %3261 = vmatprep.subr.mxu0 0.0
      %3262 = vmatpush1.msra.mxu0 0.0
      %3263 = vmatprep.subr.mxu0 0.0
      %3264 = vmatpush1.msra.mxu0 0.0
      %3265 = vmatprep.subr.mxu0 0.0
      %3266 = vmatpush1.msra.mxu0 0.0
      %3267 = vmatprep.subr.mxu0 0.0
      %3268 = vmatpush1.msra.mxu0 0.0
      %3269 = vmatprep.subr.mxu0 0.0
      %3270 = vmatpush1.msra.mxu0 0.0
      %3271 = vmatprep.subr.mxu0 0.0
      %3272 = vmatpush1.msra.mxu0 0.0
      %3273 = vmatprep.subr.mxu0 0.0
      %3274 = vmatpush1.msra.mxu0 0.0
      %3275 = vmatprep.subr.mxu0 0.0
      %3276 = vmatpush1.msra.mxu0 0.0
      %3277 = vmatprep.subr.mxu0 0.0
      %3278 = vmatpush1.msra.mxu0 0.0
      %3279 = vmatprep.subr.mxu0 0.0
      %3280 = vmatpush1.msra.mxu0 0.0
      %3281 = vmatprep.subr.mxu0 0.0
      %3282 = vmatpush1.msra.mxu0 0.0
      %3283 = vmatprep.subr.mxu0 0.0
      %3284 = vmatpush1.msra.mxu0 0.0
      %3285 = vmatprep.subr.mxu0 0.0
      %3286 = vmatpush1.msra.mxu0 0.0
      %3287 = vmatprep.subr.mxu0 0.0
      %3288 = vmatpush1.msra.mxu0 0.0
      %3289 = vmatprep.subr.mxu0 0.0
      %3290 = vmatpush1.msra.mxu0 0.0
      %3291 = vmatprep.subr.mxu0 0.0
      %3292 = vmatpush1.msra.mxu0 0.0
      %3293 = vmatprep.subr.mxu0 0.0
      %3294 = vmatpush1.msra.mxu0 0.0
      %3295 = vmatprep.subr.mxu0 0.0
      %3296 = vmatpush1.msra.mxu0 0.0
      %3297 = vmatprep.subr.mxu0 0.0
      %3298 = vmatpush1.msra.mxu0 0.0
      %3299 = vmatprep.subr.mxu0 0.0
      %3300 = vmatpush1.msra.mxu0 0.0
      %3301 = vmatprep.mubr.f32.mxu0 0.0
      %3302 = vmatmul.mubr.f32.gmra.mrb[0].mxu0 %v3164
      %v3303 = vpop.f32.mrb[0].mxu0
      %v3304 = vadd.f32 0.0, %v3303
      %v3305 = vpop.f32.mrb[0].mxu0
      %v3306 = vadd.f32 0.0, %v3305
      %3307 = vdwg.mxu0
      %v3308 = vadd.f32 %v3138, %v3233
      %v3309 = vadd.f32 %v3139, %v3235
      %v3310 = vadd.f32 %v3140, %v3304
      %v3311 = vadd.f32 %v3141, %v3306
      %s3312 = scalar_lea.vmem %s2, 144
      %v3313 = vld [vmem:[%s3312] sm:$0xff]
      %v3315 = vsel %vm301, %v3313, 0
      %3317 = vmatprep.subr.mxu0 %v272
      %3318 = vmatpush1.msra.mxu0 %v271
      %3319 = vmatprep.subr.mxu0 0.0
      %3320 = vmatpush1.msra.mxu0 0.0
      %3321 = vmatprep.subr.mxu0 0.0
      %3322 = vmatpush1.msra.mxu0 0.0
      %3323 = vmatprep.subr.mxu0 0.0
      %3324 = vmatpush1.msra.mxu0 0.0
      %3325 = vmatprep.subr.mxu0 0.0
      %3326 = vmatpush1.msra.mxu0 0.0
      %3327 = vmatprep.subr.mxu0 0.0
      %3328 = vmatpush1.msra.mxu0 0.0
      %3329 = vmatprep.subr.mxu0 0.0
      %3330 = vmatpush1.msra.mxu0 0.0
      %3331 = vmatprep.subr.mxu0 0.0
      %3332 = vmatpush1.msra.mxu0 0.0
      %3333 = vmatprep.subr.mxu0 0.0
      %3334 = vmatpush1.msra.mxu0 0.0
      %3335 = vmatprep.subr.mxu0 0.0
      %3336 = vmatpush1.msra.mxu0 0.0
      %3337 = vmatprep.subr.mxu0 0.0
      %3338 = vmatpush1.msra.mxu0 0.0
      %3339 = vmatprep.subr.mxu0 0.0
      %3340 = vmatpush1.msra.mxu0 0.0
      %3341 = vmatprep.subr.mxu0 0.0
      %3342 = vmatpush1.msra.mxu0 0.0
      %3343 = vmatprep.subr.mxu0 0.0
      %3344 = vmatpush1.msra.mxu0 0.0
      %3345 = vmatprep.subr.mxu0 0.0
      %3346 = vmatpush1.msra.mxu0 0.0
      %3347 = vmatprep.subr.mxu0 0.0
      %3348 = vmatpush1.msra.mxu0 0.0
      %3349 = vmatprep.subr.mxu0 0.0
      %3350 = vmatpush1.msra.mxu0 0.0
      %3351 = vmatprep.subr.mxu0 0.0
      %3352 = vmatpush1.msra.mxu0 0.0
      %3353 = vmatprep.subr.mxu0 0.0
      %3354 = vmatpush1.msra.mxu0 0.0
      %3355 = vmatprep.subr.mxu0 0.0
      %3356 = vmatpush1.msra.mxu0 0.0
      %3357 = vmatprep.subr.mxu0 0.0
      %3358 = vmatpush1.msra.mxu0 0.0
      %3359 = vmatprep.subr.mxu0 0.0
      %3360 = vmatpush1.msra.mxu0 0.0
      %3361 = vmatprep.subr.mxu0 0.0
      %3362 = vmatpush1.msra.mxu0 0.0
      %3363 = vmatprep.subr.mxu0 0.0
      %3364 = vmatpush1.msra.mxu0 0.0
      %3365 = vmatprep.subr.mxu0 0.0
      %3366 = vmatpush1.msra.mxu0 0.0
      %3367 = vmatprep.subr.mxu0 0.0
      %3368 = vmatpush1.msra.mxu0 0.0
      %3369 = vmatprep.subr.mxu0 0.0
      %3370 = vmatpush1.msra.mxu0 0.0
      %3371 = vmatprep.subr.mxu0 0.0
      %3372 = vmatpush1.msra.mxu0 0.0
      %3373 = vmatprep.subr.mxu0 0.0
      %3374 = vmatpush1.msra.mxu0 0.0
      %3375 = vmatprep.subr.mxu0 0.0
      %3376 = vmatpush1.msra.mxu0 0.0
      %3377 = vmatprep.subr.mxu0 0.0
      %3378 = vmatpush1.msra.mxu0 0.0
      %3379 = vmatprep.subr.mxu0 0.0
      %3380 = vmatpush1.msra.mxu0 0.0
      %3381 = vmatprep.mubr.f32.mxu0 0.0
      %3382 = vmatmul.mubr.f32.gmra.mrb[0].mxu0 %v3315
      %v3383 = vpop.f32.mrb[0].mxu0
      %v3384 = vadd.f32 0.0, %v3383
      %v3385 = vpop.f32.mrb[0].mxu0
      %v3386 = vadd.f32 0.0, %v3385
      %3387 = vdwg.mxu0
      %3388 = vmatprep.subr.mxu0 %v276
      %3389 = vmatpush1.msra.mxu0 %v273
      %3390 = vmatprep.subr.mxu0 0.0
      %3391 = vmatpush1.msra.mxu0 0.0
      %3392 = vmatprep.subr.mxu0 0.0
      %3393 = vmatpush1.msra.mxu0 0.0
      %3394 = vmatprep.subr.mxu0 0.0
      %3395 = vmatpush1.msra.mxu0 0.0
      %3396 = vmatprep.subr.mxu0 0.0
      %3397 = vmatpush1.msra.mxu0 0.0
      %3398 = vmatprep.subr.mxu0 0.0
      %3399 = vmatpush1.msra.mxu0 0.0
      %3400 = vmatprep.subr.mxu0 0.0
      %3401 = vmatpush1.msra.mxu0 0.0
      %3402 = vmatprep.subr.mxu0 0.0
      %3403 = vmatpush1.msra.mxu0 0.0
      %3404 = vmatprep.subr.mxu0 0.0
      %3405 = vmatpush1.msra.mxu0 0.0
      %3406 = vmatprep.subr.mxu0 0.0
      %3407 = vmatpush1.msra.mxu0 0.0
      %3408 = vmatprep.subr.mxu0 0.0
      %3409 = vmatpush1.msra.mxu0 0.0
      %3410 = vmatprep.subr.mxu0 0.0
      %3411 = vmatpush1.msra.mxu0 0.0
      %3412 = vmatprep.subr.mxu0 0.0
      %3413 = vmatpush1.msra.mxu0 0.0
      %3414 = vmatprep.subr.mxu0 0.0
      %3415 = vmatpush1.msra.mxu0 0.0
      %3416 = vmatprep.subr.mxu0 0.0
      %3417 = vmatpush1.msra.mxu0 0.0
      %3418 = vmatprep.subr.mxu0 0.0
      %3419 = vmatpush1.msra.mxu0 0.0
      %3420 = vmatprep.subr.mxu0 0.0
      %3421 = vmatpush1.msra.mxu0 0.0
      %3422 = vmatprep.subr.mxu0 0.0
      %3423 = vmatpush1.msra.mxu0 0.0
      %3424 = vmatprep.subr.mxu0 0.0
      %3425 = vmatpush1.msra.mxu0 0.0
      %3426 = vmatprep.subr.mxu0 0.0
      %3427 = vmatpush1.msra.mxu0 0.0
      %3428 = vmatprep.subr.mxu0 0.0
      %3429 = vmatpush1.msra.mxu0 0.0
      %3430 = vmatprep.subr.mxu0 0.0
      %3431 = vmatpush1.msra.mxu0 0.0
      %3432 = vmatprep.subr.mxu0 0.0
      %3433 = vmatpush1.msra.mxu0 0.0
      %3434 = vmatprep.subr.mxu0 0.0
      %3435 = vmatpush1.msra.mxu0 0.0
      %3436 = vmatprep.subr.mxu0 0.0
      %3437 = vmatpush1.msra.mxu0 0.0
      %3438 = vmatprep.subr.mxu0 0.0
      %3439 = vmatpush1.msra.mxu0 0.0
      %3440 = vmatprep.subr.mxu0 0.0
      %3441 = vmatpush1.msra.mxu0 0.0
      %3442 = vmatprep.subr.mxu0 0.0
      %3443 = vmatpush1.msra.mxu0 0.0
      %3444 = vmatprep.subr.mxu0 0.0
      %3445 = vmatpush1.msra.mxu0 0.0
      %3446 = vmatprep.subr.mxu0 0.0
      %3447 = vmatpush1.msra.mxu0 0.0
      %3448 = vmatprep.subr.mxu0 0.0
      %3449 = vmatpush1.msra.mxu0 0.0
      %3450 = vmatprep.subr.mxu0 0.0
      %3451 = vmatpush1.msra.mxu0 0.0
      %3452 = vmatprep.mubr.f32.mxu0 0.0
      %3453 = vmatmul.mubr.f32.gmra.mrb[0].mxu0 %v3315
      %v3454 = vpop.f32.mrb[0].mxu0
      %v3455 = vadd.f32 0.0, %v3454
      %v3456 = vpop.f32.mrb[0].mxu0
      %v3457 = vadd.f32 0.0, %v3456
      %3458 = vdwg.mxu0
      %v3459 = vadd.f32 %v3308, %v3384
      %v3460 = vadd.f32 %v3309, %v3386
      %v3461 = vadd.f32 %v3310, %v3455
      %v3462 = vadd.f32 %v3311, %v3457
      %s3463 = scalar_lea.vmem %s2, 152
      %v3464 = vld [vmem:[%s3463] sm:$0xff]
      %v3465 = vld [vmem:[#allocation2 + $0x8] sm:$0xff]
      %v3466 = vld [vmem:[#allocation2 + $0x10] sm:$0xff]
      %v3467 = vld [vmem:[#allocation2 + $0x18] sm:$0xff]
      %v3468 = vld [vmem:[#allocation2 + $0x20] sm:$0xff]
      %v3469 = vld [vmem:[#allocation2 + $0x28] sm:$0xff]
      %3475 = vrot.lane.b32.xlu0 %v3465, 127
      %v3476 = vpop.permute.xlu0 %3475
      %3477 = vrot.lane.b32.xlu0 %v3466, 127
      %v3478 = vpop.permute.xlu0 %3477
      %3479 = vrot.lane.b32.xlu0 %v3467, 127
      %v3480 = vpop.permute.xlu0 %3479
      %3481 = vrot.lane.b32.xlu0 %v3468, 127
      %v3482 = vpop.permute.xlu0 %3481
      %3483 = vrot.lane.b32.xlu0 %v3469, 127
      %v3484 = vpop.permute.xlu0 %3483
      %v3485 = vsel %vm292, %v3476, %v3478
      %v3486 = vsel %vm292, %v3478, %v3480
      %v3487 = vsel %vm292, %v3480, %v3482
      %v3488 = vsel %vm292, %v3482, %v3484
      %v3494 = vsel %vm301, %v3464, 0
      %3496 = vmatprep.subr.mxu0 %v3486
      %3497 = vmatpush1.msra.mxu0 %v3485
      %3498 = vmatprep.subr.mxu0 0.0
      %3499 = vmatpush1.msra.mxu0 0.0
      %3500 = vmatprep.subr.mxu0 0.0
      %3501 = vmatpush1.msra.mxu0 0.0
      %3502 = vmatprep.subr.mxu0 0.0
      %3503 = vmatpush1.msra.mxu0 0.0
      %3504 = vmatprep.subr.mxu0 0.0
      %3505 = vmatpush1.msra.mxu0 0.0
      %3506 = vmatprep.subr.mxu0 0.0
      %3507 = vmatpush1.msra.mxu0 0.0
      %3508 = vmatprep.subr.mxu0 0.0
      %3509 = vmatpush1.msra.mxu0 0.0
      %3510 = vmatprep.subr.mxu0 0.0
      %3511 = vmatpush1.msra.mxu0 0.0
      %3512 = vmatprep.subr.mxu0 0.0
      %3513 = vmatpush1.msra.mxu0 0.0
      %3514 = vmatprep.subr.mxu0 0.0
      %3515 = vmatpush1.msra.mxu0 0.0
      %3516 = vmatprep.subr.mxu0 0.0
      %3517 = vmatpush1.msra.mxu0 0.0
      %3518 = vmatprep.subr.mxu0 0.0
      %3519 = vmatpush1.msra.mxu0 0.0
      %3520 = vmatprep.subr.mxu0 0.0
      %3521 = vmatpush1.msra.mxu0 0.0
      %3522 = vmatprep.subr.mxu0 0.0
      %3523 = vmatpush1.msra.mxu0 0.0
      %3524 = vmatprep.subr.mxu0 0.0
      %3525 = vmatpush1.msra.mxu0 0.0
      %3526 = vmatprep.subr.mxu0 0.0
      %3527 = vmatpush1.msra.mxu0 0.0
      %3528 = vmatprep.subr.mxu0 0.0
      %3529 = vmatpush1.msra.mxu0 0.0
      %3530 = vmatprep.subr.mxu0 0.0
      %3531 = vmatpush1.msra.mxu0 0.0
      %3532 = vmatprep.subr.mxu0 0.0
      %3533 = vmatpush1.msra.mxu0 0.0
      %3534 = vmatprep.subr.mxu0 0.0
      %3535 = vmatpush1.msra.mxu0 0.0
      %3536 = vmatprep.subr.mxu0 0.0
      %3537 = vmatpush1.msra.mxu0 0.0
      %3538 = vmatprep.subr.mxu0 0.0
      %3539 = vmatpush1.msra.mxu0 0.0
      %3540 = vmatprep.subr.mxu0 0.0
      %3541 = vmatpush1.msra.mxu0 0.0
      %3542 = vmatprep.subr.mxu0 0.0
      %3543 = vmatpush1.msra.mxu0 0.0
      %3544 = vmatprep.subr.mxu0 0.0
      %3545 = vmatpush1.msra.mxu0 0.0
      %3546 = vmatprep.subr.mxu0 0.0
      %3547 = vmatpush1.msra.mxu0 0.0
      %3548 = vmatprep.subr.mxu0 0.0
      %3549 = vmatpush1.msra.mxu0 0.0
      %3550 = vmatprep.subr.mxu0 0.0
      %3551 = vmatpush1.msra.mxu0 0.0
      %3552 = vmatprep.subr.mxu0 0.0
      %3553 = vmatpush1.msra.mxu0 0.0
      %3554 = vmatprep.subr.mxu0 0.0
      %3555 = vmatpush1.msra.mxu0 0.0
      %3556 = vmatprep.subr.mxu0 0.0
      %3557 = vmatpush1.msra.mxu0 0.0
      %3558 = vmatprep.subr.mxu0 0.0
      %3559 = vmatpush1.msra.mxu0 0.0
      %3560 = vmatprep.mubr.f32.mxu0 0.0
      %3561 = vmatmul.mubr.f32.gmra.mrb[0].mxu0 %v3494
      %v3562 = vpop.f32.mrb[0].mxu0
      %v3563 = vadd.f32 0.0, %v3562
      %v3564 = vpop.f32.mrb[0].mxu0
      %v3565 = vadd.f32 0.0, %v3564
      %3566 = vdwg.mxu0
      %3567 = vmatprep.subr.mxu0 %v3488
      %3568 = vmatpush1.msra.mxu0 %v3487
      %3569 = vmatprep.subr.mxu0 0.0
      %3570 = vmatpush1.msra.mxu0 0.0
      %3571 = vmatprep.subr.mxu0 0.0
      %3572 = vmatpush1.msra.mxu0 0.0
      %3573 = vmatprep.subr.mxu0 0.0
      %3574 = vmatpush1.msra.mxu0 0.0
      %3575 = vmatprep.subr.mxu0 0.0
      %3576 = vmatpush1.msra.mxu0 0.0
      %3577 = vmatprep.subr.mxu0 0.0
      %3578 = vmatpush1.msra.mxu0 0.0
      %3579 = vmatprep.subr.mxu0 0.0
      %3580 = vmatpush1.msra.mxu0 0.0
      %3581 = vmatprep.subr.mxu0 0.0
      %3582 = vmatpush1.msra.mxu0 0.0
      %3583 = vmatprep.subr.mxu0 0.0
      %3584 = vmatpush1.msra.mxu0 0.0
      %3585 = vmatprep.subr.mxu0 0.0
      %3586 = vmatpush1.msra.mxu0 0.0
      %3587 = vmatprep.subr.mxu0 0.0
      %3588 = vmatpush1.msra.mxu0 0.0
      %3589 = vmatprep.subr.mxu0 0.0
      %3590 = vmatpush1.msra.mxu0 0.0
      %3591 = vmatprep.subr.mxu0 0.0
      %3592 = vmatpush1.msra.mxu0 0.0
      %3593 = vmatprep.subr.mxu0 0.0
      %3594 = vmatpush1.msra.mxu0 0.0
      %3595 = vmatprep.subr.mxu0 0.0
      %3596 = vmatpush1.msra.mxu0 0.0
      %3597 = vmatprep.subr.mxu0 0.0
      %3598 = vmatpush1.msra.mxu0 0.0
      %3599 = vmatprep.subr.mxu0 0.0
      %3600 = vmatpush1.msra.mxu0 0.0
      %3601 = vmatprep.subr.mxu0 0.0
      %3602 = vmatpush1.msra.mxu0 0.0
      %3603 = vmatprep.subr.mxu0 0.0
      %3604 = vmatpush1.msra.mxu0 0.0
      %3605 = vmatprep.subr.mxu0 0.0
      %3606 = vmatpush1.msra.mxu0 0.0
      %3607 = vmatprep.subr.mxu0 0.0
      %3608 = vmatpush1.msra.mxu0 0.0
      %3609 = vmatprep.subr.mxu0 0.0
      %3610 = vmatpush1.msra.mxu0 0.0
      %3611 = vmatprep.subr.mxu0 0.0
      %3612 = vmatpush1.msra.mxu0 0.0
      %3613 = vmatprep.subr.mxu0 0.0
      %3614 = vmatpush1.msra.mxu0 0.0
      %3615 = vmatprep.subr.mxu0 0.0
      %3616 = vmatpush1.msra.mxu0 0.0
      %3617 = vmatprep.subr.mxu0 0.0
      %3618 = vmatpush1.msra.mxu0 0.0
      %3619 = vmatprep.subr.mxu0 0.0
      %3620 = vmatpush1.msra.mxu0 0.0
      %3621 = vmatprep.subr.mxu0 0.0
      %3622 = vmatpush1.msra.mxu0 0.0
      %3623 = vmatprep.subr.mxu0 0.0
      %3624 = vmatpush1.msra.mxu0 0.0
      %3625 = vmatprep.subr.mxu0 0.0
      %3626 = vmatpush1.msra.mxu0 0.0
      %3627 = vmatprep.subr.mxu0 0.0
      %3628 = vmatpush1.msra.mxu0 0.0
      %3629 = vmatprep.subr.mxu0 0.0
      %3630 = vmatpush1.msra.mxu0 0.0
      %3631 = vmatprep.mubr.f32.mxu0 0.0
      %3632 = vmatmul.mubr.f32.gmra.mrb[0].mxu0 %v3494
      %v3633 = vpop.f32.mrb[0].mxu0
      %v3634 = vadd.f32 0.0, %v3633
      %v3635 = vpop.f32.mrb[0].mxu0
      %v3636 = vadd.f32 0.0, %v3635
      %3637 = vdwg.mxu0
      %v3638 = vadd.f32 %v3459, %v3563
      %v3639 = vadd.f32 %v3460, %v3565
      %v3640 = vadd.f32 %v3461, %v3634
      %v3641 = vadd.f32 %v3462, %v3636
      %s3642 = scalar_lea.vmem %s2, 160
      %v3643 = vld [vmem:[%s3642] sm:$0xff]
      %3644 = vrot.lane.b32.xlu0 %v3465, 126
      %v3645 = vpop.permute.xlu0 %3644
      %3646 = vrot.lane.b32.xlu0 %v3466, 126
      %v3647 = vpop.permute.xlu0 %3646
      %3648 = vrot.lane.b32.xlu0 %v3467, 126
      %v3649 = vpop.permute.xlu0 %3648
      %3650 = vrot.lane.b32.xlu0 %v3468, 126
      %v3651 = vpop.permute.xlu0 %3650
      %3652 = vrot.lane.b32.xlu0 %v3469, 126
      %v3653 = vpop.permute.xlu0 %3652
      %v3654 = vsel %vm604, %v3645, %v3647
      %v3655 = vsel %vm604, %v3647, %v3649
      %v3656 = vsel %vm604, %v3649, %v3651
      %v3657 = vsel %vm604, %v3651, %v3653
      %v3663 = vsel %vm301, %v3643, 0
      %3665 = vmatprep.subr.mxu0 %v3655
      %3666 = vmatpush1.msra.mxu0 %v3654
      %3667 = vmatprep.subr.mxu0 0.0
      %3668 = vmatpush1.msra.mxu0 0.0
      %3669 = vmatprep.subr.mxu0 0.0
      %3670 = vmatpush1.msra.mxu0 0.0
      %3671 = vmatprep.subr.mxu0 0.0
      %3672 = vmatpush1.msra.mxu0 0.0
      %3673 = vmatprep.subr.mxu0 0.0
      %3674 = vmatpush1.msra.mxu0 0.0
      %3675 = vmatprep.subr.mxu0 0.0
      %3676 = vmatpush1.msra.mxu0 0.0
      %3677 = vmatprep.subr.mxu0 0.0
      %3678 = vmatpush1.msra.mxu0 0.0
      %3679 = vmatprep.subr.mxu0 0.0
      %3680 = vmatpush1.msra.mxu0 0.0
      %3681 = vmatprep.subr.mxu0 0.0
      %3682 = vmatpush1.msra.mxu0 0.0
      %3683 = vmatprep.subr.mxu0 0.0
      %3684 = vmatpush1.msra.mxu0 0.0
      %3685 = vmatprep.subr.mxu0 0.0
      %3686 = vmatpush1.msra.mxu0 0.0
      %3687 = vmatprep.subr.mxu0 0.0
      %3688 = vmatpush1.msra.mxu0 0.0
      %3689 = vmatprep.subr.mxu0 0.0
      %3690 = vmatpush1.msra.mxu0 0.0
      %3691 = vmatprep.subr.mxu0 0.0
      %3692 = vmatpush1.msra.mxu0 0.0
      %3693 = vmatprep.subr.mxu0 0.0
      %3694 = vmatpush1.msra.mxu0 0.0
      %3695 = vmatprep.subr.mxu0 0.0
      %3696 = vmatpush1.msra.mxu0 0.0
      %3697 = vmatprep.subr.mxu0 0.0
      %3698 = vmatpush1.msra.mxu0 0.0
      %3699 = vmatprep.subr.mxu0 0.0
      %3700 = vmatpush1.msra.mxu0 0.0
      %3701 = vmatprep.subr.mxu0 0.0
      %3702 = vmatpush1.msra.mxu0 0.0
      %3703 = vmatprep.subr.mxu0 0.0
      %3704 = vmatpush1.msra.mxu0 0.0
      %3705 = vmatprep.subr.mxu0 0.0
      %3706 = vmatpush1.msra.mxu0 0.0
      %3707 = vmatprep.subr.mxu0 0.0
      %3708 = vmatpush1.msra.mxu0 0.0
      %3709 = vmatprep.subr.mxu0 0.0
      %3710 = vmatpush1.msra.mxu0 0.0
      %3711 = vmatprep.subr.mxu0 0.0
      %3712 = vmatpush1.msra.mxu0 0.0
      %3713 = vmatprep.subr.mxu0 0.0
      %3714 = vmatpush1.msra.mxu0 0.0
      %3715 = vmatprep.subr.mxu0 0.0
      %3716 = vmatpush1.msra.mxu0 0.0
      %3717 = vmatprep.subr.mxu0 0.0
      %3718 = vmatpush1.msra.mxu0 0.0
      %3719 = vmatprep.subr.mxu0 0.0
      %3720 = vmatpush1.msra.mxu0 0.0
      %3721 = vmatprep.subr.mxu0 0.0
      %3722 = vmatpush1.msra.mxu0 0.0
      %3723 = vmatprep.subr.mxu0 0.0
      %3724 = vmatpush1.msra.mxu0 0.0
      %3725 = vmatprep.subr.mxu0 0.0
      %3726 = vmatpush1.msra.mxu0 0.0
      %3727 = vmatprep.subr.mxu0 0.0
      %3728 = vmatpush1.msra.mxu0 0.0
      %3729 = vmatprep.mubr.f32.mxu0 0.0
      %3730 = vmatmul.mubr.f32.gmra.mrb[0].mxu0 %v3663
      %v3731 = vpop.f32.mrb[0].mxu0
      %v3732 = vadd.f32 0.0, %v3731
      %v3733 = vpop.f32.mrb[0].mxu0
      %v3734 = vadd.f32 0.0, %v3733
      %3735 = vdwg.mxu0
      %3736 = vmatprep.subr.mxu0 %v3657
      %3737 = vmatpush1.msra.mxu0 %v3656
      %3738 = vmatprep.subr.mxu0 0.0
      %3739 = vmatpush1.msra.mxu0 0.0
      %3740 = vmatprep.subr.mxu0 0.0
      %3741 = vmatpush1.msra.mxu0 0.0
      %3742 = vmatprep.subr.mxu0 0.0
      %3743 = vmatpush1.msra.mxu0 0.0
      %3744 = vmatprep.subr.mxu0 0.0
      %3745 = vmatpush1.msra.mxu0 0.0
      %3746 = vmatprep.subr.mxu0 0.0
      %3747 = vmatpush1.msra.mxu0 0.0
      %3748 = vmatprep.subr.mxu0 0.0
      %3749 = vmatpush1.msra.mxu0 0.0
      %3750 = vmatprep.subr.mxu0 0.0
      %3751 = vmatpush1.msra.mxu0 0.0
      %3752 = vmatprep.subr.mxu0 0.0
      %3753 = vmatpush1.msra.mxu0 0.0
      %3754 = vmatprep.subr.mxu0 0.0
      %3755 = vmatpush1.msra.mxu0 0.0
      %3756 = vmatprep.subr.mxu0 0.0
      %3757 = vmatpush1.msra.mxu0 0.0
      %3758 = vmatprep.subr.mxu0 0.0
      %3759 = vmatpush1.msra.mxu0 0.0
      %3760 = vmatprep.subr.mxu0 0.0
      %3761 = vmatpush1.msra.mxu0 0.0
      %3762 = vmatprep.subr.mxu0 0.0
      %3763 = vmatpush1.msra.mxu0 0.0
      %3764 = vmatprep.subr.mxu0 0.0
      %3765 = vmatpush1.msra.mxu0 0.0
      %3766 = vmatprep.subr.mxu0 0.0
      %3767 = vmatpush1.msra.mxu0 0.0
      %3768 = vmatprep.subr.mxu0 0.0
      %3769 = vmatpush1.msra.mxu0 0.0
      %3770 = vmatprep.subr.mxu0 0.0
      %3771 = vmatpush1.msra.mxu0 0.0
      %3772 = vmatprep.subr.mxu0 0.0
      %3773 = vmatpush1.msra.mxu0 0.0
      %3774 = vmatprep.subr.mxu0 0.0
      %3775 = vmatpush1.msra.mxu0 0.0
      %3776 = vmatprep.subr.mxu0 0.0
      %3777 = vmatpush1.msra.mxu0 0.0
      %3778 = vmatprep.subr.mxu0 0.0
      %3779 = vmatpush1.msra.mxu0 0.0
      %3780 = vmatprep.subr.mxu0 0.0
      %3781 = vmatpush1.msra.mxu0 0.0
      %3782 = vmatprep.subr.mxu0 0.0
      %3783 = vmatpush1.msra.mxu0 0.0
      %3784 = vmatprep.subr.mxu0 0.0
      %3785 = vmatpush1.msra.mxu0 0.0
      %3786 = vmatprep.subr.mxu0 0.0
      %3787 = vmatpush1.msra.mxu0 0.0
      %3788 = vmatprep.subr.mxu0 0.0
      %3789 = vmatpush1.msra.mxu0 0.0
      %3790 = vmatprep.subr.mxu0 0.0
      %3791 = vmatpush1.msra.mxu0 0.0
      %3792 = vmatprep.subr.mxu0 0.0
      %3793 = vmatpush1.msra.mxu0 0.0
      %3794 = vmatprep.subr.mxu0 0.0
      %3795 = vmatpush1.msra.mxu0 0.0
      %3796 = vmatprep.subr.mxu0 0.0
      %3797 = vmatpush1.msra.mxu0 0.0
      %3798 = vmatprep.subr.mxu0 0.0
      %3799 = vmatpush1.msra.mxu0 0.0
      %3800 = vmatprep.mubr.f32.mxu0 0.0
      %3801 = vmatmul.mubr.f32.gmra.mrb[0].mxu0 %v3663
      %v3802 = vpop.f32.mrb[0].mxu0
      %v3803 = vadd.f32 0.0, %v3802
      %v3804 = vpop.f32.mrb[0].mxu0
      %v3805 = vadd.f32 0.0, %v3804
      %3806 = vdwg.mxu0
      %v3807 = vadd.f32 %v3638, %v3732
      %v3808 = vadd.f32 %v3639, %v3734
      %v3809 = vadd.f32 %v3640, %v3803
      %v3810 = vadd.f32 %v3641, %v3805
      %s3811 = scalar_lea.vmem %s2, 168
      %v3812 = vld [vmem:[%s3811] sm:$0xff]
      %3813 = vrot.lane.b32.xlu0 %v3465, 120
      %v3814 = vpop.permute.xlu0 %3813
      %3815 = vrot.lane.b32.xlu0 %v3466, 120
      %v3816 = vpop.permute.xlu0 %3815
      %3817 = vrot.lane.b32.xlu0 %v3467, 120
      %v3818 = vpop.permute.xlu0 %3817
      %3819 = vrot.lane.b32.xlu0 %v3468, 120
      %v3820 = vpop.permute.xlu0 %3819
      %3821 = vrot.lane.b32.xlu0 %v3469, 120
      %v3822 = vpop.permute.xlu0 %3821
      %v3823 = vsel %vm774, %v3814, %v3816
      %v3824 = vsel %vm774, %v3816, %v3818
      %v3825 = vsel %vm774, %v3818, %v3820
      %v3826 = vsel %vm774, %v3820, %v3822
      %v3832 = vsel %vm301, %v3812, 0
      %3834 = vmatprep.subr.mxu0 %v3824
      %3835 = vmatpush1.msra.mxu0 %v3823
      %3836 = vmatprep.subr.mxu0 0.0
      %3837 = vmatpush1.msra.mxu0 0.0
      %3838 = vmatprep.subr.mxu0 0.0
      %3839 = vmatpush1.msra.mxu0 0.0
      %3840 = vmatprep.subr.mxu0 0.0
      %3841 = vmatpush1.msra.mxu0 0.0
      %3842 = vmatprep.subr.mxu0 0.0
      %3843 = vmatpush1.msra.mxu0 0.0
      %3844 = vmatprep.subr.mxu0 0.0
      %3845 = vmatpush1.msra.mxu0 0.0
      %3846 = vmatprep.subr.mxu0 0.0
      %3847 = vmatpush1.msra.mxu0 0.0
      %3848 = vmatprep.subr.mxu0 0.0
      %3849 = vmatpush1.msra.mxu0 0.0
      %3850 = vmatprep.subr.mxu0 0.0
      %3851 = vmatpush1.msra.mxu0 0.0
      %3852 = vmatprep.subr.mxu0 0.0
      %3853 = vmatpush1.msra.mxu0 0.0
      %3854 = vmatprep.subr.mxu0 0.0
      %3855 = vmatpush1.msra.mxu0 0.0
      %3856 = vmatprep.subr.mxu0 0.0
      %3857 = vmatpush1.msra.mxu0 0.0
      %3858 = vmatprep.subr.mxu0 0.0
      %3859 = vmatpush1.msra.mxu0 0.0
      %3860 = vmatprep.subr.mxu0 0.0
      %3861 = vmatpush1.msra.mxu0 0.0
      %3862 = vmatprep.subr.mxu0 0.0
      %3863 = vmatpush1.msra.mxu0 0.0
      %3864 = vmatprep.subr.mxu0 0.0
      %3865 = vmatpush1.msra.mxu0 0.0
      %3866 = vmatprep.subr.mxu0 0.0
      %3867 = vmatpush1.msra.mxu0 0.0
      %3868 = vmatprep.subr.mxu0 0.0
      %3869 = vmatpush1.msra.mxu0 0.0
      %3870 = vmatprep.subr.mxu0 0.0
      %3871 = vmatpush1.msra.mxu0 0.0
      %3872 = vmatprep.subr.mxu0 0.0
      %3873 = vmatpush1.msra.mxu0 0.0
      %3874 = vmatprep.subr.mxu0 0.0
      %3875 = vmatpush1.msra.mxu0 0.0
      %3876 = vmatprep.subr.mxu0 0.0
      %3877 = vmatpush1.msra.mxu0 0.0
      %3878 = vmatprep.subr.mxu0 0.0
      %3879 = vmatpush1.msra.mxu0 0.0
      %3880 = vmatprep.subr.mxu0 0.0
      %3881 = vmatpush1.msra.mxu0 0.0
      %3882 = vmatprep.subr.mxu0 0.0
      %3883 = vmatpush1.msra.mxu0 0.0
      %3884 = vmatprep.subr.mxu0 0.0
      %3885 = vmatpush1.msra.mxu0 0.0
      %3886 = vmatprep.subr.mxu0 0.0
      %3887 = vmatpush1.msra.mxu0 0.0
      %3888 = vmatprep.subr.mxu0 0.0
      %3889 = vmatpush1.msra.mxu0 0.0
      %3890 = vmatprep.subr.mxu0 0.0
      %3891 = vmatpush1.msra.mxu0 0.0
      %3892 = vmatprep.subr.mxu0 0.0
      %3893 = vmatpush1.msra.mxu0 0.0
      %3894 = vmatprep.subr.mxu0 0.0
      %3895 = vmatpush1.msra.mxu0 0.0
      %3896 = vmatprep.subr.mxu0 0.0
      %3897 = vmatpush1.msra.mxu0 0.0
      %3898 = vmatprep.mubr.f32.mxu0 0.0
      %3899 = vmatmul.mubr.f32.gmra.mrb[0].mxu0 %v3832
      %v3900 = vpop.f32.mrb[0].mxu0
      %v3901 = vadd.f32 0.0, %v3900
      %v3902 = vpop.f32.mrb[0].mxu0
      %v3903 = vadd.f32 0.0, %v3902
      %3904 = vdwg.mxu0
      %3905 = vmatprep.subr.mxu0 %v3826
      %3906 = vmatpush1.msra.mxu0 %v3825
      %3907 = vmatprep.subr.mxu0 0.0
      %3908 = vmatpush1.msra.mxu0 0.0
      %3909 = vmatprep.subr.mxu0 0.0
      %3910 = vmatpush1.msra.mxu0 0.0
      %3911 = vmatprep.subr.mxu0 0.0
      %3912 = vmatpush1.msra.mxu0 0.0
      %3913 = vmatprep.subr.mxu0 0.0
      %3914 = vmatpush1.msra.mxu0 0.0
      %3915 = vmatprep.subr.mxu0 0.0
      %3916 = vmatpush1.msra.mxu0 0.0
      %3917 = vmatprep.subr.mxu0 0.0
      %3918 = vmatpush1.msra.mxu0 0.0
      %3919 = vmatprep.subr.mxu0 0.0
      %3920 = vmatpush1.msra.mxu0 0.0
      %3921 = vmatprep.subr.mxu0 0.0
      %3922 = vmatpush1.msra.mxu0 0.0
      %3923 = vmatprep.subr.mxu0 0.0
      %3924 = vmatpush1.msra.mxu0 0.0
      %3925 = vmatprep.subr.mxu0 0.0
      %3926 = vmatpush1.msra.mxu0 0.0
      %3927 = vmatprep.subr.mxu0 0.0
      %3928 = vmatpush1.msra.mxu0 0.0
      %3929 = vmatprep.subr.mxu0 0.0
      %3930 = vmatpush1.msra.mxu0 0.0
      %3931 = vmatprep.subr.mxu0 0.0
      %3932 = vmatpush1.msra.mxu0 0.0
      %3933 = vmatprep.subr.mxu0 0.0
      %3934 = vmatpush1.msra.mxu0 0.0
      %3935 = vmatprep.subr.mxu0 0.0
      %3936 = vmatpush1.msra.mxu0 0.0
      %3937 = vmatprep.subr.mxu0 0.0
      %3938 = vmatpush1.msra.mxu0 0.0
      %3939 = vmatprep.subr.mxu0 0.0
      %3940 = vmatpush1.msra.mxu0 0.0
      %3941 = vmatprep.subr.mxu0 0.0
      %3942 = vmatpush1.msra.mxu0 0.0
      %3943 = vmatprep.subr.mxu0 0.0
      %3944 = vmatpush1.msra.mxu0 0.0
      %3945 = vmatprep.subr.mxu0 0.0
      %3946 = vmatpush1.msra.mxu0 0.0
      %3947 = vmatprep.subr.mxu0 0.0
      %3948 = vmatpush1.msra.mxu0 0.0
      %3949 = vmatprep.subr.mxu0 0.0
      %3950 = vmatpush1.msra.mxu0 0.0
      %3951 = vmatprep.subr.mxu0 0.0
      %3952 = vmatpush1.msra.mxu0 0.0
      %3953 = vmatprep.subr.mxu0 0.0
      %3954 = vmatpush1.msra.mxu0 0.0
      %3955 = vmatprep.subr.mxu0 0.0
      %3956 = vmatpush1.msra.mxu0 0.0
      %3957 = vmatprep.subr.mxu0 0.0
      %3958 = vmatpush1.msra.mxu0 0.0
      %3959 = vmatprep.subr.mxu0 0.0
      %3960 = vmatpush1.msra.mxu0 0.0
      %3961 = vmatprep.subr.mxu0 0.0
      %3962 = vmatpush1.msra.mxu0 0.0
      %3963 = vmatprep.subr.mxu0 0.0
      %3964 = vmatpush1.msra.mxu0 0.0
      %3965 = vmatprep.subr.mxu0 0.0
      %3966 = vmatpush1.msra.mxu0 0.0
      %3967 = vmatprep.subr.mxu0 0.0
      %3968 = vmatpush1.msra.mxu0 0.0
      %3969 = vmatprep.mubr.f32.mxu0 0.0
      %3970 = vmatmul.mubr.f32.gmra.mrb[0].mxu0 %v3832
      %v3971 = vpop.f32.mrb[0].mxu0
      %v3972 = vadd.f32 0.0, %v3971
      %v3973 = vpop.f32.mrb[0].mxu0
      %v3974 = vadd.f32 0.0, %v3973
      %3975 = vdwg.mxu0
      %v3976 = vadd.f32 %v3807, %v3901
      %v3977 = vadd.f32 %v3808, %v3903
      %v3978 = vadd.f32 %v3809, %v3972
      %v3979 = vadd.f32 %v3810, %v3974
      %s3980 = scalar_lea.vmem %s2, 176
      %v3981 = vld [vmem:[%s3980] sm:$0xff]
      %3982 = vrot.lane.b32.xlu0 %v3465, 119
      %v3983 = vpop.permute.xlu0 %3982
      %3984 = vrot.lane.b32.xlu0 %v3466, 119
      %v3985 = vpop.permute.xlu0 %3984
      %3986 = vrot.lane.b32.xlu0 %v3467, 119
      %v3987 = vpop.permute.xlu0 %3986
      %3988 = vrot.lane.b32.xlu0 %v3468, 119
      %v3989 = vpop.permute.xlu0 %3988
      %3990 = vrot.lane.b32.xlu0 %v3469, 119
      %v3991 = vpop.permute.xlu0 %3990
      %v3992 = vsel %vm944, %v3983, %v3985
      %v3993 = vsel %vm944, %v3985, %v3987
      %v3994 = vsel %vm944, %v3987, %v3989
      %v3995 = vsel %vm944, %v3989, %v3991
      %v4001 = vsel %vm301, %v3981, 0
      %4003 = vmatprep.subr.mxu0 %v3993
      %4004 = vmatpush1.msra.mxu0 %v3992
      %4005 = vmatprep.subr.mxu0 0.0
      %4006 = vmatpush1.msra.mxu0 0.0
      %4007 = vmatprep.subr.mxu0 0.0
      %4008 = vmatpush1.msra.mxu0 0.0
      %4009 = vmatprep.subr.mxu0 0.0
      %4010 = vmatpush1.msra.mxu0 0.0
      %4011 = vmatprep.subr.mxu0 0.0
      %4012 = vmatpush1.msra.mxu0 0.0
      %4013 = vmatprep.subr.mxu0 0.0
      %4014 = vmatpush1.msra.mxu0 0.0
      %4015 = vmatprep.subr.mxu0 0.0
      %4016 = vmatpush1.msra.mxu0 0.0
      %4017 = vmatprep.subr.mxu0 0.0
      %4018 = vmatpush1.msra.mxu0 0.0
      %4019 = vmatprep.subr.mxu0 0.0
      %4020 = vmatpush1.msra.mxu0 0.0
      %4021 = vmatprep.subr.mxu0 0.0
      %4022 = vmatpush1.msra.mxu0 0.0
      %4023 = vmatprep.subr.mxu0 0.0
      %4024 = vmatpush1.msra.mxu0 0.0
      %4025 = vmatprep.subr.mxu0 0.0
      %4026 = vmatpush1.msra.mxu0 0.0
      %4027 = vmatprep.subr.mxu0 0.0
      %4028 = vmatpush1.msra.mxu0 0.0
      %4029 = vmatprep.subr.mxu0 0.0
      %4030 = vmatpush1.msra.mxu0 0.0
      %4031 = vmatprep.subr.mxu0 0.0
      %4032 = vmatpush1.msra.mxu0 0.0
      %4033 = vmatprep.subr.mxu0 0.0
      %4034 = vmatpush1.msra.mxu0 0.0
      %4035 = vmatprep.subr.mxu0 0.0
      %4036 = vmatpush1.msra.mxu0 0.0
      %4037 = vmatprep.subr.mxu0 0.0
      %4038 = vmatpush1.msra.mxu0 0.0
      %4039 = vmatprep.subr.mxu0 0.0
      %4040 = vmatpush1.msra.mxu0 0.0
      %4041 = vmatprep.subr.mxu0 0.0
      %4042 = vmatpush1.msra.mxu0 0.0
      %4043 = vmatprep.subr.mxu0 0.0
      %4044 = vmatpush1.msra.mxu0 0.0
      %4045 = vmatprep.subr.mxu0 0.0
      %4046 = vmatpush1.msra.mxu0 0.0
      %4047 = vmatprep.subr.mxu0 0.0
      %4048 = vmatpush1.msra.mxu0 0.0
      %4049 = vmatprep.subr.mxu0 0.0
      %4050 = vmatpush1.msra.mxu0 0.0
      %4051 = vmatprep.subr.mxu0 0.0
      %4052 = vmatpush1.msra.mxu0 0.0
      %4053 = vmatprep.subr.mxu0 0.0
      %4054 = vmatpush1.msra.mxu0 0.0
      %4055 = vmatprep.subr.mxu0 0.0
      %4056 = vmatpush1.msra.mxu0 0.0
      %4057 = vmatprep.subr.mxu0 0.0
      %4058 = vmatpush1.msra.mxu0 0.0
      %4059 = vmatprep.subr.mxu0 0.0
      %4060 = vmatpush1.msra.mxu0 0.0
      %4061 = vmatprep.subr.mxu0 0.0
      %4062 = vmatpush1.msra.mxu0 0.0
      %4063 = vmatprep.subr.mxu0 0.0
      %4064 = vmatpush1.msra.mxu0 0.0
      %4065 = vmatprep.subr.mxu0 0.0
      %4066 = vmatpush1.msra.mxu0 0.0
      %4067 = vmatprep.mubr.f32.mxu0 0.0
      %4068 = vmatmul.mubr.f32.gmra.mrb[0].mxu0 %v4001
      %v4069 = vpop.f32.mrb[0].mxu0
      %v4070 = vadd.f32 0.0, %v4069
      %v4071 = vpop.f32.mrb[0].mxu0
      %v4072 = vadd.f32 0.0, %v4071
      %4073 = vdwg.mxu0
      %4074 = vmatprep.subr.mxu0 %v3995
      %4075 = vmatpush1.msra.mxu0 %v3994
      %4076 = vmatprep.subr.mxu0 0.0
      %4077 = vmatpush1.msra.mxu0 0.0
      %4078 = vmatprep.subr.mxu0 0.0
      %4079 = vmatpush1.msra.mxu0 0.0
      %4080 = vmatprep.subr.mxu0 0.0
      %4081 = vmatpush1.msra.mxu0 0.0
      %4082 = vmatprep.subr.mxu0 0.0
      %4083 = vmatpush1.msra.mxu0 0.0
      %4084 = vmatprep.subr.mxu0 0.0
      %4085 = vmatpush1.msra.mxu0 0.0
      %4086 = vmatprep.subr.mxu0 0.0
      %4087 = vmatpush1.msra.mxu0 0.0
      %4088 = vmatprep.subr.mxu0 0.0
      %4089 = vmatpush1.msra.mxu0 0.0
      %4090 = vmatprep.subr.mxu0 0.0
      %4091 = vmatpush1.msra.mxu0 0.0
      %4092 = vmatprep.subr.mxu0 0.0
      %4093 = vmatpush1.msra.mxu0 0.0
      %4094 = vmatprep.subr.mxu0 0.0
      %4095 = vmatpush1.msra.mxu0 0.0
      %4096 = vmatprep.subr.mxu0 0.0
      %4097 = vmatpush1.msra.mxu0 0.0
      %4098 = vmatprep.subr.mxu0 0.0
      %4099 = vmatpush1.msra.mxu0 0.0
      %4100 = vmatprep.subr.mxu0 0.0
      %4101 = vmatpush1.msra.mxu0 0.0
      %4102 = vmatprep.subr.mxu0 0.0
      %4103 = vmatpush1.msra.mxu0 0.0
      %4104 = vmatprep.subr.mxu0 0.0
      %4105 = vmatpush1.msra.mxu0 0.0
      %4106 = vmatprep.subr.mxu0 0.0
      %4107 = vmatpush1.msra.mxu0 0.0
      %4108 = vmatprep.subr.mxu0 0.0
      %4109 = vmatpush1.msra.mxu0 0.0
      %4110 = vmatprep.subr.mxu0 0.0
      %4111 = vmatpush1.msra.mxu0 0.0
      %4112 = vmatprep.subr.mxu0 0.0
      %4113 = vmatpush1.msra.mxu0 0.0
      %4114 = vmatprep.subr.mxu0 0.0
      %4115 = vmatpush1.msra.mxu0 0.0
      %4116 = vmatprep.subr.mxu0 0.0
      %4117 = vmatpush1.msra.mxu0 0.0
      %4118 = vmatprep.subr.mxu0 0.0
      %4119 = vmatpush1.msra.mxu0 0.0
      %4120 = vmatprep.subr.mxu0 0.0
      %4121 = vmatpush1.msra.mxu0 0.0
      %4122 = vmatprep.subr.mxu0 0.0
      %4123 = vmatpush1.msra.mxu0 0.0
      %4124 = vmatprep.subr.mxu0 0.0
      %4125 = vmatpush1.msra.mxu0 0.0
      %4126 = vmatprep.subr.mxu0 0.0
      %4127 = vmatpush1.msra.mxu0 0.0
      %4128 = vmatprep.subr.mxu0 0.0
      %4129 = vmatpush1.msra.mxu0 0.0
      %4130 = vmatprep.subr.mxu0 0.0
      %4131 = vmatpush1.msra.mxu0 0.0
      %4132 = vmatprep.subr.mxu0 0.0
      %4133 = vmatpush1.msra.mxu0 0.0
      %4134 = vmatprep.subr.mxu0 0.0
      %4135 = vmatpush1.msra.mxu0 0.0
      %4136 = vmatprep.subr.mxu0 0.0
      %4137 = vmatpush1.msra.mxu0 0.0
      %4138 = vmatprep.mubr.f32.mxu0 0.0
      %4139 = vmatmul.mubr.f32.gmra.mrb[0].mxu0 %v4001
      %v4140 = vpop.f32.mrb[0].mxu0
      %v4141 = vadd.f32 0.0, %v4140
      %v4142 = vpop.f32.mrb[0].mxu0
      %v4143 = vadd.f32 0.0, %v4142
      %4144 = vdwg.mxu0
      %v4145 = vadd.f32 %v3976, %v4070
      %v4146 = vadd.f32 %v3977, %v4072
      %v4147 = vadd.f32 %v3978, %v4141
      %v4148 = vadd.f32 %v3979, %v4143
      %s4149 = scalar_lea.vmem %s2, 184
      %v4150 = vld [vmem:[%s4149] sm:$0xff]
      %4151 = vrot.lane.b32.xlu0 %v3465, 118
      %v4152 = vpop.permute.xlu0 %4151
      %4153 = vrot.lane.b32.xlu0 %v3466, 118
      %v4154 = vpop.permute.xlu0 %4153
      %4155 = vrot.lane.b32.xlu0 %v3467, 118
      %v4156 = vpop.permute.xlu0 %4155
      %4157 = vrot.lane.b32.xlu0 %v3468, 118
      %v4158 = vpop.permute.xlu0 %4157
      %4159 = vrot.lane.b32.xlu0 %v3469, 118
      %v4160 = vpop.permute.xlu0 %4159
      %v4161 = vsel %vm1114, %v4152, %v4154
      %v4162 = vsel %vm1114, %v4154, %v4156
      %v4163 = vsel %vm1114, %v4156, %v4158
      %v4164 = vsel %vm1114, %v4158, %v4160
      %v4170 = vsel %vm301, %v4150, 0
      %4172 = vmatprep.subr.mxu0 %v4162
      %4173 = vmatpush1.msra.mxu0 %v4161
      %4174 = vmatprep.subr.mxu0 0.0
      %4175 = vmatpush1.msra.mxu0 0.0
      %4176 = vmatprep.subr.mxu0 0.0
      %4177 = vmatpush1.msra.mxu0 0.0
      %4178 = vmatprep.subr.mxu0 0.0
      %4179 = vmatpush1.msra.mxu0 0.0
      %4180 = vmatprep.subr.mxu0 0.0
      %4181 = vmatpush1.msra.mxu0 0.0
      %4182 = vmatprep.subr.mxu0 0.0
      %4183 = vmatpush1.msra.mxu0 0.0
      %4184 = vmatprep.subr.mxu0 0.0
      %4185 = vmatpush1.msra.mxu0 0.0
      %4186 = vmatprep.subr.mxu0 0.0
      %4187 = vmatpush1.msra.mxu0 0.0
      %4188 = vmatprep.subr.mxu0 0.0
      %4189 = vmatpush1.msra.mxu0 0.0
      %4190 = vmatprep.subr.mxu0 0.0
      %4191 = vmatpush1.msra.mxu0 0.0
      %4192 = vmatprep.subr.mxu0 0.0
      %4193 = vmatpush1.msra.mxu0 0.0
      %4194 = vmatprep.subr.mxu0 0.0
      %4195 = vmatpush1.msra.mxu0 0.0
      %4196 = vmatprep.subr.mxu0 0.0
      %4197 = vmatpush1.msra.mxu0 0.0
      %4198 = vmatprep.subr.mxu0 0.0
      %4199 = vmatpush1.msra.mxu0 0.0
      %4200 = vmatprep.subr.mxu0 0.0
      %4201 = vmatpush1.msra.mxu0 0.0
      %4202 = vmatprep.subr.mxu0 0.0
      %4203 = vmatpush1.msra.mxu0 0.0
      %4204 = vmatprep.subr.mxu0 0.0
      %4205 = vmatpush1.msra.mxu0 0.0
      %4206 = vmatprep.subr.mxu0 0.0
      %4207 = vmatpush1.msra.mxu0 0.0
      %4208 = vmatprep.subr.mxu0 0.0
      %4209 = vmatpush1.msra.mxu0 0.0
      %4210 = vmatprep.subr.mxu0 0.0
      %4211 = vmatpush1.msra.mxu0 0.0
      %4212 = vmatprep.subr.mxu0 0.0
      %4213 = vmatpush1.msra.mxu0 0.0
      %4214 = vmatprep.subr.mxu0 0.0
      %4215 = vmatpush1.msra.mxu0 0.0
      %4216 = vmatprep.subr.mxu0 0.0
      %4217 = vmatpush1.msra.mxu0 0.0
      %4218 = vmatprep.subr.mxu0 0.0
      %4219 = vmatpush1.msra.mxu0 0.0
      %4220 = vmatprep.subr.mxu0 0.0
      %4221 = vmatpush1.msra.mxu0 0.0
      %4222 = vmatprep.subr.mxu0 0.0
      %4223 = vmatpush1.msra.mxu0 0.0
      %4224 = vmatprep.subr.mxu0 0.0
      %4225 = vmatpush1.msra.mxu0 0.0
      %4226 = vmatprep.subr.mxu0 0.0
      %4227 = vmatpush1.msra.mxu0 0.0
      %4228 = vmatprep.subr.mxu0 0.0
      %4229 = vmatpush1.msra.mxu0 0.0
      %4230 = vmatprep.subr.mxu0 0.0
      %4231 = vmatpush1.msra.mxu0 0.0
      %4232 = vmatprep.subr.mxu0 0.0
      %4233 = vmatpush1.msra.mxu0 0.0
      %4234 = vmatprep.subr.mxu0 0.0
      %4235 = vmatpush1.msra.mxu0 0.0
      %4236 = vmatprep.mubr.f32.mxu0 0.0
      %4237 = vmatmul.mubr.f32.gmra.mrb[0].mxu0 %v4170
      %v4238 = vpop.f32.mrb[0].mxu0
      %v4239 = vadd.f32 0.0, %v4238
      %v4240 = vpop.f32.mrb[0].mxu0
      %v4241 = vadd.f32 0.0, %v4240
      %4242 = vdwg.mxu0
      %4243 = vmatprep.subr.mxu0 %v4164
      %4244 = vmatpush1.msra.mxu0 %v4163
      %4245 = vmatprep.subr.mxu0 0.0
      %4246 = vmatpush1.msra.mxu0 0.0
      %4247 = vmatprep.subr.mxu0 0.0
      %4248 = vmatpush1.msra.mxu0 0.0
      %4249 = vmatprep.subr.mxu0 0.0
      %4250 = vmatpush1.msra.mxu0 0.0
      %4251 = vmatprep.subr.mxu0 0.0
      %4252 = vmatpush1.msra.mxu0 0.0
      %4253 = vmatprep.subr.mxu0 0.0
      %4254 = vmatpush1.msra.mxu0 0.0
      %4255 = vmatprep.subr.mxu0 0.0
      %4256 = vmatpush1.msra.mxu0 0.0
      %4257 = vmatprep.subr.mxu0 0.0
      %4258 = vmatpush1.msra.mxu0 0.0
      %4259 = vmatprep.subr.mxu0 0.0
      %4260 = vmatpush1.msra.mxu0 0.0
      %4261 = vmatprep.subr.mxu0 0.0
      %4262 = vmatpush1.msra.mxu0 0.0
      %4263 = vmatprep.subr.mxu0 0.0
      %4264 = vmatpush1.msra.mxu0 0.0
      %4265 = vmatprep.subr.mxu0 0.0
      %4266 = vmatpush1.msra.mxu0 0.0
      %4267 = vmatprep.subr.mxu0 0.0
      %4268 = vmatpush1.msra.mxu0 0.0
      %4269 = vmatprep.subr.mxu0 0.0
      %4270 = vmatpush1.msra.mxu0 0.0
      %4271 = vmatprep.subr.mxu0 0.0
      %4272 = vmatpush1.msra.mxu0 0.0
      %4273 = vmatprep.subr.mxu0 0.0
      %4274 = vmatpush1.msra.mxu0 0.0
      %4275 = vmatprep.subr.mxu0 0.0
      %4276 = vmatpush1.msra.mxu0 0.0
      %4277 = vmatprep.subr.mxu0 0.0
      %4278 = vmatpush1.msra.mxu0 0.0
      %4279 = vmatprep.subr.mxu0 0.0
      %4280 = vmatpush1.msra.mxu0 0.0
      %4281 = vmatprep.subr.mxu0 0.0
      %4282 = vmatpush1.msra.mxu0 0.0
      %4283 = vmatprep.subr.mxu0 0.0
      %4284 = vmatpush1.msra.mxu0 0.0
      %4285 = vmatprep.subr.mxu0 0.0
      %4286 = vmatpush1.msra.mxu0 0.0
      %4287 = vmatprep.subr.mxu0 0.0
      %4288 = vmatpush1.msra.mxu0 0.0
      %4289 = vmatprep.subr.mxu0 0.0
      %4290 = vmatpush1.msra.mxu0 0.0
      %4291 = vmatprep.subr.mxu0 0.0
      %4292 = vmatpush1.msra.mxu0 0.0
      %4293 = vmatprep.subr.mxu0 0.0
      %4294 = vmatpush1.msra.mxu0 0.0
      %4295 = vmatprep.subr.mxu0 0.0
      %4296 = vmatpush1.msra.mxu0 0.0
      %4297 = vmatprep.subr.mxu0 0.0
      %4298 = vmatpush1.msra.mxu0 0.0
      %4299 = vmatprep.subr.mxu0 0.0
      %4300 = vmatpush1.msra.mxu0 0.0
      %4301 = vmatprep.subr.mxu0 0.0
      %4302 = vmatpush1.msra.mxu0 0.0
      %4303 = vmatprep.subr.mxu0 0.0
      %4304 = vmatpush1.msra.mxu0 0.0
      %4305 = vmatprep.subr.mxu0 0.0
      %4306 = vmatpush1.msra.mxu0 0.0
      %4307 = vmatprep.mubr.f32.mxu0 0.0
      %4308 = vmatmul.mubr.f32.gmra.mrb[0].mxu0 %v4170
      %v4309 = vpop.f32.mrb[0].mxu0
      %v4310 = vadd.f32 0.0, %v4309
      %v4311 = vpop.f32.mrb[0].mxu0
      %v4312 = vadd.f32 0.0, %v4311
      %4313 = vdwg.mxu0
      %v4314 = vadd.f32 %v4145, %v4239
      %v4315 = vadd.f32 %v4146, %v4241
      %v4316 = vadd.f32 %v4147, %v4310
      %v4317 = vadd.f32 %v4148, %v4312
      %s4318 = scalar_lea.vmem %s2, 192
      %v4319 = vld [vmem:[%s4318] sm:$0xff]
      %4320 = vrot.lane.b32.xlu0 %v3465, 112
      %v4321 = vpop.permute.xlu0 %4320
      %4322 = vrot.lane.b32.xlu0 %v3466, 112
      %v4323 = vpop.permute.xlu0 %4322
      %4324 = vrot.lane.b32.xlu0 %v3467, 112
      %v4325 = vpop.permute.xlu0 %4324
      %4326 = vrot.lane.b32.xlu0 %v3468, 112
      %v4327 = vpop.permute.xlu0 %4326
      %4328 = vrot.lane.b32.xlu0 %v3469, 112
      %v4329 = vpop.permute.xlu0 %4328
      %v4330 = vsel %vm1284, %v4321, %v4323
      %v4331 = vsel %vm1284, %v4323, %v4325
      %v4332 = vsel %vm1284, %v4325, %v4327
      %v4333 = vsel %vm1284, %v4327, %v4329
      %v4339 = vsel %vm301, %v4319, 0
      %4341 = vmatprep.subr.mxu0 %v4331
      %4342 = vmatpush1.msra.mxu0 %v4330
      %4343 = vmatprep.subr.mxu0 0.0
      %4344 = vmatpush1.msra.mxu0 0.0
      %4345 = vmatprep.subr.mxu0 0.0
      %4346 = vmatpush1.msra.mxu0 0.0
      %4347 = vmatprep.subr.mxu0 0.0
      %4348 = vmatpush1.msra.mxu0 0.0
      %4349 = vmatprep.subr.mxu0 0.0
      %4350 = vmatpush1.msra.mxu0 0.0
      %4351 = vmatprep.subr.mxu0 0.0
      %4352 = vmatpush1.msra.mxu0 0.0
      %4353 = vmatprep.subr.mxu0 0.0
      %4354 = vmatpush1.msra.mxu0 0.0
      %4355 = vmatprep.subr.mxu0 0.0
      %4356 = vmatpush1.msra.mxu0 0.0
      %4357 = vmatprep.subr.mxu0 0.0
      %4358 = vmatpush1.msra.mxu0 0.0
      %4359 = vmatprep.subr.mxu0 0.0
      %4360 = vmatpush1.msra.mxu0 0.0
      %4361 = vmatprep.subr.mxu0 0.0
      %4362 = vmatpush1.msra.mxu0 0.0
      %4363 = vmatprep.subr.mxu0 0.0
      %4364 = vmatpush1.msra.mxu0 0.0
      %4365 = vmatprep.subr.mxu0 0.0
      %4366 = vmatpush1.msra.mxu0 0.0
      %4367 = vmatprep.subr.mxu0 0.0
      %4368 = vmatpush1.msra.mxu0 0.0
      %4369 = vmatprep.subr.mxu0 0.0
      %4370 = vmatpush1.msra.mxu0 0.0
      %4371 = vmatprep.subr.mxu0 0.0
      %4372 = vmatpush1.msra.mxu0 0.0
      %4373 = vmatprep.subr.mxu0 0.0
      %4374 = vmatpush1.msra.mxu0 0.0
      %4375 = vmatprep.subr.mxu0 0.0
      %4376 = vmatpush1.msra.mxu0 0.0
      %4377 = vmatprep.subr.mxu0 0.0
      %4378 = vmatpush1.msra.mxu0 0.0
      %4379 = vmatprep.subr.mxu0 0.0
      %4380 = vmatpush1.msra.mxu0 0.0
      %4381 = vmatprep.subr.mxu0 0.0
      %4382 = vmatpush1.msra.mxu0 0.0
      %4383 = vmatprep.subr.mxu0 0.0
      %4384 = vmatpush1.msra.mxu0 0.0
      %4385 = vmatprep.subr.mxu0 0.0
      %4386 = vmatpush1.msra.mxu0 0.0
      %4387 = vmatprep.subr.mxu0 0.0
      %4388 = vmatpush1.msra.mxu0 0.0
      %4389 = vmatprep.subr.mxu0 0.0
      %4390 = vmatpush1.msra.mxu0 0.0
      %4391 = vmatprep.subr.mxu0 0.0
      %4392 = vmatpush1.msra.mxu0 0.0
      %4393 = vmatprep.subr.mxu0 0.0
      %4394 = vmatpush1.msra.mxu0 0.0
      %4395 = vmatprep.subr.mxu0 0.0
      %4396 = vmatpush1.msra.mxu0 0.0
      %4397 = vmatprep.subr.mxu0 0.0
      %4398 = vmatpush1.msra.mxu0 0.0
      %4399 = vmatprep.subr.mxu0 0.0
      %4400 = vmatpush1.msra.mxu0 0.0
      %4401 = vmatprep.subr.mxu0 0.0
      %4402 = vmatpush1.msra.mxu0 0.0
      %4403 = vmatprep.subr.mxu0 0.0
      %4404 = vmatpush1.msra.mxu0 0.0
      %4405 = vmatprep.mubr.f32.mxu0 0.0
      %4406 = vmatmul.mubr.f32.gmra.mrb[0].mxu0 %v4339
      %v4407 = vpop.f32.mrb[0].mxu0
      %v4408 = vadd.f32 0.0, %v4407
      %v4409 = vpop.f32.mrb[0].mxu0
      %v4410 = vadd.f32 0.0, %v4409
      %4411 = vdwg.mxu0
      %4412 = vmatprep.subr.mxu0 %v4333
      %4413 = vmatpush1.msra.mxu0 %v4332
      %4414 = vmatprep.subr.mxu0 0.0
      %4415 = vmatpush1.msra.mxu0 0.0
      %4416 = vmatprep.subr.mxu0 0.0
      %4417 = vmatpush1.msra.mxu0 0.0
      %4418 = vmatprep.subr.mxu0 0.0
      %4419 = vmatpush1.msra.mxu0 0.0
      %4420 = vmatprep.subr.mxu0 0.0
      %4421 = vmatpush1.msra.mxu0 0.0
      %4422 = vmatprep.subr.mxu0 0.0
      %4423 = vmatpush1.msra.mxu0 0.0
      %4424 = vmatprep.subr.mxu0 0.0
      %4425 = vmatpush1.msra.mxu0 0.0
      %4426 = vmatprep.subr.mxu0 0.0
      %4427 = vmatpush1.msra.mxu0 0.0
      %4428 = vmatprep.subr.mxu0 0.0
      %4429 = vmatpush1.msra.mxu0 0.0
      %4430 = vmatprep.subr.mxu0 0.0
      %4431 = vmatpush1.msra.mxu0 0.0
      %4432 = vmatprep.subr.mxu0 0.0
      %4433 = vmatpush1.msra.mxu0 0.0
      %4434 = vmatprep.subr.mxu0 0.0
      %4435 = vmatpush1.msra.mxu0 0.0
      %4436 = vmatprep.subr.mxu0 0.0
      %4437 = vmatpush1.msra.mxu0 0.0
      %4438 = vmatprep.subr.mxu0 0.0
      %4439 = vmatpush1.msra.mxu0 0.0
      %4440 = vmatprep.subr.mxu0 0.0
      %4441 = vmatpush1.msra.mxu0 0.0
      %4442 = vmatprep.subr.mxu0 0.0
      %4443 = vmatpush1.msra.mxu0 0.0
      %4444 = vmatprep.subr.mxu0 0.0
      %4445 = vmatpush1.msra.mxu0 0.0
      %4446 = vmatprep.subr.mxu0 0.0
      %4447 = vmatpush1.msra.mxu0 0.0
      %4448 = vmatprep.subr.mxu0 0.0
      %4449 = vmatpush1.msra.mxu0 0.0
      %4450 = vmatprep.subr.mxu0 0.0
      %4451 = vmatpush1.msra.mxu0 0.0
      %4452 = vmatprep.subr.mxu0 0.0
      %4453 = vmatpush1.msra.mxu0 0.0
      %4454 = vmatprep.subr.mxu0 0.0
      %4455 = vmatpush1.msra.mxu0 0.0
      %4456 = vmatprep.subr.mxu0 0.0
      %4457 = vmatpush1.msra.mxu0 0.0
      %4458 = vmatprep.subr.mxu0 0.0
      %4459 = vmatpush1.msra.mxu0 0.0
      %4460 = vmatprep.subr.mxu0 0.0
      %4461 = vmatpush1.msra.mxu0 0.0
      %4462 = vmatprep.subr.mxu0 0.0
      %4463 = vmatpush1.msra.mxu0 0.0
      %4464 = vmatprep.subr.mxu0 0.0
      %4465 = vmatpush1.msra.mxu0 0.0
      %4466 = vmatprep.subr.mxu0 0.0
      %4467 = vmatpush1.msra.mxu0 0.0
      %4468 = vmatprep.subr.mxu0 0.0
      %4469 = vmatpush1.msra.mxu0 0.0
      %4470 = vmatprep.subr.mxu0 0.0
      %4471 = vmatpush1.msra.mxu0 0.0
      %4472 = vmatprep.subr.mxu0 0.0
      %4473 = vmatpush1.msra.mxu0 0.0
      %4474 = vmatprep.subr.mxu0 0.0
      %4475 = vmatpush1.msra.mxu0 0.0
      %4476 = vmatprep.mubr.f32.mxu0 0.0
      %4477 = vmatmul.mubr.f32.gmra.mrb[0].mxu0 %v4339
      %v4478 = vpop.f32.mrb[0].mxu0
      %v4479 = vadd.f32 0.0, %v4478
      %v4480 = vpop.f32.mrb[0].mxu0
      %v4481 = vadd.f32 0.0, %v4480
      %4482 = vdwg.mxu0
      %v4483 = vadd.f32 %v4314, %v4408
      %v4484 = vadd.f32 %v4315, %v4410
      %v4485 = vadd.f32 %v4316, %v4479
      %v4486 = vadd.f32 %v4317, %v4481
      %s4487 = scalar_lea.vmem %s2, 200
      %v4488 = vld [vmem:[%s4487] sm:$0xff]
      %4489 = vrot.lane.b32.xlu0 %v3465, 111
      %v4490 = vpop.permute.xlu0 %4489
      %4491 = vrot.lane.b32.xlu0 %v3466, 111
      %v4492 = vpop.permute.xlu0 %4491
      %4493 = vrot.lane.b32.xlu0 %v3467, 111
      %v4494 = vpop.permute.xlu0 %4493
      %4495 = vrot.lane.b32.xlu0 %v3468, 111
      %v4496 = vpop.permute.xlu0 %4495
      %4497 = vrot.lane.b32.xlu0 %v3469, 111
      %v4498 = vpop.permute.xlu0 %4497
      %v4499 = vsel %vm1454, %v4490, %v4492
      %v4500 = vsel %vm1454, %v4492, %v4494
      %v4501 = vsel %vm1454, %v4494, %v4496
      %v4502 = vsel %vm1454, %v4496, %v4498
      %v4508 = vsel %vm301, %v4488, 0
      %4510 = vmatprep.subr.mxu0 %v4500
      %4511 = vmatpush1.msra.mxu0 %v4499
      %4512 = vmatprep.subr.mxu0 0.0
      %4513 = vmatpush1.msra.mxu0 0.0
      %4514 = vmatprep.subr.mxu0 0.0
      %4515 = vmatpush1.msra.mxu0 0.0
      %4516 = vmatprep.subr.mxu0 0.0
      %4517 = vmatpush1.msra.mxu0 0.0
      %4518 = vmatprep.subr.mxu0 0.0
      %4519 = vmatpush1.msra.mxu0 0.0
      %4520 = vmatprep.subr.mxu0 0.0
      %4521 = vmatpush1.msra.mxu0 0.0
      %4522 = vmatprep.subr.mxu0 0.0
      %4523 = vmatpush1.msra.mxu0 0.0
      %4524 = vmatprep.subr.mxu0 0.0
      %4525 = vmatpush1.msra.mxu0 0.0
      %4526 = vmatprep.subr.mxu0 0.0
      %4527 = vmatpush1.msra.mxu0 0.0
      %4528 = vmatprep.subr.mxu0 0.0
      %4529 = vmatpush1.msra.mxu0 0.0
      %4530 = vmatprep.subr.mxu0 0.0
      %4531 = vmatpush1.msra.mxu0 0.0
      %4532 = vmatprep.subr.mxu0 0.0
      %4533 = vmatpush1.msra.mxu0 0.0
      %4534 = vmatprep.subr.mxu0 0.0
      %4535 = vmatpush1.msra.mxu0 0.0
      %4536 = vmatprep.subr.mxu0 0.0
      %4537 = vmatpush1.msra.mxu0 0.0
      %4538 = vmatprep.subr.mxu0 0.0
      %4539 = vmatpush1.msra.mxu0 0.0
      %4540 = vmatprep.subr.mxu0 0.0
      %4541 = vmatpush1.msra.mxu0 0.0
      %4542 = vmatprep.subr.mxu0 0.0
      %4543 = vmatpush1.msra.mxu0 0.0
      %4544 = vmatprep.subr.mxu0 0.0
      %4545 = vmatpush1.msra.mxu0 0.0
      %4546 = vmatprep.subr.mxu0 0.0
      %4547 = vmatpush1.msra.mxu0 0.0
      %4548 = vmatprep.subr.mxu0 0.0
      %4549 = vmatpush1.msra.mxu0 0.0
      %4550 = vmatprep.subr.mxu0 0.0
      %4551 = vmatpush1.msra.mxu0 0.0
      %4552 = vmatprep.subr.mxu0 0.0
      %4553 = vmatpush1.msra.mxu0 0.0
      %4554 = vmatprep.subr.mxu0 0.0
      %4555 = vmatpush1.msra.mxu0 0.0
      %4556 = vmatprep.subr.mxu0 0.0
      %4557 = vmatpush1.msra.mxu0 0.0
      %4558 = vmatprep.subr.mxu0 0.0
      %4559 = vmatpush1.msra.mxu0 0.0
      %4560 = vmatprep.subr.mxu0 0.0
      %4561 = vmatpush1.msra.mxu0 0.0
      %4562 = vmatprep.subr.mxu0 0.0
      %4563 = vmatpush1.msra.mxu0 0.0
      %4564 = vmatprep.subr.mxu0 0.0
      %4565 = vmatpush1.msra.mxu0 0.0
      %4566 = vmatprep.subr.mxu0 0.0
      %4567 = vmatpush1.msra.mxu0 0.0
      %4568 = vmatprep.subr.mxu0 0.0
      %4569 = vmatpush1.msra.mxu0 0.0
      %4570 = vmatprep.subr.mxu0 0.0
      %4571 = vmatpush1.msra.mxu0 0.0
      %4572 = vmatprep.subr.mxu0 0.0
      %4573 = vmatpush1.msra.mxu0 0.0
      %4574 = vmatprep.mubr.f32.mxu0 0.0
      %4575 = vmatmul.mubr.f32.gmra.mrb[0].mxu0 %v4508
      %v4576 = vpop.f32.mrb[0].mxu0
      %v4577 = vadd.f32 0.0, %v4576
      %v4578 = vpop.f32.mrb[0].mxu0
      %v4579 = vadd.f32 0.0, %v4578
      %4580 = vdwg.mxu0
      %4581 = vmatprep.subr.mxu0 %v4502
      %4582 = vmatpush1.msra.mxu0 %v4501
      %4583 = vmatprep.subr.mxu0 0.0
      %4584 = vmatpush1.msra.mxu0 0.0
      %4585 = vmatprep.subr.mxu0 0.0
      %4586 = vmatpush1.msra.mxu0 0.0
      %4587 = vmatprep.subr.mxu0 0.0
      %4588 = vmatpush1.msra.mxu0 0.0
      %4589 = vmatprep.subr.mxu0 0.0
      %4590 = vmatpush1.msra.mxu0 0.0
      %4591 = vmatprep.subr.mxu0 0.0
      %4592 = vmatpush1.msra.mxu0 0.0
      %4593 = vmatprep.subr.mxu0 0.0
      %4594 = vmatpush1.msra.mxu0 0.0
      %4595 = vmatprep.subr.mxu0 0.0
      %4596 = vmatpush1.msra.mxu0 0.0
      %4597 = vmatprep.subr.mxu0 0.0
      %4598 = vmatpush1.msra.mxu0 0.0
      %4599 = vmatprep.subr.mxu0 0.0
      %4600 = vmatpush1.msra.mxu0 0.0
      %4601 = vmatprep.subr.mxu0 0.0
      %4602 = vmatpush1.msra.mxu0 0.0
      %4603 = vmatprep.subr.mxu0 0.0
      %4604 = vmatpush1.msra.mxu0 0.0
      %4605 = vmatprep.subr.mxu0 0.0
      %4606 = vmatpush1.msra.mxu0 0.0
      %4607 = vmatprep.subr.mxu0 0.0
      %4608 = vmatpush1.msra.mxu0 0.0
      %4609 = vmatprep.subr.mxu0 0.0
      %4610 = vmatpush1.msra.mxu0 0.0
      %4611 = vmatprep.subr.mxu0 0.0
      %4612 = vmatpush1.msra.mxu0 0.0
      %4613 = vmatprep.subr.mxu0 0.0
      %4614 = vmatpush1.msra.mxu0 0.0
      %4615 = vmatprep.subr.mxu0 0.0
      %4616 = vmatpush1.msra.mxu0 0.0
      %4617 = vmatprep.subr.mxu0 0.0
      %4618 = vmatpush1.msra.mxu0 0.0
      %4619 = vmatprep.subr.mxu0 0.0
      %4620 = vmatpush1.msra.mxu0 0.0
      %4621 = vmatprep.subr.mxu0 0.0
      %4622 = vmatpush1.msra.mxu0 0.0
      %4623 = vmatprep.subr.mxu0 0.0
      %4624 = vmatpush1.msra.mxu0 0.0
      %4625 = vmatprep.subr.mxu0 0.0
      %4626 = vmatpush1.msra.mxu0 0.0
      %4627 = vmatprep.subr.mxu0 0.0
      %4628 = vmatpush1.msra.mxu0 0.0
      %4629 = vmatprep.subr.mxu0 0.0
      %4630 = vmatpush1.msra.mxu0 0.0
      %4631 = vmatprep.subr.mxu0 0.0
      %4632 = vmatpush1.msra.mxu0 0.0
      %4633 = vmatprep.subr.mxu0 0.0
      %4634 = vmatpush1.msra.mxu0 0.0
      %4635 = vmatprep.subr.mxu0 0.0
      %4636 = vmatpush1.msra.mxu0 0.0
      %4637 = vmatprep.subr.mxu0 0.0
      %4638 = vmatpush1.msra.mxu0 0.0
      %4639 = vmatprep.subr.mxu0 0.0
      %4640 = vmatpush1.msra.mxu0 0.0
      %4641 = vmatprep.subr.mxu0 0.0
      %4642 = vmatpush1.msra.mxu0 0.0
      %4643 = vmatprep.subr.mxu0 0.0
      %4644 = vmatpush1.msra.mxu0 0.0
      %4645 = vmatprep.mubr.f32.mxu0 0.0
      %4646 = vmatmul.mubr.f32.gmra.mrb[0].mxu0 %v4508
      %v4647 = vpop.f32.mrb[0].mxu0
      %v4648 = vadd.f32 0.0, %v4647
      %v4649 = vpop.f32.mrb[0].mxu0
      %v4650 = vadd.f32 0.0, %v4649
      %4651 = vdwg.mxu0
      %v4652 = vadd.f32 %v4483, %v4577
      %v4653 = vadd.f32 %v4484, %v4579
      %v4654 = vadd.f32 %v4485, %v4648
      %v4655 = vadd.f32 %v4486, %v4650
      %s4656 = scalar_lea.vmem %s2, 208
      %v4657 = vld [vmem:[%s4656] sm:$0xff]
      %4658 = vrot.lane.b32.xlu0 %v3465, 110
      %v4659 = vpop.permute.xlu0 %4658
      %4660 = vrot.lane.b32.xlu0 %v3466, 110
      %v4661 = vpop.permute.xlu0 %4660
      %4662 = vrot.lane.b32.xlu0 %v3467, 110
      %v4663 = vpop.permute.xlu0 %4662
      %4664 = vrot.lane.b32.xlu0 %v3468, 110
      %v4665 = vpop.permute.xlu0 %4664
      %4666 = vrot.lane.b32.xlu0 %v3469, 110
      %v4667 = vpop.permute.xlu0 %4666
      %v4668 = vsel %vm1624, %v4659, %v4661
      %v4669 = vsel %vm1624, %v4661, %v4663
      %v4670 = vsel %vm1624, %v4663, %v4665
      %v4671 = vsel %vm1624, %v4665, %v4667
      %v4677 = vsel %vm301, %v4657, 0
      %4679 = vmatprep.subr.mxu0 %v4669
      %4680 = vmatpush1.msra.mxu0 %v4668
      %4681 = vmatprep.subr.mxu0 0.0
      %4682 = vmatpush1.msra.mxu0 0.0
      %4683 = vmatprep.subr.mxu0 0.0
      %4684 = vmatpush1.msra.mxu0 0.0
      %4685 = vmatprep.subr.mxu0 0.0
      %4686 = vmatpush1.msra.mxu0 0.0
      %4687 = vmatprep.subr.mxu0 0.0
      %4688 = vmatpush1.msra.mxu0 0.0
      %4689 = vmatprep.subr.mxu0 0.0
      %4690 = vmatpush1.msra.mxu0 0.0
      %4691 = vmatprep.subr.mxu0 0.0
      %4692 = vmatpush1.msra.mxu0 0.0
      %4693 = vmatprep.subr.mxu0 0.0
      %4694 = vmatpush1.msra.mxu0 0.0
      %4695 = vmatprep.subr.mxu0 0.0
      %4696 = vmatpush1.msra.mxu0 0.0
      %4697 = vmatprep.subr.mxu0 0.0
      %4698 = vmatpush1.msra.mxu0 0.0
      %4699 = vmatprep.subr.mxu0 0.0
      %4700 = vmatpush1.msra.mxu0 0.0
      %4701 = vmatprep.subr.mxu0 0.0
      %4702 = vmatpush1.msra.mxu0 0.0
      %4703 = vmatprep.subr.mxu0 0.0
      %4704 = vmatpush1.msra.mxu0 0.0
      %4705 = vmatprep.subr.mxu0 0.0
      %4706 = vmatpush1.msra.mxu0 0.0
      %4707 = vmatprep.subr.mxu0 0.0
      %4708 = vmatpush1.msra.mxu0 0.0
      %4709 = vmatprep.subr.mxu0 0.0
      %4710 = vmatpush1.msra.mxu0 0.0
      %4711 = vmatprep.subr.mxu0 0.0
      %4712 = vmatpush1.msra.mxu0 0.0
      %4713 = vmatprep.subr.mxu0 0.0
      %4714 = vmatpush1.msra.mxu0 0.0
      %4715 = vmatprep.subr.mxu0 0.0
      %4716 = vmatpush1.msra.mxu0 0.0
      %4717 = vmatprep.subr.mxu0 0.0
      %4718 = vmatpush1.msra.mxu0 0.0
      %4719 = vmatprep.subr.mxu0 0.0
      %4720 = vmatpush1.msra.mxu0 0.0
      %4721 = vmatprep.subr.mxu0 0.0
      %4722 = vmatpush1.msra.mxu0 0.0
      %4723 = vmatprep.subr.mxu0 0.0
      %4724 = vmatpush1.msra.mxu0 0.0
      %4725 = vmatprep.subr.mxu0 0.0
      %4726 = vmatpush1.msra.mxu0 0.0
      %4727 = vmatprep.subr.mxu0 0.0
      %4728 = vmatpush1.msra.mxu0 0.0
      %4729 = vmatprep.subr.mxu0 0.0
      %4730 = vmatpush1.msra.mxu0 0.0
      %4731 = vmatprep.subr.mxu0 0.0
      %4732 = vmatpush1.msra.mxu0 0.0
      %4733 = vmatprep.subr.mxu0 0.0
      %4734 = vmatpush1.msra.mxu0 0.0
      %4735 = vmatprep.subr.mxu0 0.0
      %4736 = vmatpush1.msra.mxu0 0.0
      %4737 = vmatprep.subr.mxu0 0.0
      %4738 = vmatpush1.msra.mxu0 0.0
      %4739 = vmatprep.subr.mxu0 0.0
      %4740 = vmatpush1.msra.mxu0 0.0
      %4741 = vmatprep.subr.mxu0 0.0
      %4742 = vmatpush1.msra.mxu0 0.0
      %4743 = vmatprep.mubr.f32.mxu0 0.0
      %4744 = vmatmul.mubr.f32.gmra.mrb[0].mxu0 %v4677
      %v4745 = vpop.f32.mrb[0].mxu0
      %v4746 = vadd.f32 0.0, %v4745
      %v4747 = vpop.f32.mrb[0].mxu0
      %v4748 = vadd.f32 0.0, %v4747
      %4749 = vdwg.mxu0
      %4750 = vmatprep.subr.mxu0 %v4671
      %4751 = vmatpush1.msra.mxu0 %v4670
      %4752 = vmatprep.subr.mxu0 0.0
      %4753 = vmatpush1.msra.mxu0 0.0
      %4754 = vmatprep.subr.mxu0 0.0
      %4755 = vmatpush1.msra.mxu0 0.0
      %4756 = vmatprep.subr.mxu0 0.0
      %4757 = vmatpush1.msra.mxu0 0.0
      %4758 = vmatprep.subr.mxu0 0.0
      %4759 = vmatpush1.msra.mxu0 0.0
      %4760 = vmatprep.subr.mxu0 0.0
      %4761 = vmatpush1.msra.mxu0 0.0
      %4762 = vmatprep.subr.mxu0 0.0
      %4763 = vmatpush1.msra.mxu0 0.0
      %4764 = vmatprep.subr.mxu0 0.0
      %4765 = vmatpush1.msra.mxu0 0.0
      %4766 = vmatprep.subr.mxu0 0.0
      %4767 = vmatpush1.msra.mxu0 0.0
      %4768 = vmatprep.subr.mxu0 0.0
      %4769 = vmatpush1.msra.mxu0 0.0
      %4770 = vmatprep.subr.mxu0 0.0
      %4771 = vmatpush1.msra.mxu0 0.0
      %4772 = vmatprep.subr.mxu0 0.0
      %4773 = vmatpush1.msra.mxu0 0.0
      %4774 = vmatprep.subr.mxu0 0.0
      %4775 = vmatpush1.msra.mxu0 0.0
      %4776 = vmatprep.subr.mxu0 0.0
      %4777 = vmatpush1.msra.mxu0 0.0
      %4778 = vmatprep.subr.mxu0 0.0
      %4779 = vmatpush1.msra.mxu0 0.0
      %4780 = vmatprep.subr.mxu0 0.0
      %4781 = vmatpush1.msra.mxu0 0.0
      %4782 = vmatprep.subr.mxu0 0.0
      %4783 = vmatpush1.msra.mxu0 0.0
      %4784 = vmatprep.subr.mxu0 0.0
      %4785 = vmatpush1.msra.mxu0 0.0
      %4786 = vmatprep.subr.mxu0 0.0
      %4787 = vmatpush1.msra.mxu0 0.0
      %4788 = vmatprep.subr.mxu0 0.0
      %4789 = vmatpush1.msra.mxu0 0.0
      %4790 = vmatprep.subr.mxu0 0.0
      %4791 = vmatpush1.msra.mxu0 0.0
      %4792 = vmatprep.subr.mxu0 0.0
      %4793 = vmatpush1.msra.mxu0 0.0
      %4794 = vmatprep.subr.mxu0 0.0
      %4795 = vmatpush1.msra.mxu0 0.0
      %4796 = vmatprep.subr.mxu0 0.0
      %4797 = vmatpush1.msra.mxu0 0.0
      %4798 = vmatprep.subr.mxu0 0.0
      %4799 = vmatpush1.msra.mxu0 0.0
      %4800 = vmatprep.subr.mxu0 0.0
      %4801 = vmatpush1.msra.mxu0 0.0
      %4802 = vmatprep.subr.mxu0 0.0
      %4803 = vmatpush1.msra.mxu0 0.0
      %4804 = vmatprep.subr.mxu0 0.0
      %4805 = vmatpush1.msra.mxu0 0.0
      %4806 = vmatprep.subr.mxu0 0.0
      %4807 = vmatpush1.msra.mxu0 0.0
      %4808 = vmatprep.subr.mxu0 0.0
      %4809 = vmatpush1.msra.mxu0 0.0
      %4810 = vmatprep.subr.mxu0 0.0
      %4811 = vmatpush1.msra.mxu0 0.0
      %4812 = vmatprep.subr.mxu0 0.0
      %4813 = vmatpush1.msra.mxu0 0.0
      %4814 = vmatprep.mubr.f32.mxu0 0.0
      %4815 = vmatmul.mubr.f32.gmra.mrb[0].mxu0 %v4677
      %v4816 = vpop.f32.mrb[0].mxu0
      %v4817 = vadd.f32 0.0, %v4816
      %v4818 = vpop.f32.mrb[0].mxu0
      %v4819 = vadd.f32 0.0, %v4818
      %4820 = vdwg.mxu0
      %v4821 = vadd.f32 %v4652, %v4746
      %v4822 = vadd.f32 %v4653, %v4748
      %v4823 = vadd.f32 %v4654, %v4817
      %v4824 = vadd.f32 %v4655, %v4819
      %v4825 = vld [vmem:[%s3] sm:$0xff]
      %4827 = vset.pattern.permute.xlu0 0
      %4828 = vperm.xlu0 %4827, %v4825
      %v4829 = vpop.permute.xlu0 %4828
      %v4831 = vadd.f32 %v4821, %v4829
      %v4832 = vadd.f32 %v4822, %v4829
      %v4833 = vadd.f32 %v4823, %v4829
      %v4834 = vadd.f32 %v4824, %v4829
      %4835 = vst [vmem:[%s255] sm:$0xff] %v4831
      %4836 = vst [vmem:[%s255 + $0x8] sm:$0xff] %v4832
      %4837 = vst [vmem:[%s255 + $0x10] sm:$0xff] %v4833
      %4838 = vst [vmem:[%s255 + $0x18] sm:$0xff] %v4834
      %s4839 = smul.u32 4, %s15
      %p4840 = scmp.lt.s32.totalorder %s4839, 7
      %s4841 = scalar_select %p4840, %s4839, 7
      %s4842 = smul.addr %s4841, 8
      %s4843 = scalar_lea.vmem %s4, %s4842
      // Predicated region
      $region37: #{dmsr_conv3d.1} parent=35 // pred_check
        %p4844 = pneg %p131
      $region38: #{dmsr_conv3d.1} parent=35 // pred_check_branch
        %4846 = sbr.rel (%p4844) target = $region40
      $region39: #{dmsr_conv3d.1} parent=35 // pred_region
        %s4847 = smul.u32 4, %s15
      $region40: #{dmsr_conv3d.1} parent=35 // pred_fallthru
        _
    $region36: #{dmsr_conv3d.1} parent=5 // pred_fallthru
      _
    %p4848 = scmp.le.s32.totalorder 2, %s10
    // Predicated region
    $region41: #{dmsr_conv3d.1} parent=5 // pred_check
      %p4849 = pneg %p4848
    $region42: #{dmsr_conv3d.1} parent=5 // pred_check_branch
      %4851 = sbr.rel (%p4849) target = $region44
    $region43: #{dmsr_conv3d.1} parent=5 // pred_region
      %s4852 = ssub.s32 %s10, 2
      // Predicated region
      $region45: #{dmsr_conv3d.1} parent=43 // pred_check
        %p4853 = pneg %p137
      $region46: #{dmsr_conv3d.1} parent=43 // pred_check_branch
        %4855 = sbr.rel (%p4853) target = $region48
      $region47: #{dmsr_conv3d.1} parent=43 // pred_region
        %s4856 = smul.u32 4, %s16
        %p4857 = scmp.lt.s32.totalorder %s4856, 7
        %s4858 = scalar_select %p4857, %s4856, 7
        %s4859 = smul.addr %s4858, 8
        %s4860 = scalar_lea.vmem %s4, %s4859
      $region48: #{dmsr_conv3d.1} parent=43 // pred_fallthru
        _
    $region44: #{dmsr_conv3d.1} parent=5 // pred_fallthru
      _
  $region6: #{dmsr_conv3d.1} parent=0 // loop_footer
    %s14 = sadd.s32 1, %s10
  $region7: #{dmsr_conv3d.1} parent=0 // loop_footer_branch
    %9 = sbr.rel target = $region3
  $region8: #{dmsr_conv3d.1} parent=0 // loop_exit
    _

</llo_original>
